<compile_context>
chip_gen: v5e
topology: v5e:2x2
jax: 0.10.0
libtpu: 0.0.40
codegen_flags: <defaults>
</compile_context>

<pallas_src>
import functools

import numpy as np
import jax
import jax.numpy as jnp
from jax.experimental import pallas as pl
from jax.experimental.pallas import tpu as pltpu


def _round_up(x, m):
    return (x + m - 1) // m * m


def _pick_images_per_step(n, row_channels, ccat, max_rows=128):
    """How many images to fold onto the channel/sublane axis per grid step."""
    cands = []
    for b in range(1, n + 1):
        if n % b:
            continue
        if b != n and b * ccat > max_rows:
            continue
        if b != n and any((b * c) % 8 for c in row_channels):
            continue
        cands.append(b)
    if not cands:
        return n
    multi = [b for b in cands if n // b >= 2]   # keep >=2 parallel steps (v7x)
    return max(multi) if multi else max(cands)


def _build_up_scatter(H1, W1, H2, W2, pad_t, pad_l, W2P, width):
    """0/1 matrices scattering the 4 ConvTranspose taps into the padded flat
    (H2+2)x(W2+2) layout (interleave + F.pad + conv zero-border, all as one
    constant matmul).  Also returns the bias landing mask."""
    s_up = np.zeros((4, H1 * W1, width), np.float32)
    for di in range(2):
        for dj in range(2):
            d = di * 2 + dj
            for i in range(H1):
                for j in range(W1):
                    y = 2 * i + di + pad_t
                    x = 2 * j + dj + pad_l
                    if 0 <= y < H2 and 0 <= x < W2:
                        s_up[d, i * W1 + j, (y + 1) * W2P + (x + 1)] = 1.0
    m_up = s_up.sum(axis=(0, 1))   # 1 where the upsampled map lands
    return s_up, m_up


# --------------------------------------------------------------------------- #
# Fused kernel: one grid step == B images (batch folded onto the row axis).
# Activations: rows = (image, channel), lanes = per-image flattened padded
# spatial (128-aligned widths).
# --------------------------------------------------------------------------- #
def _up_fused_kernel(x1_ref, x2p_ref, wup_ref, sup_ref, upbias_ref,
                     w1a_ref, w1b_ref, shift1_ref, mask_ref,
                     w2_ref, shift2_ref,
                     o_ref, upbuf_ref, midbuf_ref,
                     *, bcup, bc1, bc2, lacc, sw, mid_off, tap_offs):
    f32, bf16 = jnp.float32, jnp.bfloat16

    # ---- ConvTranspose2d(k=2,s=2): one merged projection dot (4 taps stacked
    # along M, block-diagonal over images), then 4 constant 0/1 scatter dots
    # that place the taps in the padded fine-resolution layout.
    proj = jnp.dot(wup_ref[...], x1_ref[...],
                   preferred_element_type=f32).astype(bf16)      # (4*BCup, H1W1)
    xup_a = jnp.dot(proj[0 * bcup:1 * bcup], sup_ref[0], preferred_element_type=f32)
    xup_a = xup_a + jnp.dot(proj[1 * bcup:2 * bcup], sup_ref[1],
                            preferred_element_type=f32)
    xup_b = jnp.dot(proj[2 * bcup:3 * bcup], sup_ref[2], preferred_element_type=f32)
    xup_b = xup_b + jnp.dot(proj[3 * bcup:4 * bcup], sup_ref[3],
                            preferred_element_type=f32)
    xup = xup_a + xup_b + upbias_ref[...]                        # (BCup, LACC)

    upbuf_ref[:, 0:lacc] = xup.astype(bf16)                      # aligned store
    upbuf_ref[:, lacc:sw] = jnp.zeros((bcup, sw - lacc), bf16)   # keep tail clean

    # ---- Conv3x3(pad=1)+BN+ReLU #1: 9 shifted tap slices taken from refs,
    # two independent accumulators (skip path / upsampled path).
    acc_a = jnp.zeros((bc1, lacc), f32)
    acc_b = jnp.zeros((bc1, lacc), f32)
    for t, off in enumerate(tap_offs):
        acc_a = acc_a + jnp.dot(w1a_ref[t], x2p_ref[:, off:off + lacc],
                                preferred_element_type=f32)
        acc_b = acc_b + jnp.dot(w1b_ref[t], upbuf_ref[:, off:off + lacc],
                                preferred_element_type=f32)
    y1 = jnp.maximum(acc_a + acc_b + shift1_ref[...], 0.0)       # (BC1, LACC)

    # ---- re-embed conv1's output with a fresh zero border for conv2:
    # lane mask (drops the row-wrap columns) + one static-offset store into a
    # zero-initialised VMEM scratch.  (Replaces the old s_mid scatter matmul.)
    midbuf_ref[...] = jnp.zeros((bc1, sw), bf16)
    midbuf_ref[:, mid_off:mid_off + lacc] = (y1 * mask_ref[...]).astype(bf16)

    # ---- Conv3x3(pad=1)+BN+ReLU #2 (two independent accumulators).
    acc2_a = jnp.zeros((bc2, lacc), f32)
    acc2_b = jnp.zeros((bc2, lacc), f32)
    for t, off in enumerate(tap_offs):
        part = jnp.dot(w2_ref[t], midbuf_ref[:, off:off + lacc],
                       preferred_element_type=f32)
        if t % 2 == 0:
            acc2_a = acc2_a + part
        else:
            acc2_b = acc2_b + part
    o_ref[...] = jnp.maximum(acc2_a + acc2_b + shift2_ref[...], 0.0)


# --------------------------------------------------------------------------- #
# Wrapper: cheap host-side padding/reshapes + weight folding, one pallas_call.
# --------------------------------------------------------------------------- #
def up_forward(params, x1_nchw, x2_nchw, *, eps=1e-5, images_per_step=None):
    """Forward of `Up` (NCHW in / NCHW out), fused in one pallas_call."""
    N, Cin, H1, W1 = x1_nchw.shape
    Nb, Cin2, H2, W2 = x2_nchw.shape
    assert Nb == N
    Cup = params["up_w"].shape[1]
    C1 = params["c1_w"].shape[0]
    C2 = params["c2_w"].shape[0]
    Ccat = Cin2 + Cup
    assert params["c1_w"].shape[1] == Ccat

    diffY = H2 - 2 * H1
    diffX = W2 - 2 * W1
    # Review correctness concern: only F.pad with non-negative padding is
    # supported (the usual U-Net case); cropping is not.
    assert diffY >= 0 and diffX >= 0, "Up: x2 must be >= 2*x1 spatially"
    pad_t, pad_l = diffY // 2, diffX // 2

    W2P = W2 + 2                        # padded row width
    LVALID = H2 * W2P                   # lanes carrying output rows (+wrap cols)
    LACC = _round_up((H2 + 1) * W2P, 128)     # 128-aligned accumulator width
    TAP_OFFS = tuple(ky * W2P + kx for ky in range(3) for kx in range(3))
    MID_OFF = W2P + 1
    SW = _round_up(max(TAP_OFFS) + LACC, 128)  # padded-activation scratch width
    assert SW >= (H2 + 2) * W2P

    B = images_per_step or _pick_images_per_step(N, (Cin, Cin2, C2), Ccat)
    assert N % B == 0
    grid = (N // B,)

    bf16, f32 = jnp.bfloat16, jnp.float32
    eyeB = np.eye(B, dtype=np.float32)

    def bdiag(taps):                    # (T, O, I) -> (T, B*O, B*I) block-diag
        T, O, I = taps.shape
        return jnp.einsum("toi,ab->taobi", taps, eyeB).reshape(T, B * O, B * I)

    # ---- constant 0/1 scatter for the transpose-conv + masks (trace-time np).
    s_up_np, m_up_np = _build_up_scatter(H1, W1, H2, W2, pad_t, pad_l, W2P, LACC)
    col_mask_np = np.zeros((1, LACC), np.float32)
    ls = np.arange(LVALID)
    col_mask_np[0, ls[(ls % W2P) < W2]] = 1.0

    # ---- host-side weight prep (tiny): transpose-conv taps, BN folding.
    wup_taps = jnp.transpose(params["up_w"], (2, 3, 1, 0)).reshape(4, Cup, Cin)
    wup_all = bdiag(wup_taps).reshape(4 * B * Cup, B * Cin).astype(bf16)
    up_bias = jnp.tile(params["up_b"][:, None] * jnp.asarray(m_up_np)[None, :],
                       (B, 1)).astype(f32)

    scale1 = params["bn1_g"] / jnp.sqrt(params["bn1_v"] + eps)
    shift1 = params["bn1_b"] + (params["c1_b"] - params["bn1_m"]) * scale1
    w1 = params["c1_w"] * scale1[:, None, None, None]
    w1_taps = jnp.transpose(w1, (2, 3, 0, 1)).reshape(9, C1, Ccat)
    w1a = bdiag(w1_taps[:, :, :Cin2]).astype(bf16)    # acts on the skip (x2)
    w1b = bdiag(w1_taps[:, :, Cin2:]).astype(bf16)    # acts on the upsampled x1
    shift1_b = jnp.tile(shift1[:, None], (B, 1)).astype(f32)

    scale2 = params["bn2_g"] / jnp.sqrt(params["bn2_v"] + eps)
    shift2 = params["bn2_b"] + (params["c2_b"] - params["bn2_m"]) * scale2
    w2 = params["c2_w"] * scale2[:, None, None, None]
    w2_taps = bdiag(jnp.transpose(w2, (2, 3, 0, 1)).reshape(9, C2, C1)).astype(bf16)
    shift2_b = jnp.tile(shift2[:, None], (B, 1)).astype(f32)

    # ---- inputs: contiguous reshapes + a few-KB zero pad of x2 into the
    # (H2+2)x(W2+2) flat layout (replaces the old s_x2 scatter matmul).
    x1_rows = x1_nchw.reshape(N * Cin, H1 * W1).astype(bf16)
    x2p = jnp.pad(x2_nchw, ((0, 0), (0, 0), (1, 1), (1, 1)))
    x2p = x2p.reshape(N * Cin2, (H2 + 2) * W2P)
    x2p = jnp.pad(x2p, ((0, 0), (0, SW - (H2 + 2) * W2P))).astype(bf16)

    kernel = functools.partial(
        _up_fused_kernel, bcup=B * Cup, bc1=B * C1, bc2=B * C2,
        lacc=LACC, sw=SW, mid_off=MID_OFF, tap_offs=TAP_OFFS)

    out = pl.pallas_call(
        kernel,
        out_shape=jax.ShapeDtypeStruct((N * C2, LACC), jnp.float32),
        grid=grid,
        in_specs=[
            pl.BlockSpec((B * Cin, H1 * W1), lambda g: (g, 0)),        # x1
            pl.BlockSpec((B * Cin2, SW), lambda g: (g, 0)),            # x2 (padded)
            pl.BlockSpec((4 * B * Cup, B * Cin), lambda g: (0, 0)),    # Wup (merged)
            pl.BlockSpec((4, H1 * W1, LACC), lambda g: (0, 0, 0)),     # 0/1 scatter
            pl.BlockSpec((B * Cup, LACC), lambda g: (0, 0)),           # up bias map
            pl.BlockSpec((9, B * C1, B * Cin2), lambda g: (0, 0, 0)),  # conv1 (skip)
            pl.BlockSpec((9, B * C1, B * Cup), lambda g: (0, 0, 0)),   # conv1 (up)
            pl.BlockSpec((B * C1, 1), lambda g: (0, 0)),               # BN shift 1
            pl.BlockSpec((1, LACC), lambda g: (0, 0)),                 # re-embed mask
            pl.BlockSpec((9, B * C2, B * C1), lambda g: (0, 0, 0)),    # conv2
            pl.BlockSpec((B * C2, 1), lambda g: (0, 0)),               # BN shift 2
        ],
        out_specs=pl.BlockSpec((B * C2, LACC), lambda g: (g, 0)),
        scratch_shapes=[
            pltpu.VMEM((B * Cup, SW), bf16),    # padded upsampled activations
            pltpu.VMEM((B * C1, SW), bf16),     # padded conv1 output (conv2 input)
        ],
        compiler_params=pltpu.CompilerParams(
            dimension_semantics=("parallel",)),  # batch steps shard over v7x TCs
    )(x1_rows, x2p, wup_all, jnp.asarray(s_up_np).astype(bf16), up_bias,
      w1a, w1b, shift1_b, jnp.asarray(col_mask_np), w2_taps, shift2_b)

    # Drop the row-wrap columns; result is already in NCHW row order.
    out = out.reshape(N, C2, LACC)[:, :, :LVALID]
    return out.reshape(N, C2, H2, W2P)[:, :, :, :W2]


# --------------------------------------------------------------------------- #
# Parameter init (PyTorch layouts) and a pure-JAX reference for validation.
# --------------------------------------------------------------------------- #
def init_up_params(key, in_channels, out_channels):
    ks = jax.random.split(key, 6)
    cin2 = in_channels // 2
    p = {}
    p["up_w"] = 0.1 * jax.random.normal(ks[0], (in_channels, cin2, 2, 2), jnp.float32)
    p["up_b"] = 0.01 * jax.random.normal(ks[1], (cin2,), jnp.float32)
    p["c1_w"] = 0.1 * jax.random.normal(ks[2], (out_channels, in_channels, 3, 3), jnp.float32)
    p["c1_b"] = 0.01 * jax.random.normal(ks[3], (out_channels,), jnp.float32)
    p["c2_w"] = 0.1 * jax.random.normal(ks[4], (out_channels, out_channels, 3, 3), jnp.float32)
    p["c2_b"] = 0.01 * jax.random.normal(ks[5], (out_channels,), jnp.float32)
    for i in (1, 2):
        p[f"bn{i}_g"] = jnp.ones((out_channels,), jnp.float32)
        p[f"bn{i}_b"] = jnp.zeros((out_channels,), jnp.float32)
        p[f"bn{i}_m"] = jnp.zeros((out_channels,), jnp.float32)
        p[f"bn{i}_v"] = jnp.ones((out_channels,), jnp.float32)
    return p


def up_reference(params, x1, x2, eps=1e-5):
    """Pure-JAX (XLA) mirror of the PyTorch Up block, for correctness checking."""
    N, Cin, H1, W1 = x1.shape
    Cup = params["up_w"].shape[1]
    up = jnp.einsum("ncij,cokl->noikjl", x1, params["up_w"])
    up = up.reshape(N, Cup, 2 * H1, 2 * W1) + params["up_b"][None, :, None, None]
    diffY = x2.shape[2] - up.shape[2]
    diffX = x2.shape[3] - up.shape[3]
    up = jnp.pad(up, ((0, 0), (0, 0),
                      (diffY // 2, diffY - diffY // 2),
                      (diffX // 2, diffX - diffX // 2)))
    x = jnp.concatenate([x2, up], axis=1)

    def conv_bn_relu(h, w, b, g, beta, m, v):
        y = jax.lax.conv_general_dilated(
            h, w, window_strides=(1, 1), padding=((1, 1), (1, 1)),
            dimension_numbers=("NCHW", "OIHW", "NCHW"))
        y = y + b[None, :, None, None]
        y = (y - m[None, :, None, None]) / jnp.sqrt(v[None, :, None, None] + eps)
        y = y * g[None, :, None, None] + beta[None, :, None, None]
        return jnp.maximum(y, 0.0)

    x = conv_bn_relu(x, params["c1_w"], params["c1_b"], params["bn1_g"],
                     params["bn1_b"], params["bn1_m"], params["bn1_v"])
    x = conv_bn_relu(x, params["c2_w"], params["c2_b"], params["bn2_g"],
                     params["bn2_b"], params["bn2_m"], params["bn2_v"])
    return x


if __name__ == "__main__":
    # TODO(synk): only the Up block of URelNet2 is implemented as a Pallas
    # kernel; URelNet2.forward itself stops after the encoder/Down stack and
    # just returns a size, and RelNet is unused in that forward.
    in_channels, out_channels = 8, 4
    batch = 4
    key = jax.random.PRNGKey(0)
    kp, k1, k2 = jax.random.split(key, 3)

    params = init_up_params(kp, in_channels, out_channels)

    # x1: (N, in_channels, H/2, W/2); x2: (N, in_channels//2, H, W)
    x1 = jax.random.normal(k1, (batch, in_channels, 8, 8), jnp.float32)
    x2 = jax.random.normal(k2, (batch, in_channels // 2, 16, 16), jnp.float32)

    out = jax.block_until_ready(jax.jit(up_forward)(params, x1, x2))
    assert out.shape == (batch, out_channels, 16, 16), out.shape

    ref = jax.block_until_ready(jax.jit(up_reference)(params, x1, x2))
    max_err = float(jnp.max(jnp.abs(out - ref)))
    assert max_err < 2e-2, f"max abs error vs reference: {max_err}"

    print("KERNEL_OK")
</pallas_src>

<mosaic_0001>
module attributes {stable_mosaic.version = 11 : i64} {
  func.func @_up_fused_kernel(%arg0: i32, %arg1: memref<16x64xbf16, #tpu.memory_space<vmem>>, %arg2: memref<8x512xbf16, #tpu.memory_space<vmem>>, %arg3: memref<32x16xbf16, #tpu.memory_space<vmem>>, %arg4: memref<4x64x384xbf16, #tpu.memory_space<vmem>>, %arg5: memref<8x384xf32, #tpu.memory_space<vmem>>, %arg6: memref<9x8x8xbf16, #tpu.memory_space<vmem>>, %arg7: memref<9x8x8xbf16, #tpu.memory_space<vmem>>, %arg8: memref<8x1xf32, #tpu.memory_space<vmem>>, %arg9: memref<1x384xf32, #tpu.memory_space<vmem>>, %arg10: memref<9x8x8xbf16, #tpu.memory_space<vmem>>, %arg11: memref<8x1xf32, #tpu.memory_space<vmem>>, %arg12: memref<8x384xf32, #tpu.memory_space<vmem>>, %arg13: memref<8x512xbf16, #tpu.memory_space<vmem>>, %arg14: memref<8x512xbf16, #tpu.memory_space<vmem>>) attributes {dimension_semantics = [#tpu.dimension_semantics<parallel>], iteration_bounds = array<i64: 2>, scalar_prefetch = 0 : i64, scratch_operands = 2 : i64, tpu.core_type = #tpu.core_type<tc>, window_params = [{transform_indices = @transform_0, window_bounds = array<i64: 16, 64>}, {transform_indices = @transform_1, window_bounds = array<i64: 8, 512>}, {pipeline_mode = #tpu.pipeline_mode<synchronous>, transform_indices = @transform_2, window_bounds = array<i64: 32, 16>}, {pipeline_mode = #tpu.pipeline_mode<synchronous>, transform_indices = @transform_3, window_bounds = array<i64: 4, 64, 384>}, {pipeline_mode = #tpu.pipeline_mode<synchronous>, transform_indices = @transform_4, window_bounds = array<i64: 8, 384>}, {pipeline_mode = #tpu.pipeline_mode<synchronous>, transform_indices = @transform_5, window_bounds = array<i64: 9, 8, 8>}, {pipeline_mode = #tpu.pipeline_mode<synchronous>, transform_indices = @transform_6, window_bounds = array<i64: 9, 8, 8>}, {pipeline_mode = #tpu.pipeline_mode<synchronous>, transform_indices = @transform_7, window_bounds = array<i64: 8, 1>}, {pipeline_mode = #tpu.pipeline_mode<synchronous>, transform_indices = @transform_8, window_bounds = array<i64: 1, 384>}, {pipeline_mode = #tpu.pipeline_mode<synchronous>, transform_indices = @transform_9, window_bounds = array<i64: 9, 8, 8>}, {pipeline_mode = #tpu.pipeline_mode<synchronous>, transform_indices = @transform_10, window_bounds = array<i64: 8, 1>}, {transform_indices = @transform_11, window_bounds = array<i64: 8, 384>}]} {
    %c0 = arith.constant 0 : index
    %c0_0 = arith.constant 0 : index
    %0 = vector.load %arg3[%c0, %c0_0] : memref<32x16xbf16, #tpu.memory_space<vmem>>, vector<32x16xbf16>
    %c0_1 = arith.constant 0 : index
    %c0_2 = arith.constant 0 : index
    %1 = vector.load %arg1[%c0_1, %c0_2] : memref<16x64xbf16, #tpu.memory_space<vmem>>, vector<16x64xbf16>
    %cst = arith.constant dense<0.000000e+00> : vector<32x64xf32>
    %2 = tpu.matmul %0, %1, %cst {dimension_numbers = #tpu.dot_dimension_numbers<[1], [0], [0], [1], [0, 0, 1, 1], [], []>} : vector<32x16xbf16>, vector<16x64xbf16>, vector<32x64xf32> -> vector<32x64xf32>
    %3 = arith.truncf %2 : vector<32x64xf32> to vector<32x64xbf16>
    %4 = vector.extract_strided_slice %3 {offsets = [0, 0], sizes = [8, 64], strides = [1, 1]} : vector<32x64xbf16> to vector<8x64xbf16>
    %c0_3 = arith.constant 0 : index
    %c0_4 = arith.constant 0 : index
    %c0_5 = arith.constant 0 : index
    %5 = vector.load %arg4[%c0_3, %c0_4, %c0_5] : memref<4x64x384xbf16, #tpu.memory_space<vmem>>, vector<1x64x384xbf16>
    %6 = vector.shape_cast %5 : vector<1x64x384xbf16> to vector<64x384xbf16>
    %cst_6 = arith.constant dense<0.000000e+00> : vector<8x384xf32>
    %7 = tpu.matmul %4, %6, %cst_6 {dimension_numbers = #tpu.dot_dimension_numbers<[1], [0], [0], [1], [0, 0, 1, 1], [], []>} : vector<8x64xbf16>, vector<64x384xbf16>, vector<8x384xf32> -> vector<8x384xf32>
    %8 = vector.extract_strided_slice %3 {offsets = [8, 0], sizes = [8, 64], strides = [1, 1]} : vector<32x64xbf16> to vector<8x64xbf16>
    %c1 = arith.constant 1 : index
    %c0_7 = arith.constant 0 : index
    %c0_8 = arith.constant 0 : index
    %9 = vector.load %arg4[%c1, %c0_7, %c0_8] : memref<4x64x384xbf16, #tpu.memory_space<vmem>>, vector<1x64x384xbf16>
    %10 = vector.shape_cast %9 : vector<1x64x384xbf16> to vector<64x384xbf16>
    %cst_9 = arith.constant dense<0.000000e+00> : vector<8x384xf32>
    %11 = tpu.matmul %8, %10, %cst_9 {dimension_numbers = #tpu.dot_dimension_numbers<[1], [0], [0], [1], [0, 0, 1, 1], [], []>} : vector<8x64xbf16>, vector<64x384xbf16>, vector<8x384xf32> -> vector<8x384xf32>
    %12 = arith.addf %7, %11 : vector<8x384xf32>
    %13 = vector.extract_strided_slice %3 {offsets = [16, 0], sizes = [8, 64], strides = [1, 1]} : vector<32x64xbf16> to vector<8x64xbf16>
    %c2 = arith.constant 2 : index
    %c0_10 = arith.constant 0 : index
    %c0_11 = arith.constant 0 : index
    %14 = vector.load %arg4[%c2, %c0_10, %c0_11] : memref<4x64x384xbf16, #tpu.memory_space<vmem>>, vector<1x64x384xbf16>
    %15 = vector.shape_cast %14 : vector<1x64x384xbf16> to vector<64x384xbf16>
    %cst_12 = arith.constant dense<0.000000e+00> : vector<8x384xf32>
    %16 = tpu.matmul %13, %15, %cst_12 {dimension_numbers = #tpu.dot_dimension_numbers<[1], [0], [0], [1], [0, 0, 1, 1], [], []>} : vector<8x64xbf16>, vector<64x384xbf16>, vector<8x384xf32> -> vector<8x384xf32>
    %17 = vector.extract_strided_slice %3 {offsets = [24, 0], sizes = [8, 64], strides = [1, 1]} : vector<32x64xbf16> to vector<8x64xbf16>
    %c3 = arith.constant 3 : index
    %c0_13 = arith.constant 0 : index
    %c0_14 = arith.constant 0 : index
    %18 = vector.load %arg4[%c3, %c0_13, %c0_14] : memref<4x64x384xbf16, #tpu.memory_space<vmem>>, vector<1x64x384xbf16>
    %19 = vector.shape_cast %18 : vector<1x64x384xbf16> to vector<64x384xbf16>
    %cst_15 = arith.constant dense<0.000000e+00> : vector<8x384xf32>
    %20 = tpu.matmul %17, %19, %cst_15 {dimension_numbers = #tpu.dot_dimension_numbers<[1], [0], [0], [1], [0, 0, 1, 1], [], []>} : vector<8x64xbf16>, vector<64x384xbf16>, vector<8x384xf32> -> vector<8x384xf32>
    %21 = arith.addf %16, %20 : vector<8x384xf32>
    %22 = arith.addf %12, %21 : vector<8x384xf32>
    %c0_16 = arith.constant 0 : index
    %c0_17 = arith.constant 0 : index
    %23 = vector.load %arg5[%c0_16, %c0_17] : memref<8x384xf32, #tpu.memory_space<vmem>>, vector<8x384xf32>
    %24 = arith.addf %22, %23 : vector<8x384xf32>
    %25 = arith.truncf %24 : vector<8x384xf32> to vector<8x384xbf16>
    %c0_18 = arith.constant 0 : index
    %c0_19 = arith.constant 0 : index
    %26 = vector.load %arg13[%c0_18, %c0_19] : memref<8x512xbf16, #tpu.memory_space<vmem>>, vector<8x384xbf16>
    tpu.vector_store %arg13[%c0_18, %c0_19], %25 {strides = array<i32>} : memref<8x512xbf16, #tpu.memory_space<vmem>>, vector<8x384xbf16>,
    %cst_20 = arith.constant 0.000000e+00 : bf16
    %27 = vector.broadcast %cst_20 : bf16 to vector<8x128xbf16>
    %c0_21 = arith.constant 0 : index
    %c384 = arith.constant 384 : index
    %28 = vector.load %arg13[%c0_21, %c384] : memref<8x512xbf16, #tpu.memory_space<vmem>>, vector<8x128xbf16>
    tpu.vector_store %arg13[%c0_21, %c384], %27 {strides = array<i32>} : memref<8x512xbf16, #tpu.memory_space<vmem>>, vector<8x128xbf16>,
    %cst_22 = arith.constant 0.000000e+00 : f32
    %29 = vector.broadcast %cst_22 : f32 to vector<8x384xf32>
    %cst_23 = arith.constant 0.000000e+00 : f32
    %30 = vector.broadcast %cst_23 : f32 to vector<8x384xf32>
    %c0_24 = arith.constant 0 : index
    %c0_25 = arith.constant 0 : index
    %c0_26 = arith.constant 0 : index
    %31 = vector.load %arg6[%c0_24, %c0_25, %c0_26] : memref<9x8x8xbf16, #tpu.memory_space<vmem>>, vector<1x8x8xbf16>
    %32 = vector.shape_cast %31 : vector<1x8x8xbf16> to vector<8x8xbf16>
    %c0_27 = arith.constant 0 : index
    %c0_28 = arith.constant 0 : index
    %33 = vector.load %arg2[%c0_27, %c0_28] : memref<8x512xbf16, #tpu.memory_space<vmem>>, vector<8x384xbf16>
    %cst_29 = arith.constant dense<0.000000e+00> : vector<8x384xf32>
    %34 = tpu.matmul %32, %33, %cst_29 {dimension_numbers = #tpu.dot_dimension_numbers<[1], [0], [0], [1], [0, 0, 1, 1], [], []>} : vector<8x8xbf16>, vector<8x384xbf16>, vector<8x384xf32> -> vector<8x384xf32>
    %35 = arith.addf %29, %34 : vector<8x384xf32>
    %c0_30 = arith.constant 0 : index
    %c0_31 = arith.constant 0 : index
    %c0_32 = arith.constant 0 : index
    %36 = vector.load %arg7[%c0_30, %c0_31, %c0_32] : memref<9x8x8xbf16, #tpu.memory_space<vmem>>, vector<1x8x8xbf16>
    %37 = vector.shape_cast %36 : vector<1x8x8xbf16> to vector<8x8xbf16>
    %c0_33 = arith.constant 0 : index
    %c0_34 = arith.constant 0 : index
    %38 = vector.load %arg13[%c0_33, %c0_34] : memref<8x512xbf16, #tpu.memory_space<vmem>>, vector<8x384xbf16>
    %cst_35 = arith.constant dense<0.000000e+00> : vector<8x384xf32>
    %39 = tpu.matmul %37, %38, %cst_35 {dimension_numbers = #tpu.dot_dimension_numbers<[1], [0], [0], [1], [0, 0, 1, 1], [], []>} : vector<8x8xbf16>, vector<8x384xbf16>, vector<8x384xf32> -> vector<8x384xf32>
    %40 = arith.addf %30, %39 : vector<8x384xf32>
    %c1_36 = arith.constant 1 : index
    %c0_37 = arith.constant 0 : index
    %c0_38 = arith.constant 0 : index
    %41 = vector.load %arg6[%c1_36, %c0_37, %c0_38] : memref<9x8x8xbf16, #tpu.memory_space<vmem>>, vector<1x8x8xbf16>
    %42 = vector.shape_cast %41 : vector<1x8x8xbf16> to vector<8x8xbf16>
    %c0_39 = arith.constant 0 : index
    %c1_40 = arith.constant 1 : index
    %43 = vector.load %arg2[%c0_39, %c1_40] : memref<8x512xbf16, #tpu.memory_space<vmem>>, vector<8x384xbf16>
    %cst_41 = arith.constant dense<0.000000e+00> : vector<8x384xf32>
    %44 = tpu.matmul %42, %43, %cst_41 {dimension_numbers = #tpu.dot_dimension_numbers<[1], [0], [0], [1], [0, 0, 1, 1], [], []>} : vector<8x8xbf16>, vector<8x384xbf16>, vector<8x384xf32> -> vector<8x384xf32>
    %45 = arith.addf %35, %44 : vector<8x384xf32>
    %c1_42 = arith.constant 1 : index
    %c0_43 = arith.constant 0 : index
    %c0_44 = arith.constant 0 : index
    %46 = vector.load %arg7[%c1_42, %c0_43, %c0_44] : memref<9x8x8xbf16, #tpu.memory_space<vmem>>, vector<1x8x8xbf16>
    %47 = vector.shape_cast %46 : vector<1x8x8xbf16> to vector<8x8xbf16>
    %c0_45 = arith.constant 0 : index
    %c1_46 = arith.constant 1 : index
    %48 = vector.load %arg13[%c0_45, %c1_46] : memref<8x512xbf16, #tpu.memory_space<vmem>>, vector<8x384xbf16>
    %cst_47 = arith.constant dense<0.000000e+00> : vector<8x384xf32>
    %49 = tpu.matmul %47, %48, %cst_47 {dimension_numbers = #tpu.dot_dimension_numbers<[1], [0], [0], [1], [0, 0, 1, 1], [], []>} : vector<8x8xbf16>, vector<8x384xbf16>, vector<8x384xf32> -> vector<8x384xf32>
    %50 = arith.addf %40, %49 : vector<8x384xf32>
    %c2_48 = arith.constant 2 : index
    %c0_49 = arith.constant 0 : index
    %c0_50 = arith.constant 0 : index
    %51 = vector.load %arg6[%c2_48, %c0_49, %c0_50] : memref<9x8x8xbf16, #tpu.memory_space<vmem>>, vector<1x8x8xbf16>
    %52 = vector.shape_cast %51 : vector<1x8x8xbf16> to vector<8x8xbf16>
    %c0_51 = arith.constant 0 : index
    %c2_52 = arith.constant 2 : index
    %53 = vector.load %arg2[%c0_51, %c2_52] : memref<8x512xbf16, #tpu.memory_space<vmem>>, vector<8x384xbf16>
    %cst_53 = arith.constant dense<0.000000e+00> : vector<8x384xf32>
    %54 = tpu.matmul %52, %53, %cst_53 {dimension_numbers = #tpu.dot_dimension_numbers<[1], [0], [0], [1], [0, 0, 1, 1], [], []>} : vector<8x8xbf16>, vector<8x384xbf16>, vector<8x384xf32> -> vector<8x384xf32>
    %55 = arith.addf %45, %54 : vector<8x384xf32>
    %c2_54 = arith.constant 2 : index
    %c0_55 = arith.constant 0 : index
    %c0_56 = arith.constant 0 : index
    %56 = vector.load %arg7[%c2_54, %c0_55, %c0_56] : memref<9x8x8xbf16, #tpu.memory_space<vmem>>, vector<1x8x8xbf16>
    %57 = vector.shape_cast %56 : vector<1x8x8xbf16> to vector<8x8xbf16>
    %c0_57 = arith.constant 0 : index
    %c2_58 = arith.constant 2 : index
    %58 = vector.load %arg13[%c0_57, %c2_58] : memref<8x512xbf16, #tpu.memory_space<vmem>>, vector<8x384xbf16>
    %cst_59 = arith.constant dense<0.000000e+00> : vector<8x384xf32>
    %59 = tpu.matmul %57, %58, %cst_59 {dimension_numbers = #tpu.dot_dimension_numbers<[1], [0], [0], [1], [0, 0, 1, 1], [], []>} : vector<8x8xbf16>, vector<8x384xbf16>, vector<8x384xf32> -> vector<8x384xf32>
    %60 = arith.addf %50, %59 : vector<8x384xf32>
    %c3_60 = arith.constant 3 : index
    %c0_61 = arith.constant 0 : index
    %c0_62 = arith.constant 0 : index
    %61 = vector.load %arg6[%c3_60, %c0_61, %c0_62] : memref<9x8x8xbf16, #tpu.memory_space<vmem>>, vector<1x8x8xbf16>
    %62 = vector.shape_cast %61 : vector<1x8x8xbf16> to vector<8x8xbf16>
    %c0_63 = arith.constant 0 : index
    %c18 = arith.constant 18 : index
    %63 = vector.load %arg2[%c0_63, %c18] : memref<8x512xbf16, #tpu.memory_space<vmem>>, vector<8x384xbf16>
    %cst_64 = arith.constant dense<0.000000e+00> : vector<8x384xf32>
    %64 = tpu.matmul %62, %63, %cst_64 {dimension_numbers = #tpu.dot_dimension_numbers<[1], [0], [0], [1], [0, 0, 1, 1], [], []>} : vector<8x8xbf16>, vector<8x384xbf16>, vector<8x384xf32> -> vector<8x384xf32>
    %65 = arith.addf %55, %64 : vector<8x384xf32>
    %c3_65 = arith.constant 3 : index
    %c0_66 = arith.constant 0 : index
    %c0_67 = arith.constant 0 : index
    %66 = vector.load %arg7[%c3_65, %c0_66, %c0_67] : memref<9x8x8xbf16, #tpu.memory_space<vmem>>, vector<1x8x8xbf16>
    %67 = vector.shape_cast %66 : vector<1x8x8xbf16> to vector<8x8xbf16>
    %c0_68 = arith.constant 0 : index
    %c18_69 = arith.constant 18 : index
    %68 = vector.load %arg13[%c0_68, %c18_69] : memref<8x512xbf16, #tpu.memory_space<vmem>>, vector<8x384xbf16>
    %cst_70 = arith.constant dense<0.000000e+00> : vector<8x384xf32>
    %69 = tpu.matmul %67, %68, %cst_70 {dimension_numbers = #tpu.dot_dimension_numbers<[1], [0], [0], [1], [0, 0, 1, 1], [], []>} : vector<8x8xbf16>, vector<8x384xbf16>, vector<8x384xf32> -> vector<8x384xf32>
    %70 = arith.addf %60, %69 : vector<8x384xf32>
    %c4 = arith.constant 4 : index
    %c0_71 = arith.constant 0 : index
    %c0_72 = arith.constant 0 : index
    %71 = vector.load %arg6[%c4, %c0_71, %c0_72] : memref<9x8x8xbf16, #tpu.memory_space<vmem>>, vector<1x8x8xbf16>
    %72 = vector.shape_cast %71 : vector<1x8x8xbf16> to vector<8x8xbf16>
    %c0_73 = arith.constant 0 : index
    %c19 = arith.constant 19 : index
    %73 = vector.load %arg2[%c0_73, %c19] : memref<8x512xbf16, #tpu.memory_space<vmem>>, vector<8x384xbf16>
    %cst_74 = arith.constant dense<0.000000e+00> : vector<8x384xf32>
    %74 = tpu.matmul %72, %73, %cst_74 {dimension_numbers = #tpu.dot_dimension_numbers<[1], [0], [0], [1], [0, 0, 1, 1], [], []>} : vector<8x8xbf16>, vector<8x384xbf16>, vector<8x384xf32> -> vector<8x384xf32>
    %75 = arith.addf %65, %74 : vector<8x384xf32>
    %c4_75 = arith.constant 4 : index
    %c0_76 = arith.constant 0 : index
    %c0_77 = arith.constant 0 : index
    %76 = vector.load %arg7[%c4_75, %c0_76, %c0_77] : memref<9x8x8xbf16, #tpu.memory_space<vmem>>, vector<1x8x8xbf16>
    %77 = vector.shape_cast %76 : vector<1x8x8xbf16> to vector<8x8xbf16>
    %c0_78 = arith.constant 0 : index
    %c19_79 = arith.constant 19 : index
    %78 = vector.load %arg13[%c0_78, %c19_79] : memref<8x512xbf16, #tpu.memory_space<vmem>>, vector<8x384xbf16>
    %cst_80 = arith.constant dense<0.000000e+00> : vector<8x384xf32>
    %79 = tpu.matmul %77, %78, %cst_80 {dimension_numbers = #tpu.dot_dimension_numbers<[1], [0], [0], [1], [0, 0, 1, 1], [], []>} : vector<8x8xbf16>, vector<8x384xbf16>, vector<8x384xf32> -> vector<8x384xf32>
    %80 = arith.addf %70, %79 : vector<8x384xf32>
    %c5 = arith.constant 5 : index
    %c0_81 = arith.constant 0 : index
    %c0_82 = arith.constant 0 : index
    %81 = vector.load %arg6[%c5, %c0_81, %c0_82] : memref<9x8x8xbf16, #tpu.memory_space<vmem>>, vector<1x8x8xbf16>
    %82 = vector.shape_cast %81 : vector<1x8x8xbf16> to vector<8x8xbf16>
    %c0_83 = arith.constant 0 : index
    %c20 = arith.constant 20 : index
    %83 = vector.load %arg2[%c0_83, %c20] : memref<8x512xbf16, #tpu.memory_space<vmem>>, vector<8x384xbf16>
    %cst_84 = arith.constant dense<0.000000e+00> : vector<8x384xf32>
    %84 = tpu.matmul %82, %83, %cst_84 {dimension_numbers = #tpu.dot_dimension_numbers<[1], [0], [0], [1], [0, 0, 1, 1], [], []>} : vector<8x8xbf16>, vector<8x384xbf16>, vector<8x384xf32> -> vector<8x384xf32>
    %85 = arith.addf %75, %84 : vector<8x384xf32>
    %c5_85 = arith.constant 5 : index
    %c0_86 = arith.constant 0 : index
    %c0_87 = arith.constant 0 : index
    %86 = vector.load %arg7[%c5_85, %c0_86, %c0_87] : memref<9x8x8xbf16, #tpu.memory_space<vmem>>, vector<1x8x8xbf16>
    %87 = vector.shape_cast %86 : vector<1x8x8xbf16> to vector<8x8xbf16>
    %c0_88 = arith.constant 0 : index
    %c20_89 = arith.constant 20 : index
    %88 = vector.load %arg13[%c0_88, %c20_89] : memref<8x512xbf16, #tpu.memory_space<vmem>>, vector<8x384xbf16>
    %cst_90 = arith.constant dense<0.000000e+00> : vector<8x384xf32>
    %89 = tpu.matmul %87, %88, %cst_90 {dimension_numbers = #tpu.dot_dimension_numbers<[1], [0], [0], [1], [0, 0, 1, 1], [], []>} : vector<8x8xbf16>, vector<8x384xbf16>, vector<8x384xf32> -> vector<8x384xf32>
    %90 = arith.addf %80, %89 : vector<8x384xf32>
    %c6 = arith.constant 6 : index
    %c0_91 = arith.constant 0 : index
    %c0_92 = arith.constant 0 : index
    %91 = vector.load %arg6[%c6, %c0_91, %c0_92] : memref<9x8x8xbf16, #tpu.memory_space<vmem>>, vector<1x8x8xbf16>
    %92 = vector.shape_cast %91 : vector<1x8x8xbf16> to vector<8x8xbf16>
    %c0_93 = arith.constant 0 : index
    %c36 = arith.constant 36 : index
    %93 = vector.load %arg2[%c0_93, %c36] : memref<8x512xbf16, #tpu.memory_space<vmem>>, vector<8x384xbf16>
    %cst_94 = arith.constant dense<0.000000e+00> : vector<8x384xf32>
    %94 = tpu.matmul %92, %93, %cst_94 {dimension_numbers = #tpu.dot_dimension_numbers<[1], [0], [0], [1], [0, 0, 1, 1], [], []>} : vector<8x8xbf16>, vector<8x384xbf16>, vector<8x384xf32> -> vector<8x384xf32>
    %95 = arith.addf %85, %94 : vector<8x384xf32>
    %c6_95 = arith.constant 6 : index
    %c0_96 = arith.constant 0 : index
    %c0_97 = arith.constant 0 : index
    %96 = vector.load %arg7[%c6_95, %c0_96, %c0_97] : memref<9x8x8xbf16, #tpu.memory_space<vmem>>, vector<1x8x8xbf16>
    %97 = vector.shape_cast %96 : vector<1x8x8xbf16> to vector<8x8xbf16>
    %c0_98 = arith.constant 0 : index
    %c36_99 = arith.constant 36 : index
    %98 = vector.load %arg13[%c0_98, %c36_99] : memref<8x512xbf16, #tpu.memory_space<vmem>>, vector<8x384xbf16>
    %cst_100 = arith.constant dense<0.000000e+00> : vector<8x384xf32>
    %99 = tpu.matmul %97, %98, %cst_100 {dimension_numbers = #tpu.dot_dimension_numbers<[1], [0], [0], [1], [0, 0, 1, 1], [], []>} : vector<8x8xbf16>, vector<8x384xbf16>, vector<8x384xf32> -> vector<8x384xf32>
    %100 = arith.addf %90, %99 : vector<8x384xf32>
    %c7 = arith.constant 7 : index
    %c0_101 = arith.constant 0 : index
    %c0_102 = arith.constant 0 : index
    %101 = vector.load %arg6[%c7, %c0_101, %c0_102] : memref<9x8x8xbf16, #tpu.memory_space<vmem>>, vector<1x8x8xbf16>
    %102 = vector.shape_cast %101 : vector<1x8x8xbf16> to vector<8x8xbf16>
    %c0_103 = arith.constant 0 : index
    %c37 = arith.constant 37 : index
    %103 = vector.load %arg2[%c0_103, %c37] : memref<8x512xbf16, #tpu.memory_space<vmem>>, vector<8x384xbf16>
    %cst_104 = arith.constant dense<0.000000e+00> : vector<8x384xf32>
    %104 = tpu.matmul %102, %103, %cst_104 {dimension_numbers = #tpu.dot_dimension_numbers<[1], [0], [0], [1], [0, 0, 1, 1], [], []>} : vector<8x8xbf16>, vector<8x384xbf16>, vector<8x384xf32> -> vector<8x384xf32>
    %105 = arith.addf %95, %104 : vector<8x384xf32>
    %c7_105 = arith.constant 7 : index
    %c0_106 = arith.constant 0 : index
    %c0_107 = arith.constant 0 : index
    %106 = vector.load %arg7[%c7_105, %c0_106, %c0_107] : memref<9x8x8xbf16, #tpu.memory_space<vmem>>, vector<1x8x8xbf16>
    %107 = vector.shape_cast %106 : vector<1x8x8xbf16> to vector<8x8xbf16>
    %c0_108 = arith.constant 0 : index
    %c37_109 = arith.constant 37 : index
    %108 = vector.load %arg13[%c0_108, %c37_109] : memref<8x512xbf16, #tpu.memory_space<vmem>>, vector<8x384xbf16>
    %cst_110 = arith.constant dense<0.000000e+00> : vector<8x384xf32>
    %109 = tpu.matmul %107, %108, %cst_110 {dimension_numbers = #tpu.dot_dimension_numbers<[1], [0], [0], [1], [0, 0, 1, 1], [], []>} : vector<8x8xbf16>, vector<8x384xbf16>, vector<8x384xf32> -> vector<8x384xf32>
    %110 = arith.addf %100, %109 : vector<8x384xf32>
    %c8 = arith.constant 8 : index
    %c0_111 = arith.constant 0 : index
    %c0_112 = arith.constant 0 : index
    %111 = vector.load %arg6[%c8, %c0_111, %c0_112] : memref<9x8x8xbf16, #tpu.memory_space<vmem>>, vector<1x8x8xbf16>
    %112 = vector.shape_cast %111 : vector<1x8x8xbf16> to vector<8x8xbf16>
    %c0_113 = arith.constant 0 : index
    %c38 = arith.constant 38 : index
    %113 = vector.load %arg2[%c0_113, %c38] : memref<8x512xbf16, #tpu.memory_space<vmem>>, vector<8x384xbf16>
    %cst_114 = arith.constant dense<0.000000e+00> : vector<8x384xf32>
    %114 = tpu.matmul %112, %113, %cst_114 {dimension_numbers = #tpu.dot_dimension_numbers<[1], [0], [0], [1], [0, 0, 1, 1], [], []>} : vector<8x8xbf16>, vector<8x384xbf16>, vector<8x384xf32> -> vector<8x384xf32>
    %115 = arith.addf %105, %114 : vector<8x384xf32>
    %c8_115 = arith.constant 8 : index
    %c0_116 = arith.constant 0 : index
    %c0_117 = arith.constant 0 : index
    %116 = vector.load %arg7[%c8_115, %c0_116, %c0_117] : memref<9x8x8xbf16, #tpu.memory_space<vmem>>, vector<1x8x8xbf16>
    %117 = vector.shape_cast %116 : vector<1x8x8xbf16> to vector<8x8xbf16>
    %c0_118 = arith.constant 0 : index
    %c38_119 = arith.constant 38 : index
    %118 = vector.load %arg13[%c0_118, %c38_119] : memref<8x512xbf16, #tpu.memory_space<vmem>>, vector<8x384xbf16>
    %cst_120 = arith.constant dense<0.000000e+00> : vector<8x384xf32>
    %119 = tpu.matmul %117, %118, %cst_120 {dimension_numbers = #tpu.dot_dimension_numbers<[1], [0], [0], [1], [0, 0, 1, 1], [], []>} : vector<8x8xbf16>, vector<8x384xbf16>, vector<8x384xf32> -> vector<8x384xf32>
    %120 = arith.addf %110, %119 : vector<8x384xf32>
    %121 = arith.addf %115, %120 : vector<8x384xf32>
    %c0_121 = arith.constant 0 : index
    %c0_122 = arith.constant 0 : index
    %122 = vector.load %arg8[%c0_121, %c0_122] : memref<8x1xf32, #tpu.memory_space<vmem>>, vector<8x1xf32>
    %123 = vector.broadcast %122 : vector<8x1xf32> to vector<8x384xf32>
    %124 = arith.addf %121, %123 : vector<8x384xf32>
    %cst_123 = arith.constant 0.000000e+00 : f32
    %125 = vector.broadcast %cst_123 : f32 to vector<8x384xf32>
    %126 = arith.maximumf %124, %125 : vector<8x384xf32>
    %cst_124 = arith.constant 0.000000e+00 : bf16
    %127 = vector.broadcast %cst_124 : bf16 to vector<8x512xbf16>
    %c0_125 = arith.constant 0 : index
    %c0_126 = arith.constant 0 : index
    %128 = vector.load %arg14[%c0_125, %c0_126] : memref<8x512xbf16, #tpu.memory_space<vmem>>, vector<8x512xbf16>
    tpu.vector_store %arg14[%c0_125, %c0_126], %127 {strides = array<i32>} : memref<8x512xbf16, #tpu.memory_space<vmem>>, vector<8x512xbf16>,
    %c0_127 = arith.constant 0 : index
    %c0_128 = arith.constant 0 : index
    %129 = vector.load %arg9[%c0_127, %c0_128] : memref<1x384xf32, #tpu.memory_space<vmem>>, vector<1x384xf32>
    %130 = vector.broadcast %129 : vector<1x384xf32> to vector<8x384xf32>
    %131 = arith.mulf %126, %130 : vector<8x384xf32>
    %132 = arith.truncf %131 : vector<8x384xf32> to vector<8x384xbf16>
    %c0_129 = arith.constant 0 : index
    %c19_130 = arith.constant 19 : index
    %133 = vector.load %arg14[%c0_129, %c19_130] : memref<8x512xbf16, #tpu.memory_space<vmem>>, vector<8x384xbf16>
    tpu.vector_store %arg14[%c0_129, %c19_130], %132 {strides = array<i32>} : memref<8x512xbf16, #tpu.memory_space<vmem>>, vector<8x384xbf16>,
    %cst_131 = arith.constant 0.000000e+00 : f32
    %134 = vector.broadcast %cst_131 : f32 to vector<8x384xf32>
    %cst_132 = arith.constant 0.000000e+00 : f32
    %135 = vector.broadcast %cst_132 : f32 to vector<8x384xf32>
    %c0_133 = arith.constant 0 : index
    %c0_134 = arith.constant 0 : index
    %c0_135 = arith.constant 0 : index
    %136 = vector.load %arg10[%c0_133, %c0_134, %c0_135] : memref<9x8x8xbf16, #tpu.memory_space<vmem>>, vector<1x8x8xbf16>
    %137 = vector.shape_cast %136 : vector<1x8x8xbf16> to vector<8x8xbf16>
    %c0_136 = arith.constant 0 : index
    %c0_137 = arith.constant 0 : index
    %138 = vector.load %arg14[%c0_136, %c0_137] : memref<8x512xbf16, #tpu.memory_space<vmem>>, vector<8x384xbf16>
    %cst_138 = arith.constant dense<0.000000e+00> : vector<8x384xf32>
    %139 = tpu.matmul %137, %138, %cst_138 {dimension_numbers = #tpu.dot_dimension_numbers<[1], [0], [0], [1], [0, 0, 1, 1], [], []>} : vector<8x8xbf16>, vector<8x384xbf16>, vector<8x384xf32> -> vector<8x384xf32>
    %140 = arith.addf %134, %139 : vector<8x384xf32>
    %c1_139 = arith.constant 1 : index
    %c0_140 = arith.constant 0 : index
    %c0_141 = arith.constant 0 : index
    %141 = vector.load %arg10[%c1_139, %c0_140, %c0_141] : memref<9x8x8xbf16, #tpu.memory_space<vmem>>, vector<1x8x8xbf16>
    %142 = vector.shape_cast %141 : vector<1x8x8xbf16> to vector<8x8xbf16>
    %c0_142 = arith.constant 0 : index
    %c1_143 = arith.constant 1 : index
    %143 = vector.load %arg14[%c0_142, %c1_143] : memref<8x512xbf16, #tpu.memory_space<vmem>>, vector<8x384xbf16>
    %cst_144 = arith.constant dense<0.000000e+00> : vector<8x384xf32>
    %144 = tpu.matmul %142, %143, %cst_144 {dimension_numbers = #tpu.dot_dimension_numbers<[1], [0], [0], [1], [0, 0, 1, 1], [], []>} : vector<8x8xbf16>, vector<8x384xbf16>, vector<8x384xf32> -> vector<8x384xf32>
    %145 = arith.addf %135, %144 : vector<8x384xf32>
    %c2_145 = arith.constant 2 : index
    %c0_146 = arith.constant 0 : index
    %c0_147 = arith.constant 0 : index
    %146 = vector.load %arg10[%c2_145, %c0_146, %c0_147] : memref<9x8x8xbf16, #tpu.memory_space<vmem>>, vector<1x8x8xbf16>
    %147 = vector.shape_cast %146 : vector<1x8x8xbf16> to vector<8x8xbf16>
    %c0_148 = arith.constant 0 : index
    %c2_149 = arith.constant 2 : index
    %148 = vector.load %arg14[%c0_148, %c2_149] : memref<8x512xbf16, #tpu.memory_space<vmem>>, vector<8x384xbf16>
    %cst_150 = arith.constant dense<0.000000e+00> : vector<8x384xf32>
    %149 = tpu.matmul %147, %148, %cst_150 {dimension_numbers = #tpu.dot_dimension_numbers<[1], [0], [0], [1], [0, 0, 1, 1], [], []>} : vector<8x8xbf16>, vector<8x384xbf16>, vector<8x384xf32> -> vector<8x384xf32>
    %150 = arith.addf %140, %149 : vector<8x384xf32>
    %c3_151 = arith.constant 3 : index
    %c0_152 = arith.constant 0 : index
    %c0_153 = arith.constant 0 : index
    %151 = vector.load %arg10[%c3_151, %c0_152, %c0_153] : memref<9x8x8xbf16, #tpu.memory_space<vmem>>, vector<1x8x8xbf16>
    %152 = vector.shape_cast %151 : vector<1x8x8xbf16> to vector<8x8xbf16>
    %c0_154 = arith.constant 0 : index
    %c18_155 = arith.constant 18 : index
    %153 = vector.load %arg14[%c0_154, %c18_155] : memref<8x512xbf16, #tpu.memory_space<vmem>>, vector<8x384xbf16>
    %cst_156 = arith.constant dense<0.000000e+00> : vector<8x384xf32>
    %154 = tpu.matmul %152, %153, %cst_156 {dimension_numbers = #tpu.dot_dimension_numbers<[1], [0], [0], [1], [0, 0, 1, 1], [], []>} : vector<8x8xbf16>, vector<8x384xbf16>, vector<8x384xf32> -> vector<8x384xf32>
    %155 = arith.addf %145, %154 : vector<8x384xf32>
    %c4_157 = arith.constant 4 : index
    %c0_158 = arith.constant 0 : index
    %c0_159 = arith.constant 0 : index
    %156 = vector.load %arg10[%c4_157, %c0_158, %c0_159] : memref<9x8x8xbf16, #tpu.memory_space<vmem>>, vector<1x8x8xbf16>
    %157 = vector.shape_cast %156 : vector<1x8x8xbf16> to vector<8x8xbf16>
    %c0_160 = arith.constant 0 : index
    %c19_161 = arith.constant 19 : index
    %158 = vector.load %arg14[%c0_160, %c19_161] : memref<8x512xbf16, #tpu.memory_space<vmem>>, vector<8x384xbf16>
    %cst_162 = arith.constant dense<0.000000e+00> : vector<8x384xf32>
    %159 = tpu.matmul %157, %158, %cst_162 {dimension_numbers = #tpu.dot_dimension_numbers<[1], [0], [0], [1], [0, 0, 1, 1], [], []>} : vector<8x8xbf16>, vector<8x384xbf16>, vector<8x384xf32> -> vector<8x384xf32>
    %160 = arith.addf %150, %159 : vector<8x384xf32>
    %c5_163 = arith.constant 5 : index
    %c0_164 = arith.constant 0 : index
    %c0_165 = arith.constant 0 : index
    %161 = vector.load %arg10[%c5_163, %c0_164, %c0_165] : memref<9x8x8xbf16, #tpu.memory_space<vmem>>, vector<1x8x8xbf16>
    %162 = vector.shape_cast %161 : vector<1x8x8xbf16> to vector<8x8xbf16>
    %c0_166 = arith.constant 0 : index
    %c20_167 = arith.constant 20 : index
    %163 = vector.load %arg14[%c0_166, %c20_167] : memref<8x512xbf16, #tpu.memory_space<vmem>>, vector<8x384xbf16>
    %cst_168 = arith.constant dense<0.000000e+00> : vector<8x384xf32>
    %164 = tpu.matmul %162, %163, %cst_168 {dimension_numbers = #tpu.dot_dimension_numbers<[1], [0], [0], [1], [0, 0, 1, 1], [], []>} : vector<8x8xbf16>, vector<8x384xbf16>, vector<8x384xf32> -> vector<8x384xf32>
    %165 = arith.addf %155, %164 : vector<8x384xf32>
    %c6_169 = arith.constant 6 : index
    %c0_170 = arith.constant 0 : index
    %c0_171 = arith.constant 0 : index
    %166 = vector.load %arg10[%c6_169, %c0_170, %c0_171] : memref<9x8x8xbf16, #tpu.memory_space<vmem>>, vector<1x8x8xbf16>
    %167 = vector.shape_cast %166 : vector<1x8x8xbf16> to vector<8x8xbf16>
    %c0_172 = arith.constant 0 : index
    %c36_173 = arith.constant 36 : index
    %168 = vector.load %arg14[%c0_172, %c36_173] : memref<8x512xbf16, #tpu.memory_space<vmem>>, vector<8x384xbf16>
    %cst_174 = arith.constant dense<0.000000e+00> : vector<8x384xf32>
    %169 = tpu.matmul %167, %168, %cst_174 {dimension_numbers = #tpu.dot_dimension_numbers<[1], [0], [0], [1], [0, 0, 1, 1], [], []>} : vector<8x8xbf16>, vector<8x384xbf16>, vector<8x384xf32> -> vector<8x384xf32>
    %170 = arith.addf %160, %169 : vector<8x384xf32>
    %c7_175 = arith.constant 7 : index
    %c0_176 = arith.constant 0 : index
    %c0_177 = arith.constant 0 : index
    %171 = vector.load %arg10[%c7_175, %c0_176, %c0_177] : memref<9x8x8xbf16, #tpu.memory_space<vmem>>, vector<1x8x8xbf16>
    %172 = vector.shape_cast %171 : vector<1x8x8xbf16> to vector<8x8xbf16>
    %c0_178 = arith.constant 0 : index
    %c37_179 = arith.constant 37 : index
    %173 = vector.load %arg14[%c0_178, %c37_179] : memref<8x512xbf16, #tpu.memory_space<vmem>>, vector<8x384xbf16>
    %cst_180 = arith.constant dense<0.000000e+00> : vector<8x384xf32>
    %174 = tpu.matmul %172, %173, %cst_180 {dimension_numbers = #tpu.dot_dimension_numbers<[1], [0], [0], [1], [0, 0, 1, 1], [], []>} : vector<8x8xbf16>, vector<8x384xbf16>, vector<8x384xf32> -> vector<8x384xf32>
    %175 = arith.addf %165, %174 : vector<8x384xf32>
    %c8_181 = arith.constant 8 : index
    %c0_182 = arith.constant 0 : index
    %c0_183 = arith.constant 0 : index
    %176 = vector.load %arg10[%c8_181, %c0_182, %c0_183] : memref<9x8x8xbf16, #tpu.memory_space<vmem>>, vector<1x8x8xbf16>
    %177 = vector.shape_cast %176 : vector<1x8x8xbf16> to vector<8x8xbf16>
    %c0_184 = arith.constant 0 : index
    %c38_185 = arith.constant 38 : index
    %178 = vector.load %arg14[%c0_184, %c38_185] : memref<8x512xbf16, #tpu.memory_space<vmem>>, vector<8x384xbf16>
    %cst_186 = arith.constant dense<0.000000e+00> : vector<8x384xf32>
    %179 = tpu.matmul %177, %178, %cst_186 {dimension_numbers = #tpu.dot_dimension_numbers<[1], [0], [0], [1], [0, 0, 1, 1], [], []>} : vector<8x8xbf16>, vector<8x384xbf16>, vector<8x384xf32> -> vector<8x384xf32>
    %180 = arith.addf %170, %179 : vector<8x384xf32>
    %181 = arith.addf %180, %175 : vector<8x384xf32>
    %c0_187 = arith.constant 0 : index
    %c0_188 = arith.constant 0 : index
    %182 = vector.load %arg11[%c0_187, %c0_188] : memref<8x1xf32, #tpu.memory_space<vmem>>, vector<8x1xf32>
    %183 = vector.broadcast %182 : vector<8x1xf32> to vector<8x384xf32>
    %184 = arith.addf %181, %183 : vector<8x384xf32>
    %cst_189 = arith.constant 0.000000e+00 : f32
    %185 = vector.broadcast %cst_189 : f32 to vector<8x384xf32>
    %186 = arith.maximumf %184, %185 : vector<8x384xf32>
    %c0_190 = arith.constant 0 : index
    %c0_191 = arith.constant 0 : index
    %187 = vector.load %arg12[%c0_190, %c0_191] : memref<8x384xf32, #tpu.memory_space<vmem>>, vector<8x384xf32>
    tpu.vector_store %arg12[%c0_190, %c0_191], %186 {strides = array<i32>} : memref<8x384xf32, #tpu.memory_space<vmem>>, vector<8x384xf32>,
    return
  }
  func.func @transform_0(%arg0: i32) -> (i32, i32) {
    %c0_i32 = arith.constant 0 : i32
    %c0_i32_0 = arith.constant 0 : i32
    return %arg0, %c0_i32 : i32, i32
  }
  func.func @transform_1(%arg0: i32) -> (i32, i32) {
    %c0_i32 = arith.constant 0 : i32
    %c0_i32_0 = arith.constant 0 : i32
    return %arg0, %c0_i32 : i32, i32
  }
  func.func @transform_2(%arg0: i32) -> (i32, i32) {
    %c0_i32 = arith.constant 0 : i32
    %c0_i32_0 = arith.constant 0 : i32
    %c0_i32_1 = arith.constant 0 : i32
    return %c0_i32, %c0_i32_0 : i32, i32
  }
  func.func @transform_3(%arg0: i32) -> (i32, i32, i32) {
    %c0_i32 = arith.constant 0 : i32
    %c0_i32_0 = arith.constant 0 : i32
    %c0_i32_1 = arith.constant 0 : i32
    %c0_i32_2 = arith.constant 0 : i32
    return %c0_i32, %c0_i32_0, %c0_i32_1 : i32, i32, i32
  }
  func.func @transform_4(%arg0: i32) -> (i32, i32) {
    %c0_i32 = arith.constant 0 : i32
    %c0_i32_0 = arith.constant 0 : i32
    %c0_i32_1 = arith.constant 0 : i32
    return %c0_i32, %c0_i32_0 : i32, i32
  }
  func.func @transform_5(%arg0: i32) -> (i32, i32, i32) {
    %c0_i32 = arith.constant 0 : i32
    %c0_i32_0 = arith.constant 0 : i32
    %c0_i32_1 = arith.constant 0 : i32
    %c0_i32_2 = arith.constant 0 : i32
    return %c0_i32, %c0_i32_0, %c0_i32_1 : i32, i32, i32
  }
  func.func @transform_6(%arg0: i32) -> (i32, i32, i32) {
    %c0_i32 = arith.constant 0 : i32
    %c0_i32_0 = arith.constant 0 : i32
    %c0_i32_1 = arith.constant 0 : i32
    %c0_i32_2 = arith.constant 0 : i32
    return %c0_i32, %c0_i32_0, %c0_i32_1 : i32, i32, i32
  }
  func.func @transform_7(%arg0: i32) -> (i32, i32) {
    %c0_i32 = arith.constant 0 : i32
    %c0_i32_0 = arith.constant 0 : i32
    %c0_i32_1 = arith.constant 0 : i32
    return %c0_i32, %c0_i32_0 : i32, i32
  }
  func.func @transform_8(%arg0: i32) -> (i32, i32) {
    %c0_i32 = arith.constant 0 : i32
    %c0_i32_0 = arith.constant 0 : i32
    %c0_i32_1 = arith.constant 0 : i32
    return %c0_i32, %c0_i32_0 : i32, i32
  }
  func.func @transform_9(%arg0: i32) -> (i32, i32, i32) {
    %c0_i32 = arith.constant 0 : i32
    %c0_i32_0 = arith.constant 0 : i32
    %c0_i32_1 = arith.constant 0 : i32
    %c0_i32_2 = arith.constant 0 : i32
    return %c0_i32, %c0_i32_0, %c0_i32_1 : i32, i32, i32
  }
  func.func @transform_10(%arg0: i32) -> (i32, i32) {
    %c0_i32 = arith.constant 0 : i32
    %c0_i32_0 = arith.constant 0 : i32
    %c0_i32_1 = arith.constant 0 : i32
    return %c0_i32, %c0_i32_0 : i32, i32
  }
  func.func @transform_11(%arg0: i32) -> (i32, i32) {
    %c0_i32 = arith.constant 0 : i32
    %c0_i32_0 = arith.constant 0 : i32
    return %arg0, %c0_i32 : i32, i32
  }
}

</mosaic_0001>

<llo_original>
// kernel: tile.17
$region0: #{tile.17}
  %s0 = inlined_call_operand.vmem [shape: f32[2,4,384], index: 0, kind: input, shape index: {}]
  %s1 = inlined_call_operand.vmem [shape: f32[8,384], index: 1, kind: output, shape index: {}]
  $region1: #{tile.17} parent=0
    #allocation0 [shape = 'u8[24576]{0}', space=vmem, size = 0x6000, scoped, tag = 'scoped mem for input reshape']
    %s3 = ssub.s32 16, 1
    %s4 = scalar_lea.vmem %s0, 20
    %v5 = vld [vmem:[%s4] sm:%s3]
    %s6 = scalar_lea.vmem [#allocation0], 40
    %7 = vst [vmem:[%s6] sm:%s3] %v5
    %s8 = scalar_lea.vmem %s0, 16
    %v9 = vld [vmem:[%s8] sm:%s3]
    %s10 = scalar_lea.vmem [#allocation0], 32
    %11 = vst [vmem:[%s10] sm:%s3] %v9
    %s12 = scalar_lea.vmem %s0, 12
    %v13 = vld [vmem:[%s12] sm:%s3]
    %s14 = scalar_lea.vmem [#allocation0], 24
    %15 = vst [vmem:[%s14] sm:%s3] %v13
    %s16 = scalar_lea.vmem %s0, 8
    %v17 = vld [vmem:[%s16] sm:%s3]
    %s18 = scalar_lea.vmem [#allocation0], 16
    %19 = vst [vmem:[%s18] sm:%s3] %v17
    %s20 = scalar_lea.vmem %s0, 4
    %v21 = vld [vmem:[%s20] sm:%s3]
    %s22 = scalar_lea.vmem [#allocation0], 8
    %23 = vst [vmem:[%s22] sm:%s3] %v21
    %v24 = vld [vmem:[%s0] sm:%s3]
    %25 = vst [vmem:[#allocation0] sm:%s3] %v24
    %v26 = vld [vmem:[#allocation0] sm:$0xf]
    %27 = vst [vmem:[%s1] sm:$0xf] %v26
    %s28 = scalar_lea.vmem [#allocation0], 8
    %v29 = vld [vmem:[%s28] sm:$0xf]
    %s30 = scalar_lea.vmem %s1, 8
    %31 = vst [vmem:[%s30] sm:$0xf] %v29
    %s32 = scalar_lea.vmem [#allocation0], 16
    %v33 = vld [vmem:[%s32] sm:$0xf]
    %s34 = scalar_lea.vmem %s1, 16
    %35 = vst [vmem:[%s34] sm:$0xf] %v33
    %s36 = scalar_lea.vmem [#allocation0], 24
    %v37 = vld [vmem:[%s36] sm:$0xf]
    %s38 = scalar_lea.vmem %s1, 4
    %39 = vst [vmem:[%s38] sm:$0xf] %v37
    %s40 = scalar_lea.vmem [#allocation0], 32
    %v41 = vld [vmem:[%s40] sm:$0xf]
    %s42 = scalar_lea.vmem %s1, 12
    %43 = vst [vmem:[%s42] sm:$0xf] %v41
    %s44 = scalar_lea.vmem [#allocation0], 40
    %v45 = vld [vmem:[%s44] sm:$0xf]
    %s46 = scalar_lea.vmem %s1, 20
    %47 = vst [vmem:[%s46] sm:$0xf] %v45

// kernel: up_forward.1
$region0: #{up_forward.1}
  #allocation0 [shape = 'u32[]', space=smem, size = 0x4, offset = 0x4, fixed_abs, tag = 'smem constant byte address 0x4 - core index']
  #allocation1 [shape = 'u32[72,128]{1,0:T(1,128)}', space=vmem, size = 0x9000, scoped, tag = 'internal scratch']
  #allocation2 [shape = 'bf16[8,512]{1,0:T(8,128)(2,1)}', space=vmem, size = 0x2000, scoped, tag = 'scratch operand']
  #allocation3 [shape = 'bf16[8,512]{1,0:T(8,128)(2,1)}', space=vmem, size = 0x2000, scoped, tag = 'scratch operand']
  %s0 = inlined_call_operand.vmem [shape: bf16[32,64], index: 0, kind: input, shape index: {}]
  %s1 = inlined_call_operand.vmem [shape: bf16[16,512], index: 1, kind: input, shape index: {}]
  %s2 = inlined_call_operand.vmem [shape: bf16[32,16], index: 2, kind: input, shape index: {}]
  %s3 = inlined_call_operand.vmem [shape: bf16[4,64,384], index: 3, kind: input, shape index: {}]
  %s4 = inlined_call_operand.vmem [shape: f32[8,384], index: 4, kind: input, shape index: {}]
  %s5 = inlined_call_operand.vmem [shape: bf16[9,8,8], index: 5, kind: input, shape index: {}]
  %s6 = inlined_call_operand.vmem [shape: bf16[9,8,8], index: 6, kind: input, shape index: {}]
  %s7 = inlined_call_operand.vmem [shape: f32[8,1], index: 7, kind: input, shape index: {}]
  %s8 = inlined_call_operand.vmem [shape: f32[1,384], index: 8, kind: input, shape index: {}]
  %s9 = inlined_call_operand.vmem [shape: bf16[9,8,8], index: 9, kind: input, shape index: {}]
  %s10 = inlined_call_operand.vmem [shape: f32[8,1], index: 10, kind: input, shape index: {}]
  %s11 = inlined_call_operand.vmem [shape: f32[16,384], index: 11, kind: output, shape index: {}]
  %s12 = sld [smem:[#allocation0]]
  $region77: #{up_forward.1} parent=0
    _
  %s14 = ssub.s32 1, %s12
  %s15 = scalar_select 0, %s14, %s12
  loop: start=0, step=1, limit=4
  $region2: #{up_forward.1} parent=0 // loop_pre_header
    _
  $region3: #{up_forward.1} parent=0 // loop_header
    %s17 = sphi 0, %s21
    %p18 = scmp.ge.s32.totalorder %s17, 4
    %s27 = sphi 0, %s29
    %s30 = sphi 0, %s27
    %s31 = sphi 0, %s30
    %s47 = sphi 0, %s31
    %s53 = sphi 0, %s55
    %s56 = sphi 0, %s53
    %s57 = sphi 0, %s56
    %s73 = sphi 0, %s57
    %s77 = sphi 0, %s77
    %s79 = sphi 0, %s77
    %s80 = sphi 0, %s79
    %s94 = sphi 0, %s80
    %s98 = sphi 0, %s98
    %s100 = sphi 0, %s98
    %s101 = sphi 0, %s100
    %s115 = sphi 0, %s101
    %s119 = sphi 0, %s119
    %s121 = sphi 0, %s119
    %s122 = sphi 0, %s121
    %s136 = sphi 0, %s122
    %s140 = sphi 0, %s140
    %s142 = sphi 0, %s140
    %s143 = sphi 0, %s142
    %s157 = sphi 0, %s143
    %s161 = sphi 0, %s161
    %s163 = sphi 0, %s161
    %s164 = sphi 0, %s163
    %s178 = sphi 0, %s164
    %s182 = sphi 0, %s182
    %s184 = sphi 0, %s182
    %s185 = sphi 0, %s184
    %s199 = sphi 0, %s185
    %s203 = sphi 0, %s203
    %s205 = sphi 0, %s203
    %s206 = sphi 0, %s205
    %s220 = sphi 0, %s206
    %s224 = sphi 0, %s224
    %s226 = sphi 0, %s224
    %s227 = sphi 0, %s226
    %s241 = sphi 0, %s227
    %s245 = sphi 0, %s245
    %s247 = sphi 0, %s245
    %s248 = sphi 0, %s247
    %s262 = sphi 0, %s248
    %s268 = sphi 0, %s270
    %s271 = sphi 0, %s268
    %s272 = sphi 0, %s271
    %s288 = sphi 0, %s272
  $region4: #{up_forward.1} parent=0 // loop_header_branch
    %20 = sbr.rel (%p18) target = $region8
  $region5: #{up_forward.1} parent=0 // loop_body
    %s22 = ssub.s32 %s17, 1
    %s23 = ssub.s32 %s17, 2
    %s24 = sadd.s32 %s17, 1
    %s25 = ssub.s32 %s17, %s24
    %p26 = scmp.eq.s32.totalorder %s25, 0
    %s28 = sadd.s32 %s27, 1
    %s29 = scalar_select %p26, %s27, %s28
    %p32 = pneg %p26
    %p33 = scmp.eq.s32.totalorder %s17, 1
    %p34 = por %p32, %p33
    %p35 = scmp.ne.s32.totalorder %s27, %s30
    %p36 = scmp.eq.s32.totalorder %s17, 0
    %p37 = por %p35, %p36
    %p38 = scmp.ne.s32.totalorder %s27, %s30
    %p39 = scmp.eq.s32.totalorder %s22, 1
    %p40 = por %p38, %p39
    %p41 = scmp.ne.s32.totalorder %s30, %s31
    %p42 = scmp.eq.s32.totalorder %s22, 0
    %p43 = por %p41, %p42
    %p44 = scmp.ne.s32.totalorder %s30, %s31
    %p45 = scmp.eq.s32.totalorder %s23, 1
    %p46 = por %p44, %p45
    %p48 = scmp.ne.s32.totalorder %s31, %s47
    %p49 = scmp.eq.s32.totalorder %s23, 0
    %p50 = por %p48, %p49
    %s51 = ssub.s32 %s17, %s24
    %p52 = scmp.eq.s32.totalorder %s51, 0
    %s54 = sadd.s32 %s53, 1
    %s55 = scalar_select %p52, %s53, %s54
    %p58 = pneg %p52
    %p59 = scmp.eq.s32.totalorder %s17, 1
    %p60 = por %p58, %p59
    %p61 = scmp.ne.s32.totalorder %s53, %s56
    %p62 = scmp.eq.s32.totalorder %s17, 0
    %p63 = por %p61, %p62
    %p64 = scmp.ne.s32.totalorder %s53, %s56
    %p65 = scmp.eq.s32.totalorder %s22, 1
    %p66 = por %p64, %p65
    %p67 = scmp.ne.s32.totalorder %s56, %s57
    %p68 = scmp.eq.s32.totalorder %s22, 0
    %p69 = por %p67, %p68
    %p70 = scmp.ne.s32.totalorder %s56, %s57
    %p71 = scmp.eq.s32.totalorder %s23, 1
    %p72 = por %p70, %p71
    %p74 = scmp.ne.s32.totalorder %s57, %s73
    %p75 = scmp.eq.s32.totalorder %s23, 0
    %p76 = por %p74, %p75
    %s78 = sadd.s32 %s77, 1
    %p81 = scmp.eq.s32.totalorder %s17, 1
    %p82 = scmp.ne.s32.totalorder %s77, %s79
    %p83 = scmp.eq.s32.totalorder %s17, 0
    %p84 = por %p82, %p83
    %p85 = scmp.ne.s32.totalorder %s77, %s79
    %p86 = scmp.eq.s32.totalorder %s22, 1
    %p87 = por %p85, %p86
    %p88 = scmp.ne.s32.totalorder %s79, %s80
    %p89 = scmp.eq.s32.totalorder %s22, 0
    %p90 = por %p88, %p89
    %p91 = scmp.ne.s32.totalorder %s79, %s80
    %p92 = scmp.eq.s32.totalorder %s23, 1
    %p93 = por %p91, %p92
    %p95 = scmp.ne.s32.totalorder %s80, %s94
    %p96 = scmp.eq.s32.totalorder %s23, 0
    %p97 = por %p95, %p96
    %s99 = sadd.s32 %s98, 1
    %p102 = scmp.eq.s32.totalorder %s17, 1
    %p103 = scmp.ne.s32.totalorder %s98, %s100
    %p104 = scmp.eq.s32.totalorder %s17, 0
    %p105 = por %p103, %p104
    %p106 = scmp.ne.s32.totalorder %s98, %s100
    %p107 = scmp.eq.s32.totalorder %s22, 1
    %p108 = por %p106, %p107
    %p109 = scmp.ne.s32.totalorder %s100, %s101
    %p110 = scmp.eq.s32.totalorder %s22, 0
    %p111 = por %p109, %p110
    %p112 = scmp.ne.s32.totalorder %s100, %s101
    %p113 = scmp.eq.s32.totalorder %s23, 1
    %p114 = por %p112, %p113
    %p116 = scmp.ne.s32.totalorder %s101, %s115
    %p117 = scmp.eq.s32.totalorder %s23, 0
    %p118 = por %p116, %p117
    %s120 = sadd.s32 %s119, 1
    %p123 = scmp.eq.s32.totalorder %s17, 1
    %p124 = scmp.ne.s32.totalorder %s119, %s121
    %p125 = scmp.eq.s32.totalorder %s17, 0
    %p126 = por %p124, %p125
    %p127 = scmp.ne.s32.totalorder %s119, %s121
    %p128 = scmp.eq.s32.totalorder %s22, 1
    %p129 = por %p127, %p128
    %p130 = scmp.ne.s32.totalorder %s121, %s122
    %p131 = scmp.eq.s32.totalorder %s22, 0
    %p132 = por %p130, %p131
    %p133 = scmp.ne.s32.totalorder %s121, %s122
    %p134 = scmp.eq.s32.totalorder %s23, 1
    %p135 = por %p133, %p134
    %p137 = scmp.ne.s32.totalorder %s122, %s136
    %p138 = scmp.eq.s32.totalorder %s23, 0
    %p139 = por %p137, %p138
    %s141 = sadd.s32 %s140, 1
    %p144 = scmp.eq.s32.totalorder %s17, 1
    %p145 = scmp.ne.s32.totalorder %s140, %s142
    %p146 = scmp.eq.s32.totalorder %s17, 0
    %p147 = por %p145, %p146
    %p148 = scmp.ne.s32.totalorder %s140, %s142
    %p149 = scmp.eq.s32.totalorder %s22, 1
    %p150 = por %p148, %p149
    %p151 = scmp.ne.s32.totalorder %s142, %s143
    %p152 = scmp.eq.s32.totalorder %s22, 0
    %p153 = por %p151, %p152
    %p154 = scmp.ne.s32.totalorder %s142, %s143
    %p155 = scmp.eq.s32.totalorder %s23, 1
    %p156 = por %p154, %p155
    %p158 = scmp.ne.s32.totalorder %s143, %s157
    %p159 = scmp.eq.s32.totalorder %s23, 0
    %p160 = por %p158, %p159
    %s162 = sadd.s32 %s161, 1
    %p165 = scmp.eq.s32.totalorder %s17, 1
    %p166 = scmp.ne.s32.totalorder %s161, %s163
    %p167 = scmp.eq.s32.totalorder %s17, 0
    %p168 = por %p166, %p167
    %p169 = scmp.ne.s32.totalorder %s161, %s163
    %p170 = scmp.eq.s32.totalorder %s22, 1
    %p171 = por %p169, %p170
    %p172 = scmp.ne.s32.totalorder %s163, %s164
    %p173 = scmp.eq.s32.totalorder %s22, 0
    %p174 = por %p172, %p173
    %p175 = scmp.ne.s32.totalorder %s163, %s164
    %p176 = scmp.eq.s32.totalorder %s23, 1
    %p177 = por %p175, %p176
    %p179 = scmp.ne.s32.totalorder %s164, %s178
    %p180 = scmp.eq.s32.totalorder %s23, 0
    %p181 = por %p179, %p180
    %s183 = sadd.s32 %s182, 1
    %p186 = scmp.eq.s32.totalorder %s17, 1
    %p187 = scmp.ne.s32.totalorder %s182, %s184
    %p188 = scmp.eq.s32.totalorder %s17, 0
    %p189 = por %p187, %p188
    %p190 = scmp.ne.s32.totalorder %s182, %s184
    %p191 = scmp.eq.s32.totalorder %s22, 1
    %p192 = por %p190, %p191
    %p193 = scmp.ne.s32.totalorder %s184, %s185
    %p194 = scmp.eq.s32.totalorder %s22, 0
    %p195 = por %p193, %p194
    %p196 = scmp.ne.s32.totalorder %s184, %s185
    %p197 = scmp.eq.s32.totalorder %s23, 1
    %p198 = por %p196, %p197
    %p200 = scmp.ne.s32.totalorder %s185, %s199
    %p201 = scmp.eq.s32.totalorder %s23, 0
    %p202 = por %p200, %p201
    %s204 = sadd.s32 %s203, 1
    %p207 = scmp.eq.s32.totalorder %s17, 1
    %p208 = scmp.ne.s32.totalorder %s203, %s205
    %p209 = scmp.eq.s32.totalorder %s17, 0
    %p210 = por %p208, %p209
    %p211 = scmp.ne.s32.totalorder %s203, %s205
    %p212 = scmp.eq.s32.totalorder %s22, 1
    %p213 = por %p211, %p212
    %p214 = scmp.ne.s32.totalorder %s205, %s206
    %p215 = scmp.eq.s32.totalorder %s22, 0
    %p216 = por %p214, %p215
    %p217 = scmp.ne.s32.totalorder %s205, %s206
    %p218 = scmp.eq.s32.totalorder %s23, 1
    %p219 = por %p217, %p218
    %p221 = scmp.ne.s32.totalorder %s206, %s220
    %p222 = scmp.eq.s32.totalorder %s23, 0
    %p223 = por %p221, %p222
    %s225 = sadd.s32 %s224, 1
    %p228 = scmp.eq.s32.totalorder %s17, 1
    %p229 = scmp.ne.s32.totalorder %s224, %s226
    %p230 = scmp.eq.s32.totalorder %s17, 0
    %p231 = por %p229, %p230
    %p232 = scmp.ne.s32.totalorder %s224, %s226
    %p233 = scmp.eq.s32.totalorder %s22, 1
    %p234 = por %p232, %p233
    %p235 = scmp.ne.s32.totalorder %s226, %s227
    %p236 = scmp.eq.s32.totalorder %s22, 0
    %p237 = por %p235, %p236
    %p238 = scmp.ne.s32.totalorder %s226, %s227
    %p239 = scmp.eq.s32.totalorder %s23, 1
    %p240 = por %p238, %p239
    %p242 = scmp.ne.s32.totalorder %s227, %s241
    %p243 = scmp.eq.s32.totalorder %s23, 0
    %p244 = por %p242, %p243
    %s246 = sadd.s32 %s245, 1
    %p249 = scmp.eq.s32.totalorder %s17, 1
    %p250 = scmp.ne.s32.totalorder %s245, %s247
    %p251 = scmp.eq.s32.totalorder %s17, 0
    %p252 = por %p250, %p251
    %p253 = scmp.ne.s32.totalorder %s245, %s247
    %p254 = scmp.eq.s32.totalorder %s22, 1
    %p255 = por %p253, %p254
    %p256 = scmp.ne.s32.totalorder %s247, %s248
    %p257 = scmp.eq.s32.totalorder %s22, 0
    %p258 = por %p256, %p257
    %p259 = scmp.ne.s32.totalorder %s247, %s248
    %p260 = scmp.eq.s32.totalorder %s23, 1
    %p261 = por %p259, %p260
    %p263 = scmp.ne.s32.totalorder %s248, %s262
    %p264 = scmp.eq.s32.totalorder %s23, 0
    %p265 = por %p263, %p264
    %s266 = ssub.s32 %s17, %s24
    %p267 = scmp.eq.s32.totalorder %s266, 0
    %s269 = sadd.s32 %s268, 1
    %s270 = scalar_select %p267, %s268, %s269
    %p273 = pneg %p267
    %p274 = scmp.eq.s32.totalorder %s17, 1
    %p275 = por %p273, %p274
    %p276 = scmp.ne.s32.totalorder %s268, %s271
    %p277 = scmp.eq.s32.totalorder %s17, 0
    %p278 = por %p276, %p277
    %p279 = scmp.ne.s32.totalorder %s268, %s271
    %p280 = scmp.eq.s32.totalorder %s22, 1
    %p281 = por %p279, %p280
    %p282 = scmp.ne.s32.totalorder %s271, %s272
    %p283 = scmp.eq.s32.totalorder %s22, 0
    %p284 = por %p282, %p283
    %p285 = scmp.ne.s32.totalorder %s271, %s272
    %p286 = scmp.eq.s32.totalorder %s23, 1
    %p287 = por %p285, %p286
    %p289 = scmp.ne.s32.totalorder %s272, %s288
    %p290 = scmp.eq.s32.totalorder %s23, 0
    %p291 = por %p289, %p290
    %p292 = scmp.le.s32.totalorder 1, %s17
    %p293 = scmp.lt.s32.totalorder %s17, 3
    %p294 = pnand %p292, %p293
    %p295 = pneg %p294
    // Predicated region
    $region9: #{up_forward.1} parent=5 // pred_check
      _
    $region10: #{up_forward.1} parent=5 // pred_check_branch
      %297 = sbr.rel (%p294) target = $region12
    $region11: #{up_forward.1} parent=5 // pred_region
      %s298 = ssub.s32 %s17, 1
      // Predicated region
      $region13: #{up_forward.1} parent=11 // pred_check
        %p299 = pneg %p90
      $region14: #{up_forward.1} parent=11 // pred_check_branch
        %301 = sbr.rel (%p299) target = $region16
      $region15: #{up_forward.1} parent=11 // pred_region
        _
      $region16: #{up_forward.1} parent=11 // pred_fallthru
        _
      // Predicated region
      $region17: #{up_forward.1} parent=11 // pred_check
        %p302 = pneg %p111
      $region18: #{up_forward.1} parent=11 // pred_check_branch
        %304 = sbr.rel (%p302) target = $region20
      $region19: #{up_forward.1} parent=11 // pred_region
        _
      $region20: #{up_forward.1} parent=11 // pred_fallthru
        _
      // Predicated region
      $region21: #{up_forward.1} parent=11 // pred_check
        %p305 = pneg %p132
      $region22: #{up_forward.1} parent=11 // pred_check_branch
        %307 = sbr.rel (%p305) target = $region24
      $region23: #{up_forward.1} parent=11 // pred_region
        _
      $region24: #{up_forward.1} parent=11 // pred_fallthru
        _
      // Predicated region
      $region25: #{up_forward.1} parent=11 // pred_check
        %p308 = pneg %p153
      $region26: #{up_forward.1} parent=11 // pred_check_branch
        %310 = sbr.rel (%p308) target = $region28
      $region27: #{up_forward.1} parent=11 // pred_region
        _
      $region28: #{up_forward.1} parent=11 // pred_fallthru
        _
      // Predicated region
      $region29: #{up_forward.1} parent=11 // pred_check
        %p311 = pneg %p174
      $region30: #{up_forward.1} parent=11 // pred_check_branch
        %313 = sbr.rel (%p311) target = $region32
      $region31: #{up_forward.1} parent=11 // pred_region
        _
      $region32: #{up_forward.1} parent=11 // pred_fallthru
        _
      // Predicated region
      $region33: #{up_forward.1} parent=11 // pred_check
        %p314 = pneg %p195
      $region34: #{up_forward.1} parent=11 // pred_check_branch
        %316 = sbr.rel (%p314) target = $region36
      $region35: #{up_forward.1} parent=11 // pred_region
        _
      $region36: #{up_forward.1} parent=11 // pred_fallthru
        _
      // Predicated region
      $region37: #{up_forward.1} parent=11 // pred_check
        %p317 = pneg %p216
      $region38: #{up_forward.1} parent=11 // pred_check_branch
        %319 = sbr.rel (%p317) target = $region40
      $region39: #{up_forward.1} parent=11 // pred_region
        _
      $region40: #{up_forward.1} parent=11 // pred_fallthru
        _
      // Predicated region
      $region41: #{up_forward.1} parent=11 // pred_check
        %p320 = pneg %p237
      $region42: #{up_forward.1} parent=11 // pred_check_branch
        %322 = sbr.rel (%p320) target = $region44
      $region43: #{up_forward.1} parent=11 // pred_region
        _
      $region44: #{up_forward.1} parent=11 // pred_fallthru
        _
      // Predicated region
      $region45: #{up_forward.1} parent=11 // pred_check
        %p323 = pneg %p258
      $region46: #{up_forward.1} parent=11 // pred_check_branch
        %325 = sbr.rel (%p323) target = $region48
      $region47: #{up_forward.1} parent=11 // pred_region
        _
      $region48: #{up_forward.1} parent=11 // pred_fallthru
        _
    $region12: #{up_forward.1} parent=5 // pred_fallthru
      _
    %p326 = scmp.lt.s32.totalorder %s17, 2
    // Predicated region
    $region49: #{up_forward.1} parent=5 // pred_check
      %p327 = pneg %p326
    $region50: #{up_forward.1} parent=5 // pred_check_branch
      %329 = sbr.rel (%p327) target = $region52
    $region51: #{up_forward.1} parent=5 // pred_region
      // Predicated region
      $region53: #{up_forward.1} parent=51 // pred_check
        %p330 = pneg %p37
      $region54: #{up_forward.1} parent=51 // pred_check_branch
        %332 = sbr.rel (%p330) target = $region56
      $region55: #{up_forward.1} parent=51 // pred_region
        %s333 = smul.u32 2, %s17
        %p334 = scmp.lt.s32.totalorder %s333, 3
        %s335 = scalar_select %p334, %s333, 3
        %s336 = smul.addr %s335, 4
        %s337 = scalar_lea.vmem %s0, %s336
        %s338 = smul.u32 2, %s17
      $region56: #{up_forward.1} parent=51 // pred_fallthru
        _
      // Predicated region
      $region57: #{up_forward.1} parent=51 // pred_check
        %p339 = pneg %p63
      $region58: #{up_forward.1} parent=51 // pred_check_branch
        %341 = sbr.rel (%p339) target = $region60
      $region59: #{up_forward.1} parent=51 // pred_region
        %p342 = scmp.lt.s32.totalorder %s17, 1
        %s343 = scalar_select %p342, %s17, 1
        %s344 = smul.addr %s343, 4
        %s345 = smul.addr %s344, 4
        %s346 = scalar_lea.vmem %s1, %s345
      $region60: #{up_forward.1} parent=51 // pred_fallthru
        _
    $region52: #{up_forward.1} parent=5 // pred_fallthru
      _
    %p347 = scmp.le.s32.totalorder 1, %s17
    %p348 = scmp.lt.s32.totalorder %s17, 3
    %p349 = pnand %p347, %p348
    %p350 = pneg %p349
    // Predicated region
    $region61: #{up_forward.1} parent=5 // pred_check
      _
    $region62: #{up_forward.1} parent=5 // pred_check_branch
      %352 = sbr.rel (%p349) target = $region64
    $region63: #{up_forward.1} parent=5 // pred_region
      %s353 = ssub.s32 %s17, 1
      %s354 = smul.u32 2, %s22
      %p355 = scmp.lt.s32.totalorder %s354, 3
      %s356 = scalar_select %p355, %s354, 3
      %s357 = smul.addr %s356, 4
      %s358 = scalar_lea.vmem %s0, %s357
      %p359 = pneg %p43
      %p360 = pneg %p40
      %p361 = scmp.lt.s32.totalorder %s22, 1
      %s362 = scalar_select %p361, %s22, 1
      %s363 = smul.addr %s362, 4
      %s364 = smul.addr %s363, 4
      %s365 = scalar_lea.vmem %s1, %s364
      %p366 = pneg %p69
      %p367 = pneg %p66
      %p368 = pneg %p90
      %p369 = pneg %p87
      %p370 = pneg %p111
      %p371 = pneg %p108
      %p372 = pneg %p132
      %p373 = pneg %p129
      %p374 = pneg %p153
      %p375 = pneg %p150
      %p376 = pneg %p174
      %p377 = pneg %p171
      %p378 = pneg %p195
      %p379 = pneg %p192
      %p380 = pneg %p216
      %p381 = pneg %p213
      %p382 = pneg %p237
      %p383 = pneg %p234
      %p384 = pneg %p258
      %p385 = pneg %p255
      %p386 = pneg %p284
      %p387 = pneg %p281
      %p388 = scmp.lt.s32.totalorder %s22, 1
      %s389 = scalar_select %p388, %s22, 1
      %s390 = smul.addr %s389, 3
      %s391 = smul.addr %s390, 8
      %s392 = scalar_lea.vmem %s11, %s391
      %s393 = smul.u32 2, %s22
      %p394 = scmp.lt.s32.totalorder %s393, 3
      %s395 = scalar_select %p394, %s393, 3
      %s396 = smul.addr %s395, 4
      %s397 = scalar_lea.vmem %s0, %s396
      %s398 = smul.u32 2, %s22
      %p399 = scmp.lt.s32.totalorder %s22, 1
      %s400 = scalar_select %p399, %s22, 1
      %s401 = smul.addr %s400, 4
      %s402 = smul.addr %s401, 4
      %s403 = scalar_lea.vmem %s1, %s402
      %p404 = scmp.lt.s32.totalorder %s22, 1
      %s405 = scalar_select %p404, %s22, 1
      %s406 = smul.addr %s405, 3
      %s407 = smul.addr %s406, 8
      %s408 = scalar_lea.vmem %s11, %s407
      %v410 = vld [vmem:[%s2] sm:$0xf]
      %v411 = vld [vmem:[%s2 + $0x4] sm:$0xf]
      %v412 = vld [vmem:[%s2 + $0x8] sm:$0xf]
      %v413 = vld [vmem:[%s2 + $0xc] sm:$0xf]
      %v414 = vld [vmem:[%s397] sm:$0xf]
      %v415 = vld [vmem:[%s397 + $0x4] sm:$0xf]
      %v420 = vunpack.c.l.b16 %v410
      %v421 = vunpack.c.l.b16 %v411
      %v422 = vunpack.c.l.b16 %v412
      %v423 = vunpack.c.l.b16 %v413
      %v424 = vpack.c.b16 %v421, %v420
      %v425 = vpack.c.b16 %v423, %v422
      %v428 = vunpack.c.l.b16 %v414
      %v429 = vunpack.c.l.b16 %v415
      %v430 = vpack.c.b16 %v429, %v428
      %vm432 = vcmask 130048
      %v434 = vsel %vm432, %v424, 0
      %v437 = vsel %vm432, %v425, 0
      %439 = vmatpush.bf16.msra.mxu0 0
      %440 = vmatpush.bf16.msra.mxu0 0
      %441 = vmatpush.bf16.msra.mxu0 0
      %442 = vmatpush.bf16.msra.mxu0 0
      %443 = vmatpush.bf16.msra.mxu0 0
      %444 = vmatpush.bf16.msra.mxu0 0
      %445 = vmatpush.bf16.msra.mxu0 0
      %446 = vmatpush.bf16.msra.mxu0 %v430
      %447 = vmatmul.bf16.gmra.mxu0 %v434
      %v448 = vpop.f32.mrf.mxu0
      %v449 = vadd.f32 0.0, %v448
      %v450 = vpop.f32.mrf.mxu0
      %v451 = vadd.f32 0.0, %v450
      %452 = vmatmul.bf16.gmra.mxu0 %v437
      %v453 = vpop.f32.mrf.mxu0
      %v454 = vadd.f32 0.0, %v453
      %v455 = vpop.f32.mrf.mxu0
      %v456 = vadd.f32 0.0, %v455
      %457 = vdwg.mxu0
      %v458 = vpack.c.bf16 %v449, %v449
      %v459 = vpack.c.bf16 %v451, %v451
      %v460 = vpack.c.bf16 %v454, %v454
      %v461 = vpack.c.bf16 %v456, %v456
      %v462 = vld [vmem:[%s3] sm:$0xff]
      %v463 = vld [vmem:[%s3 + $0x8] sm:$0xf]
      %v464 = vld [vmem:[%s3 + $0xc] sm:$0xff]
      %v465 = vld [vmem:[%s3 + $0x14] sm:$0xf]
      %v466 = vld [vmem:[%s3 + $0x18] sm:$0xff]
      %v467 = vld [vmem:[%s3 + $0x20] sm:$0xf]
      %v468 = vld [vmem:[%s3 + $0x24] sm:$0xff]
      %v469 = vld [vmem:[%s3 + $0x2c] sm:$0xf]
      %v470 = vld [vmem:[%s3 + $0x30] sm:$0xff]
      %v471 = vld [vmem:[%s3 + $0x38] sm:$0xf]
      %v472 = vld [vmem:[%s3 + $0x3c] sm:$0xff]
      %v473 = vld [vmem:[%s3 + $0x44] sm:$0xf]
      %v474 = vld [vmem:[%s3 + $0x48] sm:$0xff]
      %v475 = vld [vmem:[%s3 + $0x50] sm:$0xf]
      %v476 = vld [vmem:[%s3 + $0x54] sm:$0xff]
      %v477 = vld [vmem:[%s3 + $0x5c] sm:$0xf]
      %s478 = scalar_lea.vmem %s3, 96
      %v479 = vld [vmem:[%s478] sm:$0xff]
      %v480 = vld [vmem:[%s478 + $0x8] sm:$0xf]
      %v481 = vld [vmem:[%s478 + $0xc] sm:$0xff]
      %v482 = vld [vmem:[%s478 + $0x14] sm:$0xf]
      %v483 = vld [vmem:[%s478 + $0x18] sm:$0xff]
      %v484 = vld [vmem:[%s478 + $0x20] sm:$0xf]
      %v485 = vld [vmem:[%s478 + $0x24] sm:$0xff]
      %v486 = vld [vmem:[%s478 + $0x2c] sm:$0xf]
      %v487 = vld [vmem:[%s478 + $0x30] sm:$0xff]
      %v488 = vld [vmem:[%s478 + $0x38] sm:$0xf]
      %v489 = vld [vmem:[%s478 + $0x3c] sm:$0xff]
      %v490 = vld [vmem:[%s478 + $0x44] sm:$0xf]
      %v491 = vld [vmem:[%s478 + $0x48] sm:$0xff]
      %v492 = vld [vmem:[%s478 + $0x50] sm:$0xf]
      %v493 = vld [vmem:[%s478 + $0x54] sm:$0xff]
      %v494 = vld [vmem:[%s478 + $0x5c] sm:$0xf]
      %v511 = vunpack.c.l.b16 %v479
      %v512 = vunpack.c.h.b16 %v479
      %v513 = vunpack.c.l.b16 %v480
      %v514 = vunpack.c.l.b16 %v481
      %v515 = vunpack.c.h.b16 %v481
      %v516 = vunpack.c.l.b16 %v482
      %v517 = vunpack.c.l.b16 %v483
      %v518 = vunpack.c.h.b16 %v483
      %v519 = vunpack.c.l.b16 %v484
      %v520 = vunpack.c.l.b16 %v485
      %v521 = vunpack.c.h.b16 %v485
      %v522 = vunpack.c.l.b16 %v486
      %v523 = vunpack.c.l.b16 %v487
      %v524 = vunpack.c.h.b16 %v487
      %v525 = vunpack.c.l.b16 %v488
      %v526 = vunpack.c.l.b16 %v489
      %v527 = vunpack.c.h.b16 %v489
      %v528 = vunpack.c.l.b16 %v490
      %v529 = vunpack.c.l.b16 %v491
      %v530 = vunpack.c.h.b16 %v491
      %v531 = vunpack.c.l.b16 %v492
      %v532 = vunpack.c.l.b16 %v493
      %v533 = vunpack.c.h.b16 %v493
      %v534 = vunpack.c.l.b16 %v494
      %v535 = vpack.c.b16 %v514, %v511
      %v536 = vpack.c.b16 %v515, %v512
      %v537 = vpack.c.b16 %v516, %v513
      %v538 = vpack.c.b16 %v520, %v517
      %v539 = vpack.c.b16 %v521, %v518
      %v540 = vpack.c.b16 %v522, %v519
      %v541 = vpack.c.b16 %v526, %v523
      %v542 = vpack.c.b16 %v527, %v524
      %v543 = vpack.c.b16 %v528, %v525
      %v544 = vpack.c.b16 %v532, %v529
      %v545 = vpack.c.b16 %v533, %v530
      %v546 = vpack.c.b16 %v534, %v531
      %vm559 = vcmask 523264
      %v561 = vsel %vm559, %v459, 0
      %563 = vmatpush.bf16.msra.mxu0 0
      %564 = vmatpush.bf16.msra.mxu0 0
      %565 = vmatpush.bf16.msra.mxu0 0
      %566 = vmatpush.bf16.msra.mxu0 0
      %567 = vmatpush.bf16.msra.mxu0 %v544
      %568 = vmatpush.bf16.msra.mxu0 %v541
      %569 = vmatpush.bf16.msra.mxu0 %v538
      %570 = vmatpush.bf16.msra.mxu0 %v535
      %571 = vmatmul.bf16.gmra.mxu0 %v561
      %v572 = vpop.f32.mrf.mxu0
      %v573 = vadd.f32 0.0, %v572
      %v574 = vpop.f32.mrf.mxu0
      %575 = vdwg.mxu0
      %576 = vmatpush.bf16.msra.mxu0 0
      %577 = vmatpush.bf16.msra.mxu0 0
      %578 = vmatpush.bf16.msra.mxu0 0
      %579 = vmatpush.bf16.msra.mxu0 0
      %580 = vmatpush.bf16.msra.mxu0 %v545
      %581 = vmatpush.bf16.msra.mxu0 %v542
      %582 = vmatpush.bf16.msra.mxu0 %v539
      %583 = vmatpush.bf16.msra.mxu0 %v536
      %584 = vmatmul.bf16.gmra.mxu0 %v561
      %v585 = vpop.f32.mrf.mxu0
      %v586 = vadd.f32 0.0, %v585
      %v587 = vpop.f32.mrf.mxu0
      %588 = vdwg.mxu0
      %589 = vmatpush.bf16.msra.mxu0 0
      %590 = vmatpush.bf16.msra.mxu0 0
      %591 = vmatpush.bf16.msra.mxu0 0
      %592 = vmatpush.bf16.msra.mxu0 0
      %593 = vmatpush.bf16.msra.mxu0 %v546
      %594 = vmatpush.bf16.msra.mxu0 %v543
      %595 = vmatpush.bf16.msra.mxu0 %v540
      %596 = vmatpush.bf16.msra.mxu0 %v537
      %597 = vmatmul.bf16.gmra.mxu0 %v561
      %v598 = vpop.f32.mrf.mxu0
      %v599 = vadd.f32 0.0, %v598
      %v600 = vpop.f32.mrf.mxu0
      %601 = vdwg.mxu0
      %v618 = vunpack.c.l.b16 %v462
      %v619 = vunpack.c.h.b16 %v462
      %v620 = vunpack.c.l.b16 %v463
      %v621 = vunpack.c.l.b16 %v464
      %v622 = vunpack.c.h.b16 %v464
      %v623 = vunpack.c.l.b16 %v465
      %v624 = vunpack.c.l.b16 %v466
      %v625 = vunpack.c.h.b16 %v466
      %v626 = vunpack.c.l.b16 %v467
      %v627 = vunpack.c.l.b16 %v468
      %v628 = vunpack.c.h.b16 %v468
      %v629 = vunpack.c.l.b16 %v469
      %v630 = vunpack.c.l.b16 %v470
      %v631 = vunpack.c.h.b16 %v470
      %v632 = vunpack.c.l.b16 %v471
      %v633 = vunpack.c.l.b16 %v472
      %v634 = vunpack.c.h.b16 %v472
      %v635 = vunpack.c.l.b16 %v473
      %v636 = vunpack.c.l.b16 %v474
      %v637 = vunpack.c.h.b16 %v474
      %v638 = vunpack.c.l.b16 %v475
      %v639 = vunpack.c.l.b16 %v476
      %v640 = vunpack.c.h.b16 %v476
      %v641 = vunpack.c.l.b16 %v477
      %v642 = vpack.c.b16 %v621, %v618
      %v643 = vpack.c.b16 %v622, %v619
      %v644 = vpack.c.b16 %v623, %v620
      %v645 = vpack.c.b16 %v627, %v624
      %v646 = vpack.c.b16 %v628, %v625
      %v647 = vpack.c.b16 %v629, %v626
      %v648 = vpack.c.b16 %v633, %v630
      %v649 = vpack.c.b16 %v634, %v631
      %v650 = vpack.c.b16 %v635, %v632
      %v651 = vpack.c.b16 %v639, %v636
      %v652 = vpack.c.b16 %v640, %v637
      %v653 = vpack.c.b16 %v641, %v638
      %v667 = vsel %vm559, %v458, 0
      %669 = vmatpush.bf16.msra.mxu0 0
      %670 = vmatpush.bf16.msra.mxu0 0
      %671 = vmatpush.bf16.msra.mxu0 0
      %672 = vmatpush.bf16.msra.mxu0 0
      %673 = vmatpush.bf16.msra.mxu0 %v651
      %674 = vmatpush.bf16.msra.mxu0 %v648
      %675 = vmatpush.bf16.msra.mxu0 %v645
      %676 = vmatpush.bf16.msra.mxu0 %v642
      %677 = vmatmul.bf16.gmra.mxu0 %v667
      %v678 = vpop.f32.mrf.mxu0
      %v679 = vadd.f32 %v573, %v678
      %v680 = vpop.f32.mrf.mxu0
      %681 = vdwg.mxu0
      %682 = vmatpush.bf16.msra.mxu0 0
      %683 = vmatpush.bf16.msra.mxu0 0
      %684 = vmatpush.bf16.msra.mxu0 0
      %685 = vmatpush.bf16.msra.mxu0 0
      %686 = vmatpush.bf16.msra.mxu0 %v652
      %687 = vmatpush.bf16.msra.mxu0 %v649
      %688 = vmatpush.bf16.msra.mxu0 %v646
      %689 = vmatpush.bf16.msra.mxu0 %v643
      %690 = vmatmul.bf16.gmra.mxu0 %v667
      %v691 = vpop.f32.mrf.mxu0
      %v692 = vadd.f32 %v586, %v691
      %v693 = vpop.f32.mrf.mxu0
      %694 = vdwg.mxu0
      %695 = vmatpush.bf16.msra.mxu0 0
      %696 = vmatpush.bf16.msra.mxu0 0
      %697 = vmatpush.bf16.msra.mxu0 0
      %698 = vmatpush.bf16.msra.mxu0 0
      %699 = vmatpush.bf16.msra.mxu0 %v653
      %700 = vmatpush.bf16.msra.mxu0 %v650
      %701 = vmatpush.bf16.msra.mxu0 %v647
      %702 = vmatpush.bf16.msra.mxu0 %v644
      %703 = vmatmul.bf16.gmra.mxu0 %v667
      %v704 = vpop.f32.mrf.mxu0
      %v705 = vadd.f32 %v599, %v704
      %v706 = vpop.f32.mrf.mxu0
      %707 = vdwg.mxu0
      %s708 = scalar_lea.vmem %s3, 192
      %v709 = vld [vmem:[%s708] sm:$0xff]
      %v710 = vld [vmem:[%s708 + $0x8] sm:$0xf]
      %v711 = vld [vmem:[%s708 + $0xc] sm:$0xff]
      %v712 = vld [vmem:[%s708 + $0x14] sm:$0xf]
      %v713 = vld [vmem:[%s708 + $0x18] sm:$0xff]
      %v714 = vld [vmem:[%s708 + $0x20] sm:$0xf]
      %v715 = vld [vmem:[%s708 + $0x24] sm:$0xff]
      %v716 = vld [vmem:[%s708 + $0x2c] sm:$0xf]
      %v717 = vld [vmem:[%s708 + $0x30] sm:$0xff]
      %v718 = vld [vmem:[%s708 + $0x38] sm:$0xf]
      %v719 = vld [vmem:[%s708 + $0x3c] sm:$0xff]
      %v720 = vld [vmem:[%s708 + $0x44] sm:$0xf]
      %v721 = vld [vmem:[%s708 + $0x48] sm:$0xff]
      %v722 = vld [vmem:[%s708 + $0x50] sm:$0xf]
      %v723 = vld [vmem:[%s708 + $0x54] sm:$0xff]
      %v724 = vld [vmem:[%s708 + $0x5c] sm:$0xf]
      %s725 = scalar_lea.vmem %s3, 288
      %v726 = vld [vmem:[%s725] sm:$0xff]
      %v727 = vld [vmem:[%s725 + $0x8] sm:$0xf]
      %v728 = vld [vmem:[%s725 + $0xc] sm:$0xff]
      %v729 = vld [vmem:[%s725 + $0x14] sm:$0xf]
      %v730 = vld [vmem:[%s725 + $0x18] sm:$0xff]
      %v731 = vld [vmem:[%s725 + $0x20] sm:$0xf]
      %v732 = vld [vmem:[%s725 + $0x24] sm:$0xff]
      %v733 = vld [vmem:[%s725 + $0x2c] sm:$0xf]
      %v734 = vld [vmem:[%s725 + $0x30] sm:$0xff]
      %v735 = vld [vmem:[%s725 + $0x38] sm:$0xf]
      %v736 = vld [vmem:[%s725 + $0x3c] sm:$0xff]
      %v737 = vld [vmem:[%s725 + $0x44] sm:$0xf]
      %v738 = vld [vmem:[%s725 + $0x48] sm:$0xff]
      %v739 = vld [vmem:[%s725 + $0x50] sm:$0xf]
      %v740 = vld [vmem:[%s725 + $0x54] sm:$0xff]
      %v741 = vld [vmem:[%s725 + $0x5c] sm:$0xf]
      %v758 = vunpack.c.l.b16 %v726
      %v759 = vunpack.c.h.b16 %v726
      %v760 = vunpack.c.l.b16 %v727
      %v761 = vunpack.c.l.b16 %v728
      %v762 = vunpack.c.h.b16 %v728
      %v763 = vunpack.c.l.b16 %v729
      %v764 = vunpack.c.l.b16 %v730
      %v765 = vunpack.c.h.b16 %v730
      %v766 = vunpack.c.l.b16 %v731
      %v767 = vunpack.c.l.b16 %v732
      %v768 = vunpack.c.h.b16 %v732
      %v769 = vunpack.c.l.b16 %v733
      %v770 = vunpack.c.l.b16 %v734
      %v771 = vunpack.c.h.b16 %v734
      %v772 = vunpack.c.l.b16 %v735
      %v773 = vunpack.c.l.b16 %v736
      %v774 = vunpack.c.h.b16 %v736
      %v775 = vunpack.c.l.b16 %v737
      %v776 = vunpack.c.l.b16 %v738
      %v777 = vunpack.c.h.b16 %v738
      %v778 = vunpack.c.l.b16 %v739
      %v779 = vunpack.c.l.b16 %v740
      %v780 = vunpack.c.h.b16 %v740
      %v781 = vunpack.c.l.b16 %v741
      %v782 = vpack.c.b16 %v761, %v758
      %v783 = vpack.c.b16 %v762, %v759
      %v784 = vpack.c.b16 %v763, %v760
      %v785 = vpack.c.b16 %v767, %v764
      %v786 = vpack.c.b16 %v768, %v765
      %v787 = vpack.c.b16 %v769, %v766
      %v788 = vpack.c.b16 %v773, %v770
      %v789 = vpack.c.b16 %v774, %v771
      %v790 = vpack.c.b16 %v775, %v772
      %v791 = vpack.c.b16 %v779, %v776
      %v792 = vpack.c.b16 %v780, %v777
      %v793 = vpack.c.b16 %v781, %v778
      %v807 = vsel %vm559, %v461, 0
      %809 = vmatpush.bf16.msra.mxu0 0
      %810 = vmatpush.bf16.msra.mxu0 0
      %811 = vmatpush.bf16.msra.mxu0 0
      %812 = vmatpush.bf16.msra.mxu0 0
      %813 = vmatpush.bf16.msra.mxu0 %v791
      %814 = vmatpush.bf16.msra.mxu0 %v788
      %815 = vmatpush.bf16.msra.mxu0 %v785
      %816 = vmatpush.bf16.msra.mxu0 %v782
      %817 = vmatmul.bf16.gmra.mxu0 %v807
      %v818 = vpop.f32.mrf.mxu0
      %v819 = vadd.f32 0.0, %v818
      %v820 = vpop.f32.mrf.mxu0
      %821 = vdwg.mxu0
      %822 = vmatpush.bf16.msra.mxu0 0
      %823 = vmatpush.bf16.msra.mxu0 0
      %824 = vmatpush.bf16.msra.mxu0 0
      %825 = vmatpush.bf16.msra.mxu0 0
      %826 = vmatpush.bf16.msra.mxu0 %v792
      %827 = vmatpush.bf16.msra.mxu0 %v789
      %828 = vmatpush.bf16.msra.mxu0 %v786
      %829 = vmatpush.bf16.msra.mxu0 %v783
      %830 = vmatmul.bf16.gmra.mxu0 %v807
      %v831 = vpop.f32.mrf.mxu0
      %v832 = vadd.f32 0.0, %v831
      %v833 = vpop.f32.mrf.mxu0
      %834 = vdwg.mxu0
      %835 = vmatpush.bf16.msra.mxu0 0
      %836 = vmatpush.bf16.msra.mxu0 0
      %837 = vmatpush.bf16.msra.mxu0 0
      %838 = vmatpush.bf16.msra.mxu0 0
      %839 = vmatpush.bf16.msra.mxu0 %v793
      %840 = vmatpush.bf16.msra.mxu0 %v790
      %841 = vmatpush.bf16.msra.mxu0 %v787
      %842 = vmatpush.bf16.msra.mxu0 %v784
      %843 = vmatmul.bf16.gmra.mxu0 %v807
      %v844 = vpop.f32.mrf.mxu0
      %v845 = vadd.f32 0.0, %v844
      %v846 = vpop.f32.mrf.mxu0
      %847 = vdwg.mxu0
      %v864 = vunpack.c.l.b16 %v709
      %v865 = vunpack.c.h.b16 %v709
      %v866 = vunpack.c.l.b16 %v710
      %v867 = vunpack.c.l.b16 %v711
      %v868 = vunpack.c.h.b16 %v711
      %v869 = vunpack.c.l.b16 %v712
      %v870 = vunpack.c.l.b16 %v713
      %v871 = vunpack.c.h.b16 %v713
      %v872 = vunpack.c.l.b16 %v714
      %v873 = vunpack.c.l.b16 %v715
      %v874 = vunpack.c.h.b16 %v715
      %v875 = vunpack.c.l.b16 %v716
      %v876 = vunpack.c.l.b16 %v717
      %v877 = vunpack.c.h.b16 %v717
      %v878 = vunpack.c.l.b16 %v718
      %v879 = vunpack.c.l.b16 %v719
      %v880 = vunpack.c.h.b16 %v719
      %v881 = vunpack.c.l.b16 %v720
      %v882 = vunpack.c.l.b16 %v721
      %v883 = vunpack.c.h.b16 %v721
      %v884 = vunpack.c.l.b16 %v722
      %v885 = vunpack.c.l.b16 %v723
      %v886 = vunpack.c.h.b16 %v723
      %v887 = vunpack.c.l.b16 %v724
      %v888 = vpack.c.b16 %v867, %v864
      %v889 = vpack.c.b16 %v868, %v865
      %v890 = vpack.c.b16 %v869, %v866
      %v891 = vpack.c.b16 %v873, %v870
      %v892 = vpack.c.b16 %v874, %v871
      %v893 = vpack.c.b16 %v875, %v872
      %v894 = vpack.c.b16 %v879, %v876
      %v895 = vpack.c.b16 %v880, %v877
      %v896 = vpack.c.b16 %v881, %v878
      %v897 = vpack.c.b16 %v885, %v882
      %v898 = vpack.c.b16 %v886, %v883
      %v899 = vpack.c.b16 %v887, %v884
      %v913 = vsel %vm559, %v460, 0
      %915 = vmatpush.bf16.msra.mxu0 0
      %916 = vmatpush.bf16.msra.mxu0 0
      %917 = vmatpush.bf16.msra.mxu0 0
      %918 = vmatpush.bf16.msra.mxu0 0
      %919 = vmatpush.bf16.msra.mxu0 %v897
      %920 = vmatpush.bf16.msra.mxu0 %v894
      %921 = vmatpush.bf16.msra.mxu0 %v891
      %922 = vmatpush.bf16.msra.mxu0 %v888
      %923 = vmatmul.bf16.gmra.mxu0 %v913
      %v924 = vpop.f32.mrf.mxu0
      %v925 = vadd.f32 %v819, %v924
      %v926 = vpop.f32.mrf.mxu0
      %927 = vdwg.mxu0
      %928 = vmatpush.bf16.msra.mxu0 0
      %929 = vmatpush.bf16.msra.mxu0 0
      %930 = vmatpush.bf16.msra.mxu0 0
      %931 = vmatpush.bf16.msra.mxu0 0
      %932 = vmatpush.bf16.msra.mxu0 %v898
      %933 = vmatpush.bf16.msra.mxu0 %v895
      %934 = vmatpush.bf16.msra.mxu0 %v892
      %935 = vmatpush.bf16.msra.mxu0 %v889
      %936 = vmatmul.bf16.gmra.mxu0 %v913
      %v937 = vpop.f32.mrf.mxu0
      %v938 = vadd.f32 %v832, %v937
      %v939 = vpop.f32.mrf.mxu0
      %940 = vdwg.mxu0
      %941 = vmatpush.bf16.msra.mxu0 0
      %942 = vmatpush.bf16.msra.mxu0 0
      %943 = vmatpush.bf16.msra.mxu0 0
      %944 = vmatpush.bf16.msra.mxu0 0
      %945 = vmatpush.bf16.msra.mxu0 %v899
      %946 = vmatpush.bf16.msra.mxu0 %v896
      %947 = vmatpush.bf16.msra.mxu0 %v893
      %948 = vmatpush.bf16.msra.mxu0 %v890
      %949 = vmatmul.bf16.gmra.mxu0 %v913
      %v950 = vpop.f32.mrf.mxu0
      %v951 = vadd.f32 %v845, %v950
      %v952 = vpop.f32.mrf.mxu0
      %953 = vdwg.mxu0
      %v954 = vadd.f32 %v679, %v925
      %v955 = vadd.f32 %v692, %v938
      %v956 = vadd.f32 %v705, %v951
      %v957 = vld [vmem:[%s4] sm:$0xff]
      %v958 = vld [vmem:[%s4 + $0x8] sm:$0xff]
      %v959 = vld [vmem:[%s4 + $0x10] sm:$0xff]
      %v960 = vadd.f32 %v954, %v957
      %v961 = vadd.f32 %v955, %v958
      %v962 = vadd.f32 %v956, %v959
      %v963 = vpack.c.bf16 %v961, %v960
      %v964 = vpack.c.bf16 %v962, %v962
      %965 = vst [vmem:[#allocation2] sm:$0xff] %v963
      %966 = vst [vmem:[#allocation2 + $0x8] sm:$0xf] %v964
      %967 = vst [vmem:[#allocation2 + $0xc] sm:$0xf] 0
      %v968 = vld [vmem:[%s5] sm:$0xf]
      %v969 = vld [vmem:[%s403] sm:$0xff]
      %v970 = vld [vmem:[%s403 + $0x8] sm:$0xf]
      %v971 = vld [vmem:[%s6] sm:$0xf]
      %v972 = vld [vmem:[#allocation2] sm:$0xff]
      %v973 = vld [vmem:[#allocation2 + $0x8] sm:$0xf]
      %s974 = scalar_lea.vmem %s5, 4
      %v975 = vld [vmem:[%s974] sm:$0xf]
      %v976 = vld [vmem:[%s403] sm:$0xff]
      %v977 = vld [vmem:[%s403 + $0x8] sm:$0xff]
      %v980 = vunpack.c.l.b16 %v976
      %v981 = vunpack.c.h.b16 %v976
      %v982 = vunpack.c.l.b16 %v977
      %v983 = vunpack.c.h.b16 %v977
      %v984 = vpack.c.b16 %v980, %v980
      %v985 = vpack.c.b16 %v981, %v981
      %v986 = vpack.c.b16 %v982, %v982
      %v987 = vpack.c.b16 %v983, %v983
      %988 = vrot.lane.b32.xlu0 %v984, 127
      %v989 = vpop.permute.xlu0 %988
      %990 = vrot.lane.b32.xlu0 %v985, 127
      %v991 = vpop.permute.xlu0 %990
      %992 = vrot.lane.b32.xlu0 %v986, 127
      %v993 = vpop.permute.xlu0 %992
      %994 = vrot.lane.b32.xlu0 %v987, 127
      %v995 = vpop.permute.xlu0 %994
      %vm996 = vcmask 1039360
      %v997 = vsel %vm996, %v989, %v991
      %v998 = vsel %vm996, %v991, %v993
      %v999 = vsel %vm996, %v993, %v995
      %vm1000 = vcmask 64512
      %v1002 = vsel %vm1000, %v975, 0
      %vm1004 = vcmask 1043456
      %v1006 = vsel %vm1004, %v997, 0
      %v1009 = vsel %vm1004, %v998, 0
      %v1012 = vsel %vm1004, %v999, 0
      %1014 = vmatpush.bf16.msra.mxu0 0
      %1015 = vmatpush.bf16.msra.mxu0 0
      %1016 = vmatpush.bf16.msra.mxu0 0
      %1017 = vmatpush.bf16.msra.mxu0 0
      %1018 = vmatpush.bf16.msra.mxu0 0
      %1019 = vmatpush.bf16.msra.mxu0 0
      %1020 = vmatpush.bf16.msra.mxu0 0
      %1021 = vmatpush.bf16.msra.mxu0 %v1006
      %1022 = vmatmul.bf16.gmra.mxu0 %v1002
      %v1023 = vpop.f32.mrf.mxu0
      %v1024 = vadd.f32 0.0, %v1023
      %v1025 = vpop.f32.mrf.mxu0
      %1026 = vdwg.mxu0
      %1027 = vmatpush.bf16.msra.mxu0 0
      %1028 = vmatpush.bf16.msra.mxu0 0
      %1029 = vmatpush.bf16.msra.mxu0 0
      %1030 = vmatpush.bf16.msra.mxu0 0
      %1031 = vmatpush.bf16.msra.mxu0 0
      %1032 = vmatpush.bf16.msra.mxu0 0
      %1033 = vmatpush.bf16.msra.mxu0 0
      %1034 = vmatpush.bf16.msra.mxu0 %v1009
      %1035 = vmatmul.bf16.gmra.mxu0 %v1002
      %v1036 = vpop.f32.mrf.mxu0
      %v1037 = vadd.f32 0.0, %v1036
      %v1038 = vpop.f32.mrf.mxu0
      %1039 = vdwg.mxu0
      %1040 = vmatpush.bf16.msra.mxu0 0
      %1041 = vmatpush.bf16.msra.mxu0 0
      %1042 = vmatpush.bf16.msra.mxu0 0
      %1043 = vmatpush.bf16.msra.mxu0 0
      %1044 = vmatpush.bf16.msra.mxu0 0
      %1045 = vmatpush.bf16.msra.mxu0 0
      %1046 = vmatpush.bf16.msra.mxu0 0
      %1047 = vmatpush.bf16.msra.mxu0 %v1012
      %1048 = vmatmul.bf16.gmra.mxu0 %v1002
      %v1049 = vpop.f32.mrf.mxu0
      %v1050 = vadd.f32 0.0, %v1049
      %v1051 = vpop.f32.mrf.mxu0
      %1052 = vdwg.mxu0
      %v1055 = vunpack.c.l.b16 %v969
      %v1056 = vunpack.c.h.b16 %v969
      %v1057 = vunpack.c.l.b16 %v970
      %v1058 = vpack.c.b16 %v1055, %v1055
      %v1059 = vpack.c.b16 %v1056, %v1056
      %v1060 = vpack.c.b16 %v1057, %v1057
      %v1062 = vsel %vm1000, %v968, 0
      %v1065 = vsel %vm1004, %v1058, 0
      %v1068 = vsel %vm1004, %v1059, 0
      %v1071 = vsel %vm1004, %v1060, 0
      %1073 = vmatpush.bf16.msra.mxu0 0
      %1074 = vmatpush.bf16.msra.mxu0 0
      %1075 = vmatpush.bf16.msra.mxu0 0
      %1076 = vmatpush.bf16.msra.mxu0 0
      %1077 = vmatpush.bf16.msra.mxu0 0
      %1078 = vmatpush.bf16.msra.mxu0 0
      %1079 = vmatpush.bf16.msra.mxu0 0
      %1080 = vmatpush.bf16.msra.mxu0 %v1065
      %1081 = vmatmul.bf16.gmra.mxu0 %v1062
      %v1082 = vpop.f32.mrf.mxu0
      %v1083 = vadd.f32 %v1024, %v1082
      %v1084 = vpop.f32.mrf.mxu0
      %1085 = vdwg.mxu0
      %1086 = vmatpush.bf16.msra.mxu0 0
      %1087 = vmatpush.bf16.msra.mxu0 0
      %1088 = vmatpush.bf16.msra.mxu0 0
      %1089 = vmatpush.bf16.msra.mxu0 0
      %1090 = vmatpush.bf16.msra.mxu0 0
      %1091 = vmatpush.bf16.msra.mxu0 0
      %1092 = vmatpush.bf16.msra.mxu0 0
      %1093 = vmatpush.bf16.msra.mxu0 %v1068
      %1094 = vmatmul.bf16.gmra.mxu0 %v1062
      %v1095 = vpop.f32.mrf.mxu0
      %v1096 = vadd.f32 %v1037, %v1095
      %v1097 = vpop.f32.mrf.mxu0
      %1098 = vdwg.mxu0
      %1099 = vmatpush.bf16.msra.mxu0 0
      %1100 = vmatpush.bf16.msra.mxu0 0
      %1101 = vmatpush.bf16.msra.mxu0 0
      %1102 = vmatpush.bf16.msra.mxu0 0
      %1103 = vmatpush.bf16.msra.mxu0 0
      %1104 = vmatpush.bf16.msra.mxu0 0
      %1105 = vmatpush.bf16.msra.mxu0 0
      %1106 = vmatpush.bf16.msra.mxu0 %v1071
      %1107 = vmatmul.bf16.gmra.mxu0 %v1062
      %v1108 = vpop.f32.mrf.mxu0
      %v1109 = vadd.f32 %v1050, %v1108
      %v1110 = vpop.f32.mrf.mxu0
      %1111 = vdwg.mxu0
      %s1112 = scalar_lea.vmem %s6, 4
      %v1113 = vld [vmem:[%s1112] sm:$0xf]
      %v1114 = vld [vmem:[#allocation2] sm:$0xff]
      %v1115 = vld [vmem:[#allocation2 + $0x8] sm:$0xff]
      %v1118 = vunpack.c.l.b16 %v1114
      %v1119 = vunpack.c.h.b16 %v1114
      %v1120 = vunpack.c.l.b16 %v1115
      %v1121 = vunpack.c.h.b16 %v1115
      %v1122 = vpack.c.b16 %v1118, %v1118
      %v1123 = vpack.c.b16 %v1119, %v1119
      %v1124 = vpack.c.b16 %v1120, %v1120
      %v1125 = vpack.c.b16 %v1121, %v1121
      %1126 = vrot.lane.b32.xlu0 %v1122, 127
      %v1127 = vpop.permute.xlu0 %1126
      %1128 = vrot.lane.b32.xlu0 %v1123, 127
      %v1129 = vpop.permute.xlu0 %1128
      %1130 = vrot.lane.b32.xlu0 %v1124, 127
      %v1131 = vpop.permute.xlu0 %1130
      %1132 = vrot.lane.b32.xlu0 %v1125, 127
      %v1133 = vpop.permute.xlu0 %1132
      %v1134 = vsel %vm996, %v1127, %v1129
      %v1135 = vsel %vm996, %v1129, %v1131
      %v1136 = vsel %vm996, %v1131, %v1133
      %v1138 = vsel %vm1000, %v1113, 0
      %v1141 = vsel %vm1004, %v1134, 0
      %v1144 = vsel %vm1004, %v1135, 0
      %v1147 = vsel %vm1004, %v1136, 0
      %1149 = vmatpush.bf16.msra.mxu0 0
      %1150 = vmatpush.bf16.msra.mxu0 0
      %1151 = vmatpush.bf16.msra.mxu0 0
      %1152 = vmatpush.bf16.msra.mxu0 0
      %1153 = vmatpush.bf16.msra.mxu0 0
      %1154 = vmatpush.bf16.msra.mxu0 0
      %1155 = vmatpush.bf16.msra.mxu0 0
      %1156 = vmatpush.bf16.msra.mxu0 %v1141
      %1157 = vmatmul.bf16.gmra.mxu0 %v1138
      %v1158 = vpop.f32.mrf.mxu0
      %v1159 = vadd.f32 0.0, %v1158
      %v1160 = vpop.f32.mrf.mxu0
      %1161 = vdwg.mxu0
      %1162 = vmatpush.bf16.msra.mxu0 0
      %1163 = vmatpush.bf16.msra.mxu0 0
      %1164 = vmatpush.bf16.msra.mxu0 0
      %1165 = vmatpush.bf16.msra.mxu0 0
      %1166 = vmatpush.bf16.msra.mxu0 0
      %1167 = vmatpush.bf16.msra.mxu0 0
      %1168 = vmatpush.bf16.msra.mxu0 0
      %1169 = vmatpush.bf16.msra.mxu0 %v1144
      %1170 = vmatmul.bf16.gmra.mxu0 %v1138
      %v1171 = vpop.f32.mrf.mxu0
      %v1172 = vadd.f32 0.0, %v1171
      %v1173 = vpop.f32.mrf.mxu0
      %1174 = vdwg.mxu0
      %1175 = vmatpush.bf16.msra.mxu0 0
      %1176 = vmatpush.bf16.msra.mxu0 0
      %1177 = vmatpush.bf16.msra.mxu0 0
      %1178 = vmatpush.bf16.msra.mxu0 0
      %1179 = vmatpush.bf16.msra.mxu0 0
      %1180 = vmatpush.bf16.msra.mxu0 0
      %1181 = vmatpush.bf16.msra.mxu0 0
      %1182 = vmatpush.bf16.msra.mxu0 %v1147
      %1183 = vmatmul.bf16.gmra.mxu0 %v1138
      %v1184 = vpop.f32.mrf.mxu0
      %v1185 = vadd.f32 0.0, %v1184
      %v1186 = vpop.f32.mrf.mxu0
      %1187 = vdwg.mxu0
      %v1190 = vunpack.c.l.b16 %v972
      %v1191 = vunpack.c.h.b16 %v972
      %v1192 = vunpack.c.l.b16 %v973
      %v1193 = vpack.c.b16 %v1190, %v1190
      %v1194 = vpack.c.b16 %v1191, %v1191
      %v1195 = vpack.c.b16 %v1192, %v1192
      %v1197 = vsel %vm1000, %v971, 0
      %v1200 = vsel %vm1004, %v1193, 0
      %v1203 = vsel %vm1004, %v1194, 0
      %v1206 = vsel %vm1004, %v1195, 0
      %1208 = vmatpush.bf16.msra.mxu0 0
      %1209 = vmatpush.bf16.msra.mxu0 0
      %1210 = vmatpush.bf16.msra.mxu0 0
      %1211 = vmatpush.bf16.msra.mxu0 0
      %1212 = vmatpush.bf16.msra.mxu0 0
      %1213 = vmatpush.bf16.msra.mxu0 0
      %1214 = vmatpush.bf16.msra.mxu0 0
      %1215 = vmatpush.bf16.msra.mxu0 %v1200
      %1216 = vmatmul.bf16.gmra.mxu0 %v1197
      %v1217 = vpop.f32.mrf.mxu0
      %v1218 = vadd.f32 %v1159, %v1217
      %v1219 = vpop.f32.mrf.mxu0
      %1220 = vdwg.mxu0
      %1221 = vmatpush.bf16.msra.mxu0 0
      %1222 = vmatpush.bf16.msra.mxu0 0
      %1223 = vmatpush.bf16.msra.mxu0 0
      %1224 = vmatpush.bf16.msra.mxu0 0
      %1225 = vmatpush.bf16.msra.mxu0 0
      %1226 = vmatpush.bf16.msra.mxu0 0
      %1227 = vmatpush.bf16.msra.mxu0 0
      %1228 = vmatpush.bf16.msra.mxu0 %v1203
      %1229 = vmatmul.bf16.gmra.mxu0 %v1197
      %v1230 = vpop.f32.mrf.mxu0
      %v1231 = vadd.f32 %v1172, %v1230
      %v1232 = vpop.f32.mrf.mxu0
      %1233 = vdwg.mxu0
      %1234 = vmatpush.bf16.msra.mxu0 0
      %1235 = vmatpush.bf16.msra.mxu0 0
      %1236 = vmatpush.bf16.msra.mxu0 0
      %1237 = vmatpush.bf16.msra.mxu0 0
      %1238 = vmatpush.bf16.msra.mxu0 0
      %1239 = vmatpush.bf16.msra.mxu0 0
      %1240 = vmatpush.bf16.msra.mxu0 0
      %1241 = vmatpush.bf16.msra.mxu0 %v1206
      %1242 = vmatmul.bf16.gmra.mxu0 %v1197
      %v1243 = vpop.f32.mrf.mxu0
      %v1244 = vadd.f32 %v1185, %v1243
      %v1245 = vpop.f32.mrf.mxu0
      %1246 = vdwg.mxu0
      %s1247 = scalar_lea.vmem %s5, 8
      %v1248 = vld [vmem:[%s1247] sm:$0xf]
      %1249 = vrot.lane.b32.xlu0 %v984, 126
      %v1250 = vpop.permute.xlu0 %1249
      %1251 = vrot.lane.b32.xlu0 %v985, 126
      %v1252 = vpop.permute.xlu0 %1251
      %1253 = vrot.lane.b32.xlu0 %v986, 126
      %v1254 = vpop.permute.xlu0 %1253
      %1255 = vrot.lane.b32.xlu0 %v987, 126
      %v1256 = vpop.permute.xlu0 %1255
      %vm1257 = vcmask 1031168
      %v1258 = vsel %vm1257, %v1250, %v1252
      %v1259 = vsel %vm1257, %v1252, %v1254
      %v1260 = vsel %vm1257, %v1254, %v1256
      %v1262 = vsel %vm1000, %v1248, 0
      %v1265 = vsel %vm1004, %v1258, 0
      %v1268 = vsel %vm1004, %v1259, 0
      %v1271 = vsel %vm1004, %v1260, 0
      %1273 = vmatpush.bf16.msra.mxu0 0
      %1274 = vmatpush.bf16.msra.mxu0 0
      %1275 = vmatpush.bf16.msra.mxu0 0
      %1276 = vmatpush.bf16.msra.mxu0 0
      %1277 = vmatpush.bf16.msra.mxu0 0
      %1278 = vmatpush.bf16.msra.mxu0 0
      %1279 = vmatpush.bf16.msra.mxu0 0
      %1280 = vmatpush.bf16.msra.mxu0 %v1265
      %1281 = vmatmul.bf16.gmra.mxu0 %v1262
      %v1282 = vpop.f32.mrf.mxu0
      %v1283 = vadd.f32 0.0, %v1282
      %v1284 = vpop.f32.mrf.mxu0
      %1285 = vdwg.mxu0
      %1286 = vmatpush.bf16.msra.mxu0 0
      %1287 = vmatpush.bf16.msra.mxu0 0
      %1288 = vmatpush.bf16.msra.mxu0 0
      %1289 = vmatpush.bf16.msra.mxu0 0
      %1290 = vmatpush.bf16.msra.mxu0 0
      %1291 = vmatpush.bf16.msra.mxu0 0
      %1292 = vmatpush.bf16.msra.mxu0 0
      %1293 = vmatpush.bf16.msra.mxu0 %v1268
      %1294 = vmatmul.bf16.gmra.mxu0 %v1262
      %v1295 = vpop.f32.mrf.mxu0
      %v1296 = vadd.f32 0.0, %v1295
      %v1297 = vpop.f32.mrf.mxu0
      %1298 = vdwg.mxu0
      %1299 = vmatpush.bf16.msra.mxu0 0
      %1300 = vmatpush.bf16.msra.mxu0 0
      %1301 = vmatpush.bf16.msra.mxu0 0
      %1302 = vmatpush.bf16.msra.mxu0 0
      %1303 = vmatpush.bf16.msra.mxu0 0
      %1304 = vmatpush.bf16.msra.mxu0 0
      %1305 = vmatpush.bf16.msra.mxu0 0
      %1306 = vmatpush.bf16.msra.mxu0 %v1271
      %1307 = vmatmul.bf16.gmra.mxu0 %v1262
      %v1308 = vpop.f32.mrf.mxu0
      %v1309 = vadd.f32 0.0, %v1308
      %v1310 = vpop.f32.mrf.mxu0
      %1311 = vdwg.mxu0
      %v1312 = vadd.f32 %v1083, %v1283
      %v1313 = vadd.f32 %v1096, %v1296
      %v1314 = vadd.f32 %v1109, %v1309
      %s1315 = scalar_lea.vmem %s6, 8
      %v1316 = vld [vmem:[%s1315] sm:$0xf]
      %1317 = vrot.lane.b32.xlu0 %v1122, 126
      %v1318 = vpop.permute.xlu0 %1317
      %1319 = vrot.lane.b32.xlu0 %v1123, 126
      %v1320 = vpop.permute.xlu0 %1319
      %1321 = vrot.lane.b32.xlu0 %v1124, 126
      %v1322 = vpop.permute.xlu0 %1321
      %1323 = vrot.lane.b32.xlu0 %v1125, 126
      %v1324 = vpop.permute.xlu0 %1323
      %v1325 = vsel %vm1257, %v1318, %v1320
      %v1326 = vsel %vm1257, %v1320, %v1322
      %v1327 = vsel %vm1257, %v1322, %v1324
      %v1329 = vsel %vm1000, %v1316, 0
      %v1332 = vsel %vm1004, %v1325, 0
      %v1335 = vsel %vm1004, %v1326, 0
      %v1338 = vsel %vm1004, %v1327, 0
      %1340 = vmatpush.bf16.msra.mxu0 0
      %1341 = vmatpush.bf16.msra.mxu0 0
      %1342 = vmatpush.bf16.msra.mxu0 0
      %1343 = vmatpush.bf16.msra.mxu0 0
      %1344 = vmatpush.bf16.msra.mxu0 0
      %1345 = vmatpush.bf16.msra.mxu0 0
      %1346 = vmatpush.bf16.msra.mxu0 0
      %1347 = vmatpush.bf16.msra.mxu0 %v1332
      %1348 = vmatmul.bf16.gmra.mxu0 %v1329
      %v1349 = vpop.f32.mrf.mxu0
      %v1350 = vadd.f32 0.0, %v1349
      %v1351 = vpop.f32.mrf.mxu0
      %1352 = vdwg.mxu0
      %1353 = vmatpush.bf16.msra.mxu0 0
      %1354 = vmatpush.bf16.msra.mxu0 0
      %1355 = vmatpush.bf16.msra.mxu0 0
      %1356 = vmatpush.bf16.msra.mxu0 0
      %1357 = vmatpush.bf16.msra.mxu0 0
      %1358 = vmatpush.bf16.msra.mxu0 0
      %1359 = vmatpush.bf16.msra.mxu0 0
      %1360 = vmatpush.bf16.msra.mxu0 %v1335
      %1361 = vmatmul.bf16.gmra.mxu0 %v1329
      %v1362 = vpop.f32.mrf.mxu0
      %v1363 = vadd.f32 0.0, %v1362
      %v1364 = vpop.f32.mrf.mxu0
      %1365 = vdwg.mxu0
      %1366 = vmatpush.bf16.msra.mxu0 0
      %1367 = vmatpush.bf16.msra.mxu0 0
      %1368 = vmatpush.bf16.msra.mxu0 0
      %1369 = vmatpush.bf16.msra.mxu0 0
      %1370 = vmatpush.bf16.msra.mxu0 0
      %1371 = vmatpush.bf16.msra.mxu0 0
      %1372 = vmatpush.bf16.msra.mxu0 0
      %1373 = vmatpush.bf16.msra.mxu0 %v1338
      %1374 = vmatmul.bf16.gmra.mxu0 %v1329
      %v1375 = vpop.f32.mrf.mxu0
      %v1376 = vadd.f32 0.0, %v1375
      %v1377 = vpop.f32.mrf.mxu0
      %1378 = vdwg.mxu0
      %v1379 = vadd.f32 %v1218, %v1350
      %v1380 = vadd.f32 %v1231, %v1363
      %v1381 = vadd.f32 %v1244, %v1376
      %s1382 = scalar_lea.vmem %s5, 12
      %v1383 = vld [vmem:[%s1382] sm:$0xf]
      %1384 = vrot.lane.b32.xlu0 %v984, 110
      %v1385 = vpop.permute.xlu0 %1384
      %1386 = vrot.lane.b32.xlu0 %v985, 110
      %v1387 = vpop.permute.xlu0 %1386
      %1388 = vrot.lane.b32.xlu0 %v986, 110
      %v1389 = vpop.permute.xlu0 %1388
      %1390 = vrot.lane.b32.xlu0 %v987, 110
      %v1391 = vpop.permute.xlu0 %1390
      %vm1392 = vcmask 900096
      %v1393 = vsel %vm1392, %v1385, %v1387
      %v1394 = vsel %vm1392, %v1387, %v1389
      %v1395 = vsel %vm1392, %v1389, %v1391
      %v1397 = vsel %vm1000, %v1383, 0
      %v1400 = vsel %vm1004, %v1393, 0
      %v1403 = vsel %vm1004, %v1394, 0
      %v1406 = vsel %vm1004, %v1395, 0
      %1408 = vmatpush.bf16.msra.mxu0 0
      %1409 = vmatpush.bf16.msra.mxu0 0
      %1410 = vmatpush.bf16.msra.mxu0 0
      %1411 = vmatpush.bf16.msra.mxu0 0
      %1412 = vmatpush.bf16.msra.mxu0 0
      %1413 = vmatpush.bf16.msra.mxu0 0
      %1414 = vmatpush.bf16.msra.mxu0 0
      %1415 = vmatpush.bf16.msra.mxu0 %v1400
      %1416 = vmatmul.bf16.gmra.mxu0 %v1397
      %v1417 = vpop.f32.mrf.mxu0
      %v1418 = vadd.f32 0.0, %v1417
      %v1419 = vpop.f32.mrf.mxu0
      %1420 = vdwg.mxu0
      %1421 = vmatpush.bf16.msra.mxu0 0
      %1422 = vmatpush.bf16.msra.mxu0 0
      %1423 = vmatpush.bf16.msra.mxu0 0
      %1424 = vmatpush.bf16.msra.mxu0 0
      %1425 = vmatpush.bf16.msra.mxu0 0
      %1426 = vmatpush.bf16.msra.mxu0 0
      %1427 = vmatpush.bf16.msra.mxu0 0
      %1428 = vmatpush.bf16.msra.mxu0 %v1403
      %1429 = vmatmul.bf16.gmra.mxu0 %v1397
      %v1430 = vpop.f32.mrf.mxu0
      %v1431 = vadd.f32 0.0, %v1430
      %v1432 = vpop.f32.mrf.mxu0
      %1433 = vdwg.mxu0
      %1434 = vmatpush.bf16.msra.mxu0 0
      %1435 = vmatpush.bf16.msra.mxu0 0
      %1436 = vmatpush.bf16.msra.mxu0 0
      %1437 = vmatpush.bf16.msra.mxu0 0
      %1438 = vmatpush.bf16.msra.mxu0 0
      %1439 = vmatpush.bf16.msra.mxu0 0
      %1440 = vmatpush.bf16.msra.mxu0 0
      %1441 = vmatpush.bf16.msra.mxu0 %v1406
      %1442 = vmatmul.bf16.gmra.mxu0 %v1397
      %v1443 = vpop.f32.mrf.mxu0
      %v1444 = vadd.f32 0.0, %v1443
      %v1445 = vpop.f32.mrf.mxu0
      %1446 = vdwg.mxu0
      %v1447 = vadd.f32 %v1312, %v1418
      %v1448 = vadd.f32 %v1313, %v1431
      %v1449 = vadd.f32 %v1314, %v1444
      %s1450 = scalar_lea.vmem %s6, 12
      %v1451 = vld [vmem:[%s1450] sm:$0xf]
      %1452 = vrot.lane.b32.xlu0 %v1122, 110
      %v1453 = vpop.permute.xlu0 %1452
      %1454 = vrot.lane.b32.xlu0 %v1123, 110
      %v1455 = vpop.permute.xlu0 %1454
      %1456 = vrot.lane.b32.xlu0 %v1124, 110
      %v1457 = vpop.permute.xlu0 %1456
      %1458 = vrot.lane.b32.xlu0 %v1125, 110
      %v1459 = vpop.permute.xlu0 %1458
      %v1460 = vsel %vm1392, %v1453, %v1455
      %v1461 = vsel %vm1392, %v1455, %v1457
      %v1462 = vsel %vm1392, %v1457, %v1459
      %v1464 = vsel %vm1000, %v1451, 0
      %v1467 = vsel %vm1004, %v1460, 0
      %v1470 = vsel %vm1004, %v1461, 0
      %v1473 = vsel %vm1004, %v1462, 0
      %1475 = vmatpush.bf16.msra.mxu0 0
      %1476 = vmatpush.bf16.msra.mxu0 0
      %1477 = vmatpush.bf16.msra.mxu0 0
      %1478 = vmatpush.bf16.msra.mxu0 0
      %1479 = vmatpush.bf16.msra.mxu0 0
      %1480 = vmatpush.bf16.msra.mxu0 0
      %1481 = vmatpush.bf16.msra.mxu0 0
      %1482 = vmatpush.bf16.msra.mxu0 %v1467
      %1483 = vmatmul.bf16.gmra.mxu0 %v1464
      %v1484 = vpop.f32.mrf.mxu0
      %v1485 = vadd.f32 0.0, %v1484
      %v1486 = vpop.f32.mrf.mxu0
      %1487 = vdwg.mxu0
      %1488 = vmatpush.bf16.msra.mxu0 0
      %1489 = vmatpush.bf16.msra.mxu0 0
      %1490 = vmatpush.bf16.msra.mxu0 0
      %1491 = vmatpush.bf16.msra.mxu0 0
      %1492 = vmatpush.bf16.msra.mxu0 0
      %1493 = vmatpush.bf16.msra.mxu0 0
      %1494 = vmatpush.bf16.msra.mxu0 0
      %1495 = vmatpush.bf16.msra.mxu0 %v1470
      %1496 = vmatmul.bf16.gmra.mxu0 %v1464
      %v1497 = vpop.f32.mrf.mxu0
      %v1498 = vadd.f32 0.0, %v1497
      %v1499 = vpop.f32.mrf.mxu0
      %1500 = vdwg.mxu0
      %1501 = vmatpush.bf16.msra.mxu0 0
      %1502 = vmatpush.bf16.msra.mxu0 0
      %1503 = vmatpush.bf16.msra.mxu0 0
      %1504 = vmatpush.bf16.msra.mxu0 0
      %1505 = vmatpush.bf16.msra.mxu0 0
      %1506 = vmatpush.bf16.msra.mxu0 0
      %1507 = vmatpush.bf16.msra.mxu0 0
      %1508 = vmatpush.bf16.msra.mxu0 %v1473
      %1509 = vmatmul.bf16.gmra.mxu0 %v1464
      %v1510 = vpop.f32.mrf.mxu0
      %v1511 = vadd.f32 0.0, %v1510
      %v1512 = vpop.f32.mrf.mxu0
      %1513 = vdwg.mxu0
      %v1514 = vadd.f32 %v1379, %v1485
      %v1515 = vadd.f32 %v1380, %v1498
      %v1516 = vadd.f32 %v1381, %v1511
      %s1517 = scalar_lea.vmem %s5, 16
      %v1518 = vld [vmem:[%s1517] sm:$0xf]
      %1519 = vrot.lane.b32.xlu0 %v984, 109
      %v1520 = vpop.permute.xlu0 %1519
      %1521 = vrot.lane.b32.xlu0 %v985, 109
      %v1522 = vpop.permute.xlu0 %1521
      %1523 = vrot.lane.b32.xlu0 %v986, 109
      %v1524 = vpop.permute.xlu0 %1523
      %1525 = vrot.lane.b32.xlu0 %v987, 109
      %v1526 = vpop.permute.xlu0 %1525
      %vm1527 = vcmask 891904
      %v1528 = vsel %vm1527, %v1520, %v1522
      %v1529 = vsel %vm1527, %v1522, %v1524
      %v1530 = vsel %vm1527, %v1524, %v1526
      %v1532 = vsel %vm1000, %v1518, 0
      %v1535 = vsel %vm1004, %v1528, 0
      %v1538 = vsel %vm1004, %v1529, 0
      %v1541 = vsel %vm1004, %v1530, 0
      %1543 = vmatpush.bf16.msra.mxu0 0
      %1544 = vmatpush.bf16.msra.mxu0 0
      %1545 = vmatpush.bf16.msra.mxu0 0
      %1546 = vmatpush.bf16.msra.mxu0 0
      %1547 = vmatpush.bf16.msra.mxu0 0
      %1548 = vmatpush.bf16.msra.mxu0 0
      %1549 = vmatpush.bf16.msra.mxu0 0
      %1550 = vmatpush.bf16.msra.mxu0 %v1535
      %1551 = vmatmul.bf16.gmra.mxu0 %v1532
      %v1552 = vpop.f32.mrf.mxu0
      %v1553 = vadd.f32 0.0, %v1552
      %v1554 = vpop.f32.mrf.mxu0
      %1555 = vdwg.mxu0
      %1556 = vmatpush.bf16.msra.mxu0 0
      %1557 = vmatpush.bf16.msra.mxu0 0
      %1558 = vmatpush.bf16.msra.mxu0 0
      %1559 = vmatpush.bf16.msra.mxu0 0
      %1560 = vmatpush.bf16.msra.mxu0 0
      %1561 = vmatpush.bf16.msra.mxu0 0
      %1562 = vmatpush.bf16.msra.mxu0 0
      %1563 = vmatpush.bf16.msra.mxu0 %v1538
      %1564 = vmatmul.bf16.gmra.mxu0 %v1532
      %v1565 = vpop.f32.mrf.mxu0
      %v1566 = vadd.f32 0.0, %v1565
      %v1567 = vpop.f32.mrf.mxu0
      %1568 = vdwg.mxu0
      %1569 = vmatpush.bf16.msra.mxu0 0
      %1570 = vmatpush.bf16.msra.mxu0 0
      %1571 = vmatpush.bf16.msra.mxu0 0
      %1572 = vmatpush.bf16.msra.mxu0 0
      %1573 = vmatpush.bf16.msra.mxu0 0
      %1574 = vmatpush.bf16.msra.mxu0 0
      %1575 = vmatpush.bf16.msra.mxu0 0
      %1576 = vmatpush.bf16.msra.mxu0 %v1541
      %1577 = vmatmul.bf16.gmra.mxu0 %v1532
      %v1578 = vpop.f32.mrf.mxu0
      %v1579 = vadd.f32 0.0, %v1578
      %v1580 = vpop.f32.mrf.mxu0
      %1581 = vdwg.mxu0
      %v1582 = vadd.f32 %v1447, %v1553
      %v1583 = vadd.f32 %v1448, %v1566
      %v1584 = vadd.f32 %v1449, %v1579
      %s1585 = scalar_lea.vmem %s6, 16
      %v1586 = vld [vmem:[%s1585] sm:$0xf]
      %1587 = vrot.lane.b32.xlu0 %v1122, 109
      %v1588 = vpop.permute.xlu0 %1587
      %1589 = vrot.lane.b32.xlu0 %v1123, 109
      %v1590 = vpop.permute.xlu0 %1589
      %1591 = vrot.lane.b32.xlu0 %v1124, 109
      %v1592 = vpop.permute.xlu0 %1591
      %1593 = vrot.lane.b32.xlu0 %v1125, 109
      %v1594 = vpop.permute.xlu0 %1593
      %v1595 = vsel %vm1527, %v1588, %v1590
      %v1596 = vsel %vm1527, %v1590, %v1592
      %v1597 = vsel %vm1527, %v1592, %v1594
      %v1599 = vsel %vm1000, %v1586, 0
      %v1602 = vsel %vm1004, %v1595, 0
      %v1605 = vsel %vm1004, %v1596, 0
      %v1608 = vsel %vm1004, %v1597, 0
      %1610 = vmatpush.bf16.msra.mxu0 0
      %1611 = vmatpush.bf16.msra.mxu0 0
      %1612 = vmatpush.bf16.msra.mxu0 0
      %1613 = vmatpush.bf16.msra.mxu0 0
      %1614 = vmatpush.bf16.msra.mxu0 0
      %1615 = vmatpush.bf16.msra.mxu0 0
      %1616 = vmatpush.bf16.msra.mxu0 0
      %1617 = vmatpush.bf16.msra.mxu0 %v1602
      %1618 = vmatmul.bf16.gmra.mxu0 %v1599
      %v1619 = vpop.f32.mrf.mxu0
      %v1620 = vadd.f32 0.0, %v1619
      %v1621 = vpop.f32.mrf.mxu0
      %1622 = vdwg.mxu0
      %1623 = vmatpush.bf16.msra.mxu0 0
      %1624 = vmatpush.bf16.msra.mxu0 0
      %1625 = vmatpush.bf16.msra.mxu0 0
      %1626 = vmatpush.bf16.msra.mxu0 0
      %1627 = vmatpush.bf16.msra.mxu0 0
      %1628 = vmatpush.bf16.msra.mxu0 0
      %1629 = vmatpush.bf16.msra.mxu0 0
      %1630 = vmatpush.bf16.msra.mxu0 %v1605
      %1631 = vmatmul.bf16.gmra.mxu0 %v1599
      %v1632 = vpop.f32.mrf.mxu0
      %v1633 = vadd.f32 0.0, %v1632
      %v1634 = vpop.f32.mrf.mxu0
      %1635 = vdwg.mxu0
      %1636 = vmatpush.bf16.msra.mxu0 0
      %1637 = vmatpush.bf16.msra.mxu0 0
      %1638 = vmatpush.bf16.msra.mxu0 0
      %1639 = vmatpush.bf16.msra.mxu0 0
      %1640 = vmatpush.bf16.msra.mxu0 0
      %1641 = vmatpush.bf16.msra.mxu0 0
      %1642 = vmatpush.bf16.msra.mxu0 0
      %1643 = vmatpush.bf16.msra.mxu0 %v1608
      %1644 = vmatmul.bf16.gmra.mxu0 %v1599
      %v1645 = vpop.f32.mrf.mxu0
      %v1646 = vadd.f32 0.0, %v1645
      %v1647 = vpop.f32.mrf.mxu0
      %1648 = vdwg.mxu0
      %v1649 = vadd.f32 %v1514, %v1620
      %v1650 = vadd.f32 %v1515, %v1633
      %v1651 = vadd.f32 %v1516, %v1646
      %s1652 = scalar_lea.vmem %s5, 20
      %v1653 = vld [vmem:[%s1652] sm:$0xf]
      %1654 = vrot.lane.b32.xlu0 %v984, 108
      %v1655 = vpop.permute.xlu0 %1654
      %1656 = vrot.lane.b32.xlu0 %v985, 108
      %v1657 = vpop.permute.xlu0 %1656
      %1658 = vrot.lane.b32.xlu0 %v986, 108
      %v1659 = vpop.permute.xlu0 %1658
      %1660 = vrot.lane.b32.xlu0 %v987, 108
      %v1661 = vpop.permute.xlu0 %1660
      %vm1662 = vcmask 883712
      %v1663 = vsel %vm1662, %v1655, %v1657
      %v1664 = vsel %vm1662, %v1657, %v1659
      %v1665 = vsel %vm1662, %v1659, %v1661
      %v1667 = vsel %vm1000, %v1653, 0
      %v1670 = vsel %vm1004, %v1663, 0
      %v1673 = vsel %vm1004, %v1664, 0
      %v1676 = vsel %vm1004, %v1665, 0
      %1678 = vmatpush.bf16.msra.mxu0 0
      %1679 = vmatpush.bf16.msra.mxu0 0
      %1680 = vmatpush.bf16.msra.mxu0 0
      %1681 = vmatpush.bf16.msra.mxu0 0
      %1682 = vmatpush.bf16.msra.mxu0 0
      %1683 = vmatpush.bf16.msra.mxu0 0
      %1684 = vmatpush.bf16.msra.mxu0 0
      %1685 = vmatpush.bf16.msra.mxu0 %v1670
      %1686 = vmatmul.bf16.gmra.mxu0 %v1667
      %v1687 = vpop.f32.mrf.mxu0
      %v1688 = vadd.f32 0.0, %v1687
      %v1689 = vpop.f32.mrf.mxu0
      %1690 = vdwg.mxu0
      %1691 = vmatpush.bf16.msra.mxu0 0
      %1692 = vmatpush.bf16.msra.mxu0 0
      %1693 = vmatpush.bf16.msra.mxu0 0
      %1694 = vmatpush.bf16.msra.mxu0 0
      %1695 = vmatpush.bf16.msra.mxu0 0
      %1696 = vmatpush.bf16.msra.mxu0 0
      %1697 = vmatpush.bf16.msra.mxu0 0
      %1698 = vmatpush.bf16.msra.mxu0 %v1673
      %1699 = vmatmul.bf16.gmra.mxu0 %v1667
      %v1700 = vpop.f32.mrf.mxu0
      %v1701 = vadd.f32 0.0, %v1700
      %v1702 = vpop.f32.mrf.mxu0
      %1703 = vdwg.mxu0
      %1704 = vmatpush.bf16.msra.mxu0 0
      %1705 = vmatpush.bf16.msra.mxu0 0
      %1706 = vmatpush.bf16.msra.mxu0 0
      %1707 = vmatpush.bf16.msra.mxu0 0
      %1708 = vmatpush.bf16.msra.mxu0 0
      %1709 = vmatpush.bf16.msra.mxu0 0
      %1710 = vmatpush.bf16.msra.mxu0 0
      %1711 = vmatpush.bf16.msra.mxu0 %v1676
      %1712 = vmatmul.bf16.gmra.mxu0 %v1667
      %v1713 = vpop.f32.mrf.mxu0
      %v1714 = vadd.f32 0.0, %v1713
      %v1715 = vpop.f32.mrf.mxu0
      %1716 = vdwg.mxu0
      %v1717 = vadd.f32 %v1582, %v1688
      %v1718 = vadd.f32 %v1583, %v1701
      %v1719 = vadd.f32 %v1584, %v1714
      %s1720 = scalar_lea.vmem %s6, 20
      %v1721 = vld [vmem:[%s1720] sm:$0xf]
      %1722 = vrot.lane.b32.xlu0 %v1122, 108
      %v1723 = vpop.permute.xlu0 %1722
      %1724 = vrot.lane.b32.xlu0 %v1123, 108
      %v1725 = vpop.permute.xlu0 %1724
      %1726 = vrot.lane.b32.xlu0 %v1124, 108
      %v1727 = vpop.permute.xlu0 %1726
      %1728 = vrot.lane.b32.xlu0 %v1125, 108
      %v1729 = vpop.permute.xlu0 %1728
      %v1730 = vsel %vm1662, %v1723, %v1725
      %v1731 = vsel %vm1662, %v1725, %v1727
      %v1732 = vsel %vm1662, %v1727, %v1729
      %v1734 = vsel %vm1000, %v1721, 0
      %v1737 = vsel %vm1004, %v1730, 0
      %v1740 = vsel %vm1004, %v1731, 0
      %v1743 = vsel %vm1004, %v1732, 0
      %1745 = vmatpush.bf16.msra.mxu0 0
      %1746 = vmatpush.bf16.msra.mxu0 0
      %1747 = vmatpush.bf16.msra.mxu0 0
      %1748 = vmatpush.bf16.msra.mxu0 0
      %1749 = vmatpush.bf16.msra.mxu0 0
      %1750 = vmatpush.bf16.msra.mxu0 0
      %1751 = vmatpush.bf16.msra.mxu0 0
      %1752 = vmatpush.bf16.msra.mxu0 %v1737
      %1753 = vmatmul.bf16.gmra.mxu0 %v1734
      %v1754 = vpop.f32.mrf.mxu0
      %v1755 = vadd.f32 0.0, %v1754
      %v1756 = vpop.f32.mrf.mxu0
      %1757 = vdwg.mxu0
      %1758 = vmatpush.bf16.msra.mxu0 0
      %1759 = vmatpush.bf16.msra.mxu0 0
      %1760 = vmatpush.bf16.msra.mxu0 0
      %1761 = vmatpush.bf16.msra.mxu0 0
      %1762 = vmatpush.bf16.msra.mxu0 0
      %1763 = vmatpush.bf16.msra.mxu0 0
      %1764 = vmatpush.bf16.msra.mxu0 0
      %1765 = vmatpush.bf16.msra.mxu0 %v1740
      %1766 = vmatmul.bf16.gmra.mxu0 %v1734
      %v1767 = vpop.f32.mrf.mxu0
      %v1768 = vadd.f32 0.0, %v1767
      %v1769 = vpop.f32.mrf.mxu0
      %1770 = vdwg.mxu0
      %1771 = vmatpush.bf16.msra.mxu0 0
      %1772 = vmatpush.bf16.msra.mxu0 0
      %1773 = vmatpush.bf16.msra.mxu0 0
      %1774 = vmatpush.bf16.msra.mxu0 0
      %1775 = vmatpush.bf16.msra.mxu0 0
      %1776 = vmatpush.bf16.msra.mxu0 0
      %1777 = vmatpush.bf16.msra.mxu0 0
      %1778 = vmatpush.bf16.msra.mxu0 %v1743
      %1779 = vmatmul.bf16.gmra.mxu0 %v1734
      %v1780 = vpop.f32.mrf.mxu0
      %v1781 = vadd.f32 0.0, %v1780
      %v1782 = vpop.f32.mrf.mxu0
      %1783 = vdwg.mxu0
      %v1784 = vadd.f32 %v1649, %v1755
      %v1785 = vadd.f32 %v1650, %v1768
      %v1786 = vadd.f32 %v1651, %v1781
      %s1787 = scalar_lea.vmem %s5, 24
      %v1788 = vld [vmem:[%s1787] sm:$0xf]
      %1789 = vrot.lane.b32.xlu0 %v984, 92
      %v1790 = vpop.permute.xlu0 %1789
      %1791 = vrot.lane.b32.xlu0 %v985, 92
      %v1792 = vpop.permute.xlu0 %1791
      %1793 = vrot.lane.b32.xlu0 %v986, 92
      %v1794 = vpop.permute.xlu0 %1793
      %1795 = vrot.lane.b32.xlu0 %v987, 92
      %v1796 = vpop.permute.xlu0 %1795
      %vm1797 = vcmask 752640
      %v1798 = vsel %vm1797, %v1790, %v1792
      %v1799 = vsel %vm1797, %v1792, %v1794
      %v1800 = vsel %vm1797, %v1794, %v1796
      %v1802 = vsel %vm1000, %v1788, 0
      %v1805 = vsel %vm1004, %v1798, 0
      %v1808 = vsel %vm1004, %v1799, 0
      %v1811 = vsel %vm1004, %v1800, 0
      %1813 = vmatpush.bf16.msra.mxu0 0
      %1814 = vmatpush.bf16.msra.mxu0 0
      %1815 = vmatpush.bf16.msra.mxu0 0
      %1816 = vmatpush.bf16.msra.mxu0 0
      %1817 = vmatpush.bf16.msra.mxu0 0
      %1818 = vmatpush.bf16.msra.mxu0 0
      %1819 = vmatpush.bf16.msra.mxu0 0
      %1820 = vmatpush.bf16.msra.mxu0 %v1805
      %1821 = vmatmul.bf16.gmra.mxu0 %v1802
      %v1822 = vpop.f32.mrf.mxu0
      %v1823 = vadd.f32 0.0, %v1822
      %v1824 = vpop.f32.mrf.mxu0
      %1825 = vdwg.mxu0
      %1826 = vmatpush.bf16.msra.mxu0 0
      %1827 = vmatpush.bf16.msra.mxu0 0
      %1828 = vmatpush.bf16.msra.mxu0 0
      %1829 = vmatpush.bf16.msra.mxu0 0
      %1830 = vmatpush.bf16.msra.mxu0 0
      %1831 = vmatpush.bf16.msra.mxu0 0
      %1832 = vmatpush.bf16.msra.mxu0 0
      %1833 = vmatpush.bf16.msra.mxu0 %v1808
      %1834 = vmatmul.bf16.gmra.mxu0 %v1802
      %v1835 = vpop.f32.mrf.mxu0
      %v1836 = vadd.f32 0.0, %v1835
      %v1837 = vpop.f32.mrf.mxu0
      %1838 = vdwg.mxu0
      %1839 = vmatpush.bf16.msra.mxu0 0
      %1840 = vmatpush.bf16.msra.mxu0 0
      %1841 = vmatpush.bf16.msra.mxu0 0
      %1842 = vmatpush.bf16.msra.mxu0 0
      %1843 = vmatpush.bf16.msra.mxu0 0
      %1844 = vmatpush.bf16.msra.mxu0 0
      %1845 = vmatpush.bf16.msra.mxu0 0
      %1846 = vmatpush.bf16.msra.mxu0 %v1811
      %1847 = vmatmul.bf16.gmra.mxu0 %v1802
      %v1848 = vpop.f32.mrf.mxu0
      %v1849 = vadd.f32 0.0, %v1848
      %v1850 = vpop.f32.mrf.mxu0
      %1851 = vdwg.mxu0
      %v1852 = vadd.f32 %v1717, %v1823
      %v1853 = vadd.f32 %v1718, %v1836
      %v1854 = vadd.f32 %v1719, %v1849
      %s1855 = scalar_lea.vmem %s6, 24
      %v1856 = vld [vmem:[%s1855] sm:$0xf]
      %1857 = vrot.lane.b32.xlu0 %v1122, 92
      %v1858 = vpop.permute.xlu0 %1857
      %1859 = vrot.lane.b32.xlu0 %v1123, 92
      %v1860 = vpop.permute.xlu0 %1859
      %1861 = vrot.lane.b32.xlu0 %v1124, 92
      %v1862 = vpop.permute.xlu0 %1861
      %1863 = vrot.lane.b32.xlu0 %v1125, 92
      %v1864 = vpop.permute.xlu0 %1863
      %v1865 = vsel %vm1797, %v1858, %v1860
      %v1866 = vsel %vm1797, %v1860, %v1862
      %v1867 = vsel %vm1797, %v1862, %v1864
      %v1869 = vsel %vm1000, %v1856, 0
      %v1872 = vsel %vm1004, %v1865, 0
      %v1875 = vsel %vm1004, %v1866, 0
      %v1878 = vsel %vm1004, %v1867, 0
      %1880 = vmatpush.bf16.msra.mxu0 0
      %1881 = vmatpush.bf16.msra.mxu0 0
      %1882 = vmatpush.bf16.msra.mxu0 0
      %1883 = vmatpush.bf16.msra.mxu0 0
      %1884 = vmatpush.bf16.msra.mxu0 0
      %1885 = vmatpush.bf16.msra.mxu0 0
      %1886 = vmatpush.bf16.msra.mxu0 0
      %1887 = vmatpush.bf16.msra.mxu0 %v1872
      %1888 = vmatmul.bf16.gmra.mxu0 %v1869
      %v1889 = vpop.f32.mrf.mxu0
      %v1890 = vadd.f32 0.0, %v1889
      %v1891 = vpop.f32.mrf.mxu0
      %1892 = vdwg.mxu0
      %1893 = vmatpush.bf16.msra.mxu0 0
      %1894 = vmatpush.bf16.msra.mxu0 0
      %1895 = vmatpush.bf16.msra.mxu0 0
      %1896 = vmatpush.bf16.msra.mxu0 0
      %1897 = vmatpush.bf16.msra.mxu0 0
      %1898 = vmatpush.bf16.msra.mxu0 0
      %1899 = vmatpush.bf16.msra.mxu0 0
      %1900 = vmatpush.bf16.msra.mxu0 %v1875
      %1901 = vmatmul.bf16.gmra.mxu0 %v1869
      %v1902 = vpop.f32.mrf.mxu0
      %v1903 = vadd.f32 0.0, %v1902
      %v1904 = vpop.f32.mrf.mxu0
      %1905 = vdwg.mxu0
      %1906 = vmatpush.bf16.msra.mxu0 0
      %1907 = vmatpush.bf16.msra.mxu0 0
      %1908 = vmatpush.bf16.msra.mxu0 0
      %1909 = vmatpush.bf16.msra.mxu0 0
      %1910 = vmatpush.bf16.msra.mxu0 0
      %1911 = vmatpush.bf16.msra.mxu0 0
      %1912 = vmatpush.bf16.msra.mxu0 0
      %1913 = vmatpush.bf16.msra.mxu0 %v1878
      %1914 = vmatmul.bf16.gmra.mxu0 %v1869
      %v1915 = vpop.f32.mrf.mxu0
      %v1916 = vadd.f32 0.0, %v1915
      %v1917 = vpop.f32.mrf.mxu0
      %1918 = vdwg.mxu0
      %v1919 = vadd.f32 %v1784, %v1890
      %v1920 = vadd.f32 %v1785, %v1903
      %v1921 = vadd.f32 %v1786, %v1916
      %s1922 = scalar_lea.vmem %s5, 28
      %v1923 = vld [vmem:[%s1922] sm:$0xf]
      %1924 = vrot.lane.b32.xlu0 %v984, 91
      %v1925 = vpop.permute.xlu0 %1924
      %1926 = vrot.lane.b32.xlu0 %v985, 91
      %v1927 = vpop.permute.xlu0 %1926
      %1928 = vrot.lane.b32.xlu0 %v986, 91
      %v1929 = vpop.permute.xlu0 %1928
      %1930 = vrot.lane.b32.xlu0 %v987, 91
      %v1931 = vpop.permute.xlu0 %1930
      %vm1932 = vcmask 744448
      %v1933 = vsel %vm1932, %v1925, %v1927
      %v1934 = vsel %vm1932, %v1927, %v1929
      %v1935 = vsel %vm1932, %v1929, %v1931
      %v1937 = vsel %vm1000, %v1923, 0
      %v1940 = vsel %vm1004, %v1933, 0
      %v1943 = vsel %vm1004, %v1934, 0
      %v1946 = vsel %vm1004, %v1935, 0
      %1948 = vmatpush.bf16.msra.mxu0 0
      %1949 = vmatpush.bf16.msra.mxu0 0
      %1950 = vmatpush.bf16.msra.mxu0 0
      %1951 = vmatpush.bf16.msra.mxu0 0
      %1952 = vmatpush.bf16.msra.mxu0 0
      %1953 = vmatpush.bf16.msra.mxu0 0
      %1954 = vmatpush.bf16.msra.mxu0 0
      %1955 = vmatpush.bf16.msra.mxu0 %v1940
      %1956 = vmatmul.bf16.gmra.mxu0 %v1937
      %v1957 = vpop.f32.mrf.mxu0
      %v1958 = vadd.f32 0.0, %v1957
      %v1959 = vpop.f32.mrf.mxu0
      %1960 = vdwg.mxu0
      %1961 = vmatpush.bf16.msra.mxu0 0
      %1962 = vmatpush.bf16.msra.mxu0 0
      %1963 = vmatpush.bf16.msra.mxu0 0
      %1964 = vmatpush.bf16.msra.mxu0 0
      %1965 = vmatpush.bf16.msra.mxu0 0
      %1966 = vmatpush.bf16.msra.mxu0 0
      %1967 = vmatpush.bf16.msra.mxu0 0
      %1968 = vmatpush.bf16.msra.mxu0 %v1943
      %1969 = vmatmul.bf16.gmra.mxu0 %v1937
      %v1970 = vpop.f32.mrf.mxu0
      %v1971 = vadd.f32 0.0, %v1970
      %v1972 = vpop.f32.mrf.mxu0
      %1973 = vdwg.mxu0
      %1974 = vmatpush.bf16.msra.mxu0 0
      %1975 = vmatpush.bf16.msra.mxu0 0
      %1976 = vmatpush.bf16.msra.mxu0 0
      %1977 = vmatpush.bf16.msra.mxu0 0
      %1978 = vmatpush.bf16.msra.mxu0 0
      %1979 = vmatpush.bf16.msra.mxu0 0
      %1980 = vmatpush.bf16.msra.mxu0 0
      %1981 = vmatpush.bf16.msra.mxu0 %v1946
      %1982 = vmatmul.bf16.gmra.mxu0 %v1937
      %v1983 = vpop.f32.mrf.mxu0
      %v1984 = vadd.f32 0.0, %v1983
      %v1985 = vpop.f32.mrf.mxu0
      %1986 = vdwg.mxu0
      %v1987 = vadd.f32 %v1852, %v1958
      %v1988 = vadd.f32 %v1853, %v1971
      %v1989 = vadd.f32 %v1854, %v1984
      %s1990 = scalar_lea.vmem %s6, 28
      %v1991 = vld [vmem:[%s1990] sm:$0xf]
      %1992 = vrot.lane.b32.xlu0 %v1122, 91
      %v1993 = vpop.permute.xlu0 %1992
      %1994 = vrot.lane.b32.xlu0 %v1123, 91
      %v1995 = vpop.permute.xlu0 %1994
      %1996 = vrot.lane.b32.xlu0 %v1124, 91
      %v1997 = vpop.permute.xlu0 %1996
      %1998 = vrot.lane.b32.xlu0 %v1125, 91
      %v1999 = vpop.permute.xlu0 %1998
      %v2000 = vsel %vm1932, %v1993, %v1995
      %v2001 = vsel %vm1932, %v1995, %v1997
      %v2002 = vsel %vm1932, %v1997, %v1999
      %v2004 = vsel %vm1000, %v1991, 0
      %v2007 = vsel %vm1004, %v2000, 0
      %v2010 = vsel %vm1004, %v2001, 0
      %v2013 = vsel %vm1004, %v2002, 0
      %2015 = vmatpush.bf16.msra.mxu0 0
      %2016 = vmatpush.bf16.msra.mxu0 0
      %2017 = vmatpush.bf16.msra.mxu0 0
      %2018 = vmatpush.bf16.msra.mxu0 0
      %2019 = vmatpush.bf16.msra.mxu0 0
      %2020 = vmatpush.bf16.msra.mxu0 0
      %2021 = vmatpush.bf16.msra.mxu0 0
      %2022 = vmatpush.bf16.msra.mxu0 %v2007
      %2023 = vmatmul.bf16.gmra.mxu0 %v2004
      %v2024 = vpop.f32.mrf.mxu0
      %v2025 = vadd.f32 0.0, %v2024
      %v2026 = vpop.f32.mrf.mxu0
      %2027 = vdwg.mxu0
      %2028 = vmatpush.bf16.msra.mxu0 0
      %2029 = vmatpush.bf16.msra.mxu0 0
      %2030 = vmatpush.bf16.msra.mxu0 0
      %2031 = vmatpush.bf16.msra.mxu0 0
      %2032 = vmatpush.bf16.msra.mxu0 0
      %2033 = vmatpush.bf16.msra.mxu0 0
      %2034 = vmatpush.bf16.msra.mxu0 0
      %2035 = vmatpush.bf16.msra.mxu0 %v2010
      %2036 = vmatmul.bf16.gmra.mxu0 %v2004
      %v2037 = vpop.f32.mrf.mxu0
      %v2038 = vadd.f32 0.0, %v2037
      %v2039 = vpop.f32.mrf.mxu0
      %2040 = vdwg.mxu0
      %2041 = vmatpush.bf16.msra.mxu0 0
      %2042 = vmatpush.bf16.msra.mxu0 0
      %2043 = vmatpush.bf16.msra.mxu0 0
      %2044 = vmatpush.bf16.msra.mxu0 0
      %2045 = vmatpush.bf16.msra.mxu0 0
      %2046 = vmatpush.bf16.msra.mxu0 0
      %2047 = vmatpush.bf16.msra.mxu0 0
      %2048 = vmatpush.bf16.msra.mxu0 %v2013
      %2049 = vmatmul.bf16.gmra.mxu0 %v2004
      %v2050 = vpop.f32.mrf.mxu0
      %v2051 = vadd.f32 0.0, %v2050
      %v2052 = vpop.f32.mrf.mxu0
      %2053 = vdwg.mxu0
      %v2054 = vadd.f32 %v1919, %v2025
      %v2055 = vadd.f32 %v1920, %v2038
      %v2056 = vadd.f32 %v1921, %v2051
      %s2057 = scalar_lea.vmem %s5, 32
      %v2058 = vld [vmem:[%s2057] sm:$0xf]
      %2059 = vrot.lane.b32.xlu0 %v984, 90
      %v2060 = vpop.permute.xlu0 %2059
      %2061 = vrot.lane.b32.xlu0 %v985, 90
      %v2062 = vpop.permute.xlu0 %2061
      %2063 = vrot.lane.b32.xlu0 %v986, 90
      %v2064 = vpop.permute.xlu0 %2063
      %2065 = vrot.lane.b32.xlu0 %v987, 90
      %v2066 = vpop.permute.xlu0 %2065
      %vm2067 = vcmask 736256
      %v2068 = vsel %vm2067, %v2060, %v2062
      %v2069 = vsel %vm2067, %v2062, %v2064
      %v2070 = vsel %vm2067, %v2064, %v2066
      %v2072 = vsel %vm1000, %v2058, 0
      %v2075 = vsel %vm1004, %v2068, 0
      %v2078 = vsel %vm1004, %v2069, 0
      %v2081 = vsel %vm1004, %v2070, 0
      %2083 = vmatpush.bf16.msra.mxu0 0
      %2084 = vmatpush.bf16.msra.mxu0 0
      %2085 = vmatpush.bf16.msra.mxu0 0
      %2086 = vmatpush.bf16.msra.mxu0 0
      %2087 = vmatpush.bf16.msra.mxu0 0
      %2088 = vmatpush.bf16.msra.mxu0 0
      %2089 = vmatpush.bf16.msra.mxu0 0
      %2090 = vmatpush.bf16.msra.mxu0 %v2075
      %2091 = vmatmul.bf16.gmra.mxu0 %v2072
      %v2092 = vpop.f32.mrf.mxu0
      %v2093 = vadd.f32 0.0, %v2092
      %v2094 = vpop.f32.mrf.mxu0
      %2095 = vdwg.mxu0
      %2096 = vmatpush.bf16.msra.mxu0 0
      %2097 = vmatpush.bf16.msra.mxu0 0
      %2098 = vmatpush.bf16.msra.mxu0 0
      %2099 = vmatpush.bf16.msra.mxu0 0
      %2100 = vmatpush.bf16.msra.mxu0 0
      %2101 = vmatpush.bf16.msra.mxu0 0
      %2102 = vmatpush.bf16.msra.mxu0 0
      %2103 = vmatpush.bf16.msra.mxu0 %v2078
      %2104 = vmatmul.bf16.gmra.mxu0 %v2072
      %v2105 = vpop.f32.mrf.mxu0
      %v2106 = vadd.f32 0.0, %v2105
      %v2107 = vpop.f32.mrf.mxu0
      %2108 = vdwg.mxu0
      %2109 = vmatpush.bf16.msra.mxu0 0
      %2110 = vmatpush.bf16.msra.mxu0 0
      %2111 = vmatpush.bf16.msra.mxu0 0
      %2112 = vmatpush.bf16.msra.mxu0 0
      %2113 = vmatpush.bf16.msra.mxu0 0
      %2114 = vmatpush.bf16.msra.mxu0 0
      %2115 = vmatpush.bf16.msra.mxu0 0
      %2116 = vmatpush.bf16.msra.mxu0 %v2081
      %2117 = vmatmul.bf16.gmra.mxu0 %v2072
      %v2118 = vpop.f32.mrf.mxu0
      %v2119 = vadd.f32 0.0, %v2118
      %v2120 = vpop.f32.mrf.mxu0
      %2121 = vdwg.mxu0
      %v2122 = vadd.f32 %v1987, %v2093
      %v2123 = vadd.f32 %v1988, %v2106
      %v2124 = vadd.f32 %v1989, %v2119
      %s2125 = scalar_lea.vmem %s6, 32
      %v2126 = vld [vmem:[%s2125] sm:$0xf]
      %2127 = vrot.lane.b32.xlu0 %v1122, 90
      %v2128 = vpop.permute.xlu0 %2127
      %2129 = vrot.lane.b32.xlu0 %v1123, 90
      %v2130 = vpop.permute.xlu0 %2129
      %2131 = vrot.lane.b32.xlu0 %v1124, 90
      %v2132 = vpop.permute.xlu0 %2131
      %2133 = vrot.lane.b32.xlu0 %v1125, 90
      %v2134 = vpop.permute.xlu0 %2133
      %v2135 = vsel %vm2067, %v2128, %v2130
      %v2136 = vsel %vm2067, %v2130, %v2132
      %v2137 = vsel %vm2067, %v2132, %v2134
      %v2139 = vsel %vm1000, %v2126, 0
      %v2142 = vsel %vm1004, %v2135, 0
      %v2145 = vsel %vm1004, %v2136, 0
      %v2148 = vsel %vm1004, %v2137, 0
      %2150 = vmatpush.bf16.msra.mxu0 0
      %2151 = vmatpush.bf16.msra.mxu0 0
      %2152 = vmatpush.bf16.msra.mxu0 0
      %2153 = vmatpush.bf16.msra.mxu0 0
      %2154 = vmatpush.bf16.msra.mxu0 0
      %2155 = vmatpush.bf16.msra.mxu0 0
      %2156 = vmatpush.bf16.msra.mxu0 0
      %2157 = vmatpush.bf16.msra.mxu0 %v2142
      %2158 = vmatmul.bf16.gmra.mxu0 %v2139
      %v2159 = vpop.f32.mrf.mxu0
      %v2160 = vadd.f32 0.0, %v2159
      %v2161 = vpop.f32.mrf.mxu0
      %2162 = vdwg.mxu0
      %2163 = vmatpush.bf16.msra.mxu0 0
      %2164 = vmatpush.bf16.msra.mxu0 0
      %2165 = vmatpush.bf16.msra.mxu0 0
      %2166 = vmatpush.bf16.msra.mxu0 0
      %2167 = vmatpush.bf16.msra.mxu0 0
      %2168 = vmatpush.bf16.msra.mxu0 0
      %2169 = vmatpush.bf16.msra.mxu0 0
      %2170 = vmatpush.bf16.msra.mxu0 %v2145
      %2171 = vmatmul.bf16.gmra.mxu0 %v2139
      %v2172 = vpop.f32.mrf.mxu0
      %v2173 = vadd.f32 0.0, %v2172
      %v2174 = vpop.f32.mrf.mxu0
      %2175 = vdwg.mxu0
      %2176 = vmatpush.bf16.msra.mxu0 0
      %2177 = vmatpush.bf16.msra.mxu0 0
      %2178 = vmatpush.bf16.msra.mxu0 0
      %2179 = vmatpush.bf16.msra.mxu0 0
      %2180 = vmatpush.bf16.msra.mxu0 0
      %2181 = vmatpush.bf16.msra.mxu0 0
      %2182 = vmatpush.bf16.msra.mxu0 0
      %2183 = vmatpush.bf16.msra.mxu0 %v2148
      %2184 = vmatmul.bf16.gmra.mxu0 %v2139
      %v2185 = vpop.f32.mrf.mxu0
      %v2186 = vadd.f32 0.0, %v2185
      %v2187 = vpop.f32.mrf.mxu0
      %2188 = vdwg.mxu0
      %v2189 = vadd.f32 %v2054, %v2160
      %v2190 = vadd.f32 %v2055, %v2173
      %v2191 = vadd.f32 %v2056, %v2186
      %v2192 = vadd.f32 %v2122, %v2189
      %v2193 = vadd.f32 %v2123, %v2190
      %v2194 = vadd.f32 %v2124, %v2191
      %v2195 = vld [vmem:[%s7] sm:$0xff]
      %2197 = vset.pattern.permute.xlu0 0
      %2198 = vperm.xlu0 %2197, %v2195
      %v2199 = vpop.permute.xlu0 %2198
      %v2201 = vadd.f32 %v2192, %v2199
      %v2202 = vadd.f32 %v2193, %v2199
      %v2203 = vadd.f32 %v2194, %v2199
      %v2204 = vmax.f32 %v2201, 0.0
      %v2205 = vmax.f32 %v2202, 0.0
      %v2206 = vmax.f32 %v2203, 0.0
      %2207 = vst [vmem:[#allocation3] sm:$0xff] 0
      %2208 = vst [vmem:[#allocation3 + $0x8] sm:$0xff] 0
      %v2209 = vld [vmem:[%s8] sm:$0x7]
      %v2211 = vperm.slane %v2209, 0
      %v2212 = vperm.slane %v2209, 1
      %v2213 = vperm.slane %v2209, 2
      %v2217 = vmul.f32 %v2204, %v2211
      %v2218 = vmul.f32 %v2205, %v2212
      %v2219 = vmul.f32 %v2206, %v2213
      %v2220 = vpack.c.bf16 %v2218, %v2217
      %v2221 = vpack.c.bf16 %v2219, %v2219
      %2224 = vrot.lane.b32.xlu0 %v2220, 19
      %v2225 = vpop.permute.xlu0 %2224
      %2226 = vrot.lane.b32.xlu0 %v2221, 19
      %v2227 = vpop.permute.xlu0 %2226
      %v2228 = vrot.slane %v2225, 4
      %v2229 = vrot.slane %v2227, 4
      %vm2230 = vcmask 154624
      %v2231 = vsel %vm2230, %v2228, %v2225
      %vm2232 = vcmask 1043456
      %v2233 = vsel %vm2232, %v2228, %v2229
      %v2234 = vsel %vm2230, %v2233, %v2227
      %vm2237 = vcmask 1043608
      %vm2238 = vcmask 1047556
      %vm2239 = vmor %vm2238, %vm2237
      %2240 = vst.msk [vmem:[#allocation3] sm:$0xff] %vm2239, %v2231
      %vm2241 = vcmask 154628
      %vm2242 = vmor %vm2241, %vm1004
      %2243 = vst.msk [vmem:[#allocation3 + $0x8] sm:$0xff] %vm2242, %v2234
      %v2244 = vld [vmem:[%s9] sm:$0xf]
      %v2245 = vld [vmem:[#allocation3] sm:$0xff]
      %v2246 = vld [vmem:[#allocation3 + $0x8] sm:$0xf]
      %s2247 = scalar_lea.vmem %s9, 4
      %v2248 = vld [vmem:[%s2247] sm:$0xf]
      %v2249 = vld [vmem:[#allocation3] sm:$0xff]
      %v2250 = vld [vmem:[#allocation3 + $0x8] sm:$0xff]
      %s2251 = scalar_lea.vmem %s9, 8
      %v2252 = vld [vmem:[%s2251] sm:$0xf]
      %v2255 = vunpack.c.l.b16 %v2249
      %v2256 = vunpack.c.h.b16 %v2249
      %v2257 = vunpack.c.l.b16 %v2250
      %v2258 = vunpack.c.h.b16 %v2250
      %v2259 = vpack.c.b16 %v2255, %v2255
      %v2260 = vpack.c.b16 %v2256, %v2256
      %v2261 = vpack.c.b16 %v2257, %v2257
      %v2262 = vpack.c.b16 %v2258, %v2258
      %2263 = vrot.lane.b32.xlu0 %v2259, 126
      %v2264 = vpop.permute.xlu0 %2263
      %2265 = vrot.lane.b32.xlu0 %v2260, 126
      %v2266 = vpop.permute.xlu0 %2265
      %2267 = vrot.lane.b32.xlu0 %v2261, 126
      %v2268 = vpop.permute.xlu0 %2267
      %2269 = vrot.lane.b32.xlu0 %v2262, 126
      %v2270 = vpop.permute.xlu0 %2269
      %v2271 = vsel %vm1257, %v2264, %v2266
      %v2272 = vsel %vm1257, %v2266, %v2268
      %v2273 = vsel %vm1257, %v2268, %v2270
      %v2275 = vsel %vm1000, %v2252, 0
      %v2278 = vsel %vm1004, %v2271, 0
      %v2281 = vsel %vm1004, %v2272, 0
      %v2284 = vsel %vm1004, %v2273, 0
      %2286 = vmatpush.bf16.msra.mxu0 0
      %2287 = vmatpush.bf16.msra.mxu0 0
      %2288 = vmatpush.bf16.msra.mxu0 0
      %2289 = vmatpush.bf16.msra.mxu0 0
      %2290 = vmatpush.bf16.msra.mxu0 0
      %2291 = vmatpush.bf16.msra.mxu0 0
      %2292 = vmatpush.bf16.msra.mxu0 0
      %2293 = vmatpush.bf16.msra.mxu0 %v2278
      %2294 = vmatmul.bf16.gmra.mxu0 %v2275
      %v2295 = vpop.f32.mrf.mxu0
      %v2296 = vadd.f32 0.0, %v2295
      %v2297 = vpop.f32.mrf.mxu0
      %2298 = vdwg.mxu0
      %2299 = vmatpush.bf16.msra.mxu0 0
      %2300 = vmatpush.bf16.msra.mxu0 0
      %2301 = vmatpush.bf16.msra.mxu0 0
      %2302 = vmatpush.bf16.msra.mxu0 0
      %2303 = vmatpush.bf16.msra.mxu0 0
      %2304 = vmatpush.bf16.msra.mxu0 0
      %2305 = vmatpush.bf16.msra.mxu0 0
      %2306 = vmatpush.bf16.msra.mxu0 %v2281
      %2307 = vmatmul.bf16.gmra.mxu0 %v2275
      %v2308 = vpop.f32.mrf.mxu0
      %v2309 = vadd.f32 0.0, %v2308
      %v2310 = vpop.f32.mrf.mxu0
      %2311 = vdwg.mxu0
      %2312 = vmatpush.bf16.msra.mxu0 0
      %2313 = vmatpush.bf16.msra.mxu0 0
      %2314 = vmatpush.bf16.msra.mxu0 0
      %2315 = vmatpush.bf16.msra.mxu0 0
      %2316 = vmatpush.bf16.msra.mxu0 0
      %2317 = vmatpush.bf16.msra.mxu0 0
      %2318 = vmatpush.bf16.msra.mxu0 0
      %2319 = vmatpush.bf16.msra.mxu0 %v2284
      %2320 = vmatmul.bf16.gmra.mxu0 %v2275
      %v2321 = vpop.f32.mrf.mxu0
      %v2322 = vadd.f32 0.0, %v2321
      %v2323 = vpop.f32.mrf.mxu0
      %2324 = vdwg.mxu0
      %v2327 = vunpack.c.l.b16 %v2245
      %v2328 = vunpack.c.h.b16 %v2245
      %v2329 = vunpack.c.l.b16 %v2246
      %v2330 = vpack.c.b16 %v2327, %v2327
      %v2331 = vpack.c.b16 %v2328, %v2328
      %v2332 = vpack.c.b16 %v2329, %v2329
      %v2334 = vsel %vm1000, %v2244, 0
      %v2337 = vsel %vm1004, %v2330, 0
      %v2340 = vsel %vm1004, %v2331, 0
      %v2343 = vsel %vm1004, %v2332, 0
      %2345 = vmatpush.bf16.msra.mxu0 0
      %2346 = vmatpush.bf16.msra.mxu0 0
      %2347 = vmatpush.bf16.msra.mxu0 0
      %2348 = vmatpush.bf16.msra.mxu0 0
      %2349 = vmatpush.bf16.msra.mxu0 0
      %2350 = vmatpush.bf16.msra.mxu0 0
      %2351 = vmatpush.bf16.msra.mxu0 0
      %2352 = vmatpush.bf16.msra.mxu0 %v2337
      %2353 = vmatmul.bf16.gmra.mxu0 %v2334
      %v2354 = vpop.f32.mrf.mxu0
      %v2355 = vadd.f32 %v2296, %v2354
      %v2356 = vpop.f32.mrf.mxu0
      %2357 = vdwg.mxu0
      %2358 = vmatpush.bf16.msra.mxu0 0
      %2359 = vmatpush.bf16.msra.mxu0 0
      %2360 = vmatpush.bf16.msra.mxu0 0
      %2361 = vmatpush.bf16.msra.mxu0 0
      %2362 = vmatpush.bf16.msra.mxu0 0
      %2363 = vmatpush.bf16.msra.mxu0 0
      %2364 = vmatpush.bf16.msra.mxu0 0
      %2365 = vmatpush.bf16.msra.mxu0 %v2340
      %2366 = vmatmul.bf16.gmra.mxu0 %v2334
      %v2367 = vpop.f32.mrf.mxu0
      %v2368 = vadd.f32 %v2309, %v2367
      %v2369 = vpop.f32.mrf.mxu0
      %2370 = vdwg.mxu0
      %2371 = vmatpush.bf16.msra.mxu0 0
      %2372 = vmatpush.bf16.msra.mxu0 0
      %2373 = vmatpush.bf16.msra.mxu0 0
      %2374 = vmatpush.bf16.msra.mxu0 0
      %2375 = vmatpush.bf16.msra.mxu0 0
      %2376 = vmatpush.bf16.msra.mxu0 0
      %2377 = vmatpush.bf16.msra.mxu0 0
      %2378 = vmatpush.bf16.msra.mxu0 %v2343
      %2379 = vmatmul.bf16.gmra.mxu0 %v2334
      %v2380 = vpop.f32.mrf.mxu0
      %v2381 = vadd.f32 %v2322, %v2380
      %v2382 = vpop.f32.mrf.mxu0
      %2383 = vdwg.mxu0
      %s2384 = scalar_lea.vmem %s9, 12
      %v2385 = vld [vmem:[%s2384] sm:$0xf]
      %2386 = vrot.lane.b32.xlu0 %v2259, 110
      %v2387 = vpop.permute.xlu0 %2386
      %2388 = vrot.lane.b32.xlu0 %v2260, 110
      %v2389 = vpop.permute.xlu0 %2388
      %2390 = vrot.lane.b32.xlu0 %v2261, 110
      %v2391 = vpop.permute.xlu0 %2390
      %2392 = vrot.lane.b32.xlu0 %v2262, 110
      %v2393 = vpop.permute.xlu0 %2392
      %v2394 = vsel %vm1392, %v2387, %v2389
      %v2395 = vsel %vm1392, %v2389, %v2391
      %v2396 = vsel %vm1392, %v2391, %v2393
      %v2398 = vsel %vm1000, %v2385, 0
      %v2401 = vsel %vm1004, %v2394, 0
      %v2404 = vsel %vm1004, %v2395, 0
      %v2407 = vsel %vm1004, %v2396, 0
      %2409 = vmatpush.bf16.msra.mxu0 0
      %2410 = vmatpush.bf16.msra.mxu0 0
      %2411 = vmatpush.bf16.msra.mxu0 0
      %2412 = vmatpush.bf16.msra.mxu0 0
      %2413 = vmatpush.bf16.msra.mxu0 0
      %2414 = vmatpush.bf16.msra.mxu0 0
      %2415 = vmatpush.bf16.msra.mxu0 0
      %2416 = vmatpush.bf16.msra.mxu0 %v2401
      %2417 = vmatmul.bf16.gmra.mxu0 %v2398
      %v2418 = vpop.f32.mrf.mxu0
      %v2419 = vadd.f32 0.0, %v2418
      %v2420 = vpop.f32.mrf.mxu0
      %2421 = vdwg.mxu0
      %2422 = vmatpush.bf16.msra.mxu0 0
      %2423 = vmatpush.bf16.msra.mxu0 0
      %2424 = vmatpush.bf16.msra.mxu0 0
      %2425 = vmatpush.bf16.msra.mxu0 0
      %2426 = vmatpush.bf16.msra.mxu0 0
      %2427 = vmatpush.bf16.msra.mxu0 0
      %2428 = vmatpush.bf16.msra.mxu0 0
      %2429 = vmatpush.bf16.msra.mxu0 %v2404
      %2430 = vmatmul.bf16.gmra.mxu0 %v2398
      %v2431 = vpop.f32.mrf.mxu0
      %v2432 = vadd.f32 0.0, %v2431
      %v2433 = vpop.f32.mrf.mxu0
      %2434 = vdwg.mxu0
      %2435 = vmatpush.bf16.msra.mxu0 0
      %2436 = vmatpush.bf16.msra.mxu0 0
      %2437 = vmatpush.bf16.msra.mxu0 0
      %2438 = vmatpush.bf16.msra.mxu0 0
      %2439 = vmatpush.bf16.msra.mxu0 0
      %2440 = vmatpush.bf16.msra.mxu0 0
      %2441 = vmatpush.bf16.msra.mxu0 0
      %2442 = vmatpush.bf16.msra.mxu0 %v2407
      %2443 = vmatmul.bf16.gmra.mxu0 %v2398
      %v2444 = vpop.f32.mrf.mxu0
      %v2445 = vadd.f32 0.0, %v2444
      %v2446 = vpop.f32.mrf.mxu0
      %2447 = vdwg.mxu0
      %2448 = vrot.lane.b32.xlu0 %v2259, 127
      %v2449 = vpop.permute.xlu0 %2448
      %2450 = vrot.lane.b32.xlu0 %v2260, 127
      %v2451 = vpop.permute.xlu0 %2450
      %2452 = vrot.lane.b32.xlu0 %v2261, 127
      %v2453 = vpop.permute.xlu0 %2452
      %2454 = vrot.lane.b32.xlu0 %v2262, 127
      %v2455 = vpop.permute.xlu0 %2454
      %v2456 = vsel %vm996, %v2449, %v2451
      %v2457 = vsel %vm996, %v2451, %v2453
      %v2458 = vsel %vm996, %v2453, %v2455
      %v2460 = vsel %vm1000, %v2248, 0
      %v2463 = vsel %vm1004, %v2456, 0
      %v2466 = vsel %vm1004, %v2457, 0
      %v2469 = vsel %vm1004, %v2458, 0
      %2471 = vmatpush.bf16.msra.mxu0 0
      %2472 = vmatpush.bf16.msra.mxu0 0
      %2473 = vmatpush.bf16.msra.mxu0 0
      %2474 = vmatpush.bf16.msra.mxu0 0
      %2475 = vmatpush.bf16.msra.mxu0 0
      %2476 = vmatpush.bf16.msra.mxu0 0
      %2477 = vmatpush.bf16.msra.mxu0 0
      %2478 = vmatpush.bf16.msra.mxu0 %v2463
      %2479 = vmatmul.bf16.gmra.mxu0 %v2460
      %v2480 = vpop.f32.mrf.mxu0
      %v2481 = vadd.f32 %v2419, %v2480
      %v2482 = vpop.f32.mrf.mxu0
      %2483 = vdwg.mxu0
      %2484 = vmatpush.bf16.msra.mxu0 0
      %2485 = vmatpush.bf16.msra.mxu0 0
      %2486 = vmatpush.bf16.msra.mxu0 0
      %2487 = vmatpush.bf16.msra.mxu0 0
      %2488 = vmatpush.bf16.msra.mxu0 0
      %2489 = vmatpush.bf16.msra.mxu0 0
      %2490 = vmatpush.bf16.msra.mxu0 0
      %2491 = vmatpush.bf16.msra.mxu0 %v2466
      %2492 = vmatmul.bf16.gmra.mxu0 %v2460
      %v2493 = vpop.f32.mrf.mxu0
      %v2494 = vadd.f32 %v2432, %v2493
      %v2495 = vpop.f32.mrf.mxu0
      %2496 = vdwg.mxu0
      %2497 = vmatpush.bf16.msra.mxu0 0
      %2498 = vmatpush.bf16.msra.mxu0 0
      %2499 = vmatpush.bf16.msra.mxu0 0
      %2500 = vmatpush.bf16.msra.mxu0 0
      %2501 = vmatpush.bf16.msra.mxu0 0
      %2502 = vmatpush.bf16.msra.mxu0 0
      %2503 = vmatpush.bf16.msra.mxu0 0
      %2504 = vmatpush.bf16.msra.mxu0 %v2469
      %2505 = vmatmul.bf16.gmra.mxu0 %v2460
      %v2506 = vpop.f32.mrf.mxu0
      %v2507 = vadd.f32 %v2445, %v2506
      %v2508 = vpop.f32.mrf.mxu0
      %2509 = vdwg.mxu0
      %s2510 = scalar_lea.vmem %s9, 16
      %v2511 = vld [vmem:[%s2510] sm:$0xf]
      %2512 = vrot.lane.b32.xlu0 %v2259, 109
      %v2513 = vpop.permute.xlu0 %2512
      %2514 = vrot.lane.b32.xlu0 %v2260, 109
      %v2515 = vpop.permute.xlu0 %2514
      %2516 = vrot.lane.b32.xlu0 %v2261, 109
      %v2517 = vpop.permute.xlu0 %2516
      %2518 = vrot.lane.b32.xlu0 %v2262, 109
      %v2519 = vpop.permute.xlu0 %2518
      %v2520 = vsel %vm1527, %v2513, %v2515
      %v2521 = vsel %vm1527, %v2515, %v2517
      %v2522 = vsel %vm1527, %v2517, %v2519
      %v2524 = vsel %vm1000, %v2511, 0
      %v2527 = vsel %vm1004, %v2520, 0
      %v2530 = vsel %vm1004, %v2521, 0
      %v2533 = vsel %vm1004, %v2522, 0
      %2535 = vmatpush.bf16.msra.mxu0 0
      %2536 = vmatpush.bf16.msra.mxu0 0
      %2537 = vmatpush.bf16.msra.mxu0 0
      %2538 = vmatpush.bf16.msra.mxu0 0
      %2539 = vmatpush.bf16.msra.mxu0 0
      %2540 = vmatpush.bf16.msra.mxu0 0
      %2541 = vmatpush.bf16.msra.mxu0 0
      %2542 = vmatpush.bf16.msra.mxu0 %v2527
      %2543 = vmatmul.bf16.gmra.mxu0 %v2524
      %v2544 = vpop.f32.mrf.mxu0
      %v2545 = vadd.f32 0.0, %v2544
      %v2546 = vpop.f32.mrf.mxu0
      %2547 = vdwg.mxu0
      %2548 = vmatpush.bf16.msra.mxu0 0
      %2549 = vmatpush.bf16.msra.mxu0 0
      %2550 = vmatpush.bf16.msra.mxu0 0
      %2551 = vmatpush.bf16.msra.mxu0 0
      %2552 = vmatpush.bf16.msra.mxu0 0
      %2553 = vmatpush.bf16.msra.mxu0 0
      %2554 = vmatpush.bf16.msra.mxu0 0
      %2555 = vmatpush.bf16.msra.mxu0 %v2530
      %2556 = vmatmul.bf16.gmra.mxu0 %v2524
      %v2557 = vpop.f32.mrf.mxu0
      %v2558 = vadd.f32 0.0, %v2557
      %v2559 = vpop.f32.mrf.mxu0
      %2560 = vdwg.mxu0
      %2561 = vmatpush.bf16.msra.mxu0 0
      %2562 = vmatpush.bf16.msra.mxu0 0
      %2563 = vmatpush.bf16.msra.mxu0 0
      %2564 = vmatpush.bf16.msra.mxu0 0
      %2565 = vmatpush.bf16.msra.mxu0 0
      %2566 = vmatpush.bf16.msra.mxu0 0
      %2567 = vmatpush.bf16.msra.mxu0 0
      %2568 = vmatpush.bf16.msra.mxu0 %v2533
      %2569 = vmatmul.bf16.gmra.mxu0 %v2524
      %v2570 = vpop.f32.mrf.mxu0
      %v2571 = vadd.f32 0.0, %v2570
      %v2572 = vpop.f32.mrf.mxu0
      %2573 = vdwg.mxu0
      %v2574 = vadd.f32 %v2355, %v2545
      %v2575 = vadd.f32 %v2368, %v2558
      %v2576 = vadd.f32 %v2381, %v2571
      %s2577 = scalar_lea.vmem %s9, 20
      %v2578 = vld [vmem:[%s2577] sm:$0xf]
      %2579 = vrot.lane.b32.xlu0 %v2259, 108
      %v2580 = vpop.permute.xlu0 %2579
      %2581 = vrot.lane.b32.xlu0 %v2260, 108
      %v2582 = vpop.permute.xlu0 %2581
      %2583 = vrot.lane.b32.xlu0 %v2261, 108
      %v2584 = vpop.permute.xlu0 %2583
      %2585 = vrot.lane.b32.xlu0 %v2262, 108
      %v2586 = vpop.permute.xlu0 %2585
      %v2587 = vsel %vm1662, %v2580, %v2582
      %v2588 = vsel %vm1662, %v2582, %v2584
      %v2589 = vsel %vm1662, %v2584, %v2586
      %v2591 = vsel %vm1000, %v2578, 0
      %v2594 = vsel %vm1004, %v2587, 0
      %v2597 = vsel %vm1004, %v2588, 0
      %v2600 = vsel %vm1004, %v2589, 0
      %2602 = vmatpush.bf16.msra.mxu0 0
      %2603 = vmatpush.bf16.msra.mxu0 0
      %2604 = vmatpush.bf16.msra.mxu0 0
      %2605 = vmatpush.bf16.msra.mxu0 0
      %2606 = vmatpush.bf16.msra.mxu0 0
      %2607 = vmatpush.bf16.msra.mxu0 0
      %2608 = vmatpush.bf16.msra.mxu0 0
      %2609 = vmatpush.bf16.msra.mxu0 %v2594
      %2610 = vmatmul.bf16.gmra.mxu0 %v2591
      %v2611 = vpop.f32.mrf.mxu0
      %v2612 = vadd.f32 0.0, %v2611
      %v2613 = vpop.f32.mrf.mxu0
      %2614 = vdwg.mxu0
      %2615 = vmatpush.bf16.msra.mxu0 0
      %2616 = vmatpush.bf16.msra.mxu0 0
      %2617 = vmatpush.bf16.msra.mxu0 0
      %2618 = vmatpush.bf16.msra.mxu0 0
      %2619 = vmatpush.bf16.msra.mxu0 0
      %2620 = vmatpush.bf16.msra.mxu0 0
      %2621 = vmatpush.bf16.msra.mxu0 0
      %2622 = vmatpush.bf16.msra.mxu0 %v2597
      %2623 = vmatmul.bf16.gmra.mxu0 %v2591
      %v2624 = vpop.f32.mrf.mxu0
      %v2625 = vadd.f32 0.0, %v2624
      %v2626 = vpop.f32.mrf.mxu0
      %2627 = vdwg.mxu0
      %2628 = vmatpush.bf16.msra.mxu0 0
      %2629 = vmatpush.bf16.msra.mxu0 0
      %2630 = vmatpush.bf16.msra.mxu0 0
      %2631 = vmatpush.bf16.msra.mxu0 0
      %2632 = vmatpush.bf16.msra.mxu0 0
      %2633 = vmatpush.bf16.msra.mxu0 0
      %2634 = vmatpush.bf16.msra.mxu0 0
      %2635 = vmatpush.bf16.msra.mxu0 %v2600
      %2636 = vmatmul.bf16.gmra.mxu0 %v2591
      %v2637 = vpop.f32.mrf.mxu0
      %v2638 = vadd.f32 0.0, %v2637
      %v2639 = vpop.f32.mrf.mxu0
      %2640 = vdwg.mxu0
      %v2641 = vadd.f32 %v2481, %v2612
      %v2642 = vadd.f32 %v2494, %v2625
      %v2643 = vadd.f32 %v2507, %v2638
      %s2644 = scalar_lea.vmem %s9, 24
      %v2645 = vld [vmem:[%s2644] sm:$0xf]
      %2646 = vrot.lane.b32.xlu0 %v2259, 92
      %v2647 = vpop.permute.xlu0 %2646
      %2648 = vrot.lane.b32.xlu0 %v2260, 92
      %v2649 = vpop.permute.xlu0 %2648
      %2650 = vrot.lane.b32.xlu0 %v2261, 92
      %v2651 = vpop.permute.xlu0 %2650
      %2652 = vrot.lane.b32.xlu0 %v2262, 92
      %v2653 = vpop.permute.xlu0 %2652
      %v2654 = vsel %vm1797, %v2647, %v2649
      %v2655 = vsel %vm1797, %v2649, %v2651
      %v2656 = vsel %vm1797, %v2651, %v2653
      %v2658 = vsel %vm1000, %v2645, 0
      %v2661 = vsel %vm1004, %v2654, 0
      %v2664 = vsel %vm1004, %v2655, 0
      %v2667 = vsel %vm1004, %v2656, 0
      %2669 = vmatpush.bf16.msra.mxu0 0
      %2670 = vmatpush.bf16.msra.mxu0 0
      %2671 = vmatpush.bf16.msra.mxu0 0
      %2672 = vmatpush.bf16.msra.mxu0 0
      %2673 = vmatpush.bf16.msra.mxu0 0
      %2674 = vmatpush.bf16.msra.mxu0 0
      %2675 = vmatpush.bf16.msra.mxu0 0
      %2676 = vmatpush.bf16.msra.mxu0 %v2661
      %2677 = vmatmul.bf16.gmra.mxu0 %v2658
      %v2678 = vpop.f32.mrf.mxu0
      %v2679 = vadd.f32 0.0, %v2678
      %v2680 = vpop.f32.mrf.mxu0
      %2681 = vdwg.mxu0
      %2682 = vmatpush.bf16.msra.mxu0 0
      %2683 = vmatpush.bf16.msra.mxu0 0
      %2684 = vmatpush.bf16.msra.mxu0 0
      %2685 = vmatpush.bf16.msra.mxu0 0
      %2686 = vmatpush.bf16.msra.mxu0 0
      %2687 = vmatpush.bf16.msra.mxu0 0
      %2688 = vmatpush.bf16.msra.mxu0 0
      %2689 = vmatpush.bf16.msra.mxu0 %v2664
      %2690 = vmatmul.bf16.gmra.mxu0 %v2658
      %v2691 = vpop.f32.mrf.mxu0
      %v2692 = vadd.f32 0.0, %v2691
      %v2693 = vpop.f32.mrf.mxu0
      %2694 = vdwg.mxu0
      %2695 = vmatpush.bf16.msra.mxu0 0
      %2696 = vmatpush.bf16.msra.mxu0 0
      %2697 = vmatpush.bf16.msra.mxu0 0
      %2698 = vmatpush.bf16.msra.mxu0 0
      %2699 = vmatpush.bf16.msra.mxu0 0
      %2700 = vmatpush.bf16.msra.mxu0 0
      %2701 = vmatpush.bf16.msra.mxu0 0
      %2702 = vmatpush.bf16.msra.mxu0 %v2667
      %2703 = vmatmul.bf16.gmra.mxu0 %v2658
      %v2704 = vpop.f32.mrf.mxu0
      %v2705 = vadd.f32 0.0, %v2704
      %v2706 = vpop.f32.mrf.mxu0
      %2707 = vdwg.mxu0
      %v2708 = vadd.f32 %v2574, %v2679
      %v2709 = vadd.f32 %v2575, %v2692
      %v2710 = vadd.f32 %v2576, %v2705
      %s2711 = scalar_lea.vmem %s9, 28
      %v2712 = vld [vmem:[%s2711] sm:$0xf]
      %2713 = vrot.lane.b32.xlu0 %v2259, 91
      %v2714 = vpop.permute.xlu0 %2713
      %2715 = vrot.lane.b32.xlu0 %v2260, 91
      %v2716 = vpop.permute.xlu0 %2715
      %2717 = vrot.lane.b32.xlu0 %v2261, 91
      %v2718 = vpop.permute.xlu0 %2717
      %2719 = vrot.lane.b32.xlu0 %v2262, 91
      %v2720 = vpop.permute.xlu0 %2719
      %v2721 = vsel %vm1932, %v2714, %v2716
      %v2722 = vsel %vm1932, %v2716, %v2718
      %v2723 = vsel %vm1932, %v2718, %v2720
      %v2725 = vsel %vm1000, %v2712, 0
      %v2728 = vsel %vm1004, %v2721, 0
      %v2731 = vsel %vm1004, %v2722, 0
      %v2734 = vsel %vm1004, %v2723, 0
      %2736 = vmatpush.bf16.msra.mxu0 0
      %2737 = vmatpush.bf16.msra.mxu0 0
      %2738 = vmatpush.bf16.msra.mxu0 0
      %2739 = vmatpush.bf16.msra.mxu0 0
      %2740 = vmatpush.bf16.msra.mxu0 0
      %2741 = vmatpush.bf16.msra.mxu0 0
      %2742 = vmatpush.bf16.msra.mxu0 0
      %2743 = vmatpush.bf16.msra.mxu0 %v2728
      %2744 = vmatmul.bf16.gmra.mxu0 %v2725
      %v2745 = vpop.f32.mrf.mxu0
      %v2746 = vadd.f32 0.0, %v2745
      %v2747 = vpop.f32.mrf.mxu0
      %2748 = vdwg.mxu0
      %2749 = vmatpush.bf16.msra.mxu0 0
      %2750 = vmatpush.bf16.msra.mxu0 0
      %2751 = vmatpush.bf16.msra.mxu0 0
      %2752 = vmatpush.bf16.msra.mxu0 0
      %2753 = vmatpush.bf16.msra.mxu0 0
      %2754 = vmatpush.bf16.msra.mxu0 0
      %2755 = vmatpush.bf16.msra.mxu0 0
      %2756 = vmatpush.bf16.msra.mxu0 %v2731
      %2757 = vmatmul.bf16.gmra.mxu0 %v2725
      %v2758 = vpop.f32.mrf.mxu0
      %v2759 = vadd.f32 0.0, %v2758
      %v2760 = vpop.f32.mrf.mxu0
      %2761 = vdwg.mxu0
      %2762 = vmatpush.bf16.msra.mxu0 0
      %2763 = vmatpush.bf16.msra.mxu0 0
      %2764 = vmatpush.bf16.msra.mxu0 0
      %2765 = vmatpush.bf16.msra.mxu0 0
      %2766 = vmatpush.bf16.msra.mxu0 0
      %2767 = vmatpush.bf16.msra.mxu0 0
      %2768 = vmatpush.bf16.msra.mxu0 0
      %2769 = vmatpush.bf16.msra.mxu0 %v2734
      %2770 = vmatmul.bf16.gmra.mxu0 %v2725
      %v2771 = vpop.f32.mrf.mxu0
      %v2772 = vadd.f32 0.0, %v2771
      %v2773 = vpop.f32.mrf.mxu0
      %2774 = vdwg.mxu0
      %v2775 = vadd.f32 %v2641, %v2746
      %v2776 = vadd.f32 %v2642, %v2759
      %v2777 = vadd.f32 %v2643, %v2772
      %s2778 = scalar_lea.vmem %s9, 32
      %v2779 = vld [vmem:[%s2778] sm:$0xf]
      %2780 = vrot.lane.b32.xlu0 %v2259, 90
      %v2781 = vpop.permute.xlu0 %2780
      %2782 = vrot.lane.b32.xlu0 %v2260, 90
      %v2783 = vpop.permute.xlu0 %2782
      %2784 = vrot.lane.b32.xlu0 %v2261, 90
      %v2785 = vpop.permute.xlu0 %2784
      %2786 = vrot.lane.b32.xlu0 %v2262, 90
      %v2787 = vpop.permute.xlu0 %2786
      %v2788 = vsel %vm2067, %v2781, %v2783
      %v2789 = vsel %vm2067, %v2783, %v2785
      %v2790 = vsel %vm2067, %v2785, %v2787
      %v2792 = vsel %vm1000, %v2779, 0
      %v2795 = vsel %vm1004, %v2788, 0
      %v2798 = vsel %vm1004, %v2789, 0
      %v2801 = vsel %vm1004, %v2790, 0
      %2803 = vmatpush.bf16.msra.mxu0 0
      %2804 = vmatpush.bf16.msra.mxu0 0
      %2805 = vmatpush.bf16.msra.mxu0 0
      %2806 = vmatpush.bf16.msra.mxu0 0
      %2807 = vmatpush.bf16.msra.mxu0 0
      %2808 = vmatpush.bf16.msra.mxu0 0
      %2809 = vmatpush.bf16.msra.mxu0 0
      %2810 = vmatpush.bf16.msra.mxu0 %v2795
      %2811 = vmatmul.bf16.gmra.mxu0 %v2792
      %v2812 = vpop.f32.mrf.mxu0
      %v2813 = vadd.f32 0.0, %v2812
      %v2814 = vpop.f32.mrf.mxu0
      %2815 = vdwg.mxu0
      %2816 = vmatpush.bf16.msra.mxu0 0
      %2817 = vmatpush.bf16.msra.mxu0 0
      %2818 = vmatpush.bf16.msra.mxu0 0
      %2819 = vmatpush.bf16.msra.mxu0 0
      %2820 = vmatpush.bf16.msra.mxu0 0
      %2821 = vmatpush.bf16.msra.mxu0 0
      %2822 = vmatpush.bf16.msra.mxu0 0
      %2823 = vmatpush.bf16.msra.mxu0 %v2798
      %2824 = vmatmul.bf16.gmra.mxu0 %v2792
      %v2825 = vpop.f32.mrf.mxu0
      %v2826 = vadd.f32 0.0, %v2825
      %v2827 = vpop.f32.mrf.mxu0
      %2828 = vdwg.mxu0
      %2829 = vmatpush.bf16.msra.mxu0 0
      %2830 = vmatpush.bf16.msra.mxu0 0
      %2831 = vmatpush.bf16.msra.mxu0 0
      %2832 = vmatpush.bf16.msra.mxu0 0
      %2833 = vmatpush.bf16.msra.mxu0 0
      %2834 = vmatpush.bf16.msra.mxu0 0
      %2835 = vmatpush.bf16.msra.mxu0 0
      %2836 = vmatpush.bf16.msra.mxu0 %v2801
      %2837 = vmatmul.bf16.gmra.mxu0 %v2792
      %v2838 = vpop.f32.mrf.mxu0
      %v2839 = vadd.f32 0.0, %v2838
      %v2840 = vpop.f32.mrf.mxu0
      %2841 = vdwg.mxu0
      %v2842 = vadd.f32 %v2708, %v2813
      %v2843 = vadd.f32 %v2709, %v2826
      %v2844 = vadd.f32 %v2710, %v2839
      %v2845 = vadd.f32 %v2842, %v2775
      %v2846 = vadd.f32 %v2843, %v2776
      %v2847 = vadd.f32 %v2844, %v2777
      %v2848 = vld [vmem:[%s10] sm:$0xff]
      %2850 = vset.pattern.permute.xlu0 0
      %2851 = vperm.xlu0 %2850, %v2848
      %v2852 = vpop.permute.xlu0 %2851
      %v2854 = vadd.f32 %v2845, %v2852
      %v2855 = vadd.f32 %v2846, %v2852
      %v2856 = vadd.f32 %v2847, %v2852
      %v2857 = vmax.f32 %v2854, 0.0
      %v2858 = vmax.f32 %v2855, 0.0
      %v2859 = vmax.f32 %v2856, 0.0
      %2860 = vst [vmem:[%s408] sm:$0xff] %v2857
      %2861 = vst [vmem:[%s408 + $0x8] sm:$0xff] %v2858
      %2862 = vst [vmem:[%s408 + $0x10] sm:$0xff] %v2859
      %p2863 = scmp.lt.s32.totalorder %s22, 1
      %s2864 = scalar_select %p2863, %s22, 1
      %s2865 = smul.addr %s2864, 3
      %s2866 = smul.addr %s2865, 8
      %s2867 = scalar_lea.vmem %s11, %s2866
      // Predicated region
      $region65: #{up_forward.1} parent=63 // pred_check
        %p2868 = pneg %p281
      $region66: #{up_forward.1} parent=63 // pred_check_branch
        %2870 = sbr.rel (%p2868) target = $region68
      $region67: #{up_forward.1} parent=63 // pred_region
        _
      $region68: #{up_forward.1} parent=63 // pred_fallthru
        _
    $region64: #{up_forward.1} parent=5 // pred_fallthru
      _
    %p2871 = scmp.le.s32.totalorder 2, %s17
    // Predicated region
    $region69: #{up_forward.1} parent=5 // pred_check
      %p2872 = pneg %p2871
    $region70: #{up_forward.1} parent=5 // pred_check_branch
      %2874 = sbr.rel (%p2872) target = $region72
    $region71: #{up_forward.1} parent=5 // pred_region
      %s2875 = ssub.s32 %s17, 2
      // Predicated region
      $region73: #{up_forward.1} parent=71 // pred_check
        %p2876 = pneg %p287
      $region74: #{up_forward.1} parent=71 // pred_check_branch
        %2878 = sbr.rel (%p2876) target = $region76
      $region75: #{up_forward.1} parent=71 // pred_region
        %p2879 = scmp.lt.s32.totalorder %s23, 1
        %s2880 = scalar_select %p2879, %s23, 1
        %s2881 = smul.addr %s2880, 3
        %s2882 = smul.addr %s2881, 8
        %s2883 = scalar_lea.vmem %s11, %s2882
      $region76: #{up_forward.1} parent=71 // pred_fallthru
        _
    $region72: #{up_forward.1} parent=5 // pred_fallthru
      _
  $region6: #{up_forward.1} parent=0 // loop_footer
    %s21 = sadd.s32 1, %s17
  $region7: #{up_forward.1} parent=0 // loop_footer_branch
    %16 = sbr.rel target = $region3
  $region8: #{up_forward.1} parent=0 // loop_exit
    _

</llo_original>
